<compile_context>
chip_gen: v7x
topology: tpu7x:2x2x1
jax: 0.10.0
libtpu: 0.0.40
codegen_flags: <defaults>
</compile_context>

<pallas_src>
import functools
import math

import jax
import jax.numpy as jnp
from jax import lax
from jax.experimental import pallas as pl
from jax.experimental.pallas import tpu as pltpu

_EPS = 1e-5


def _roundup(x, m):
    return ((x + m - 1) // m) * m


def _default_grid_steps(n):
    """One grid step per TensorCore: 1 on single-TC chips (v5e/v6e),
    2 on dual-TC chips (v4/v5p/v7x) when the batch allows it."""
    try:
        kind = jax.devices()[0].device_kind.lower()
    except Exception:
        kind = ""
    dual_tc = any(t in kind for t in ("v4", "v5p", "v7", "tpu7"))
    return 2 if (dual_tc and n % 2 == 0) else 1


# ---------------------------------------------------------------------------
# In-kernel helpers: channel-major, batch-folded flat layout (C_pad, nb*H*W)
# ---------------------------------------------------------------------------
def _conv3x3_flat(x, w, b, mask_rows, W):
    """3x3 / stride-1 / pad-1 conv on (Cin_p, L) -> (Cout_p, L), L = nb*H*W.

    The 9 taps are lane rotations of the flat image; out-of-image (and
    between-image) source positions are zeroed by precomputed masks, so the
    taps form one im2col matrix and ONE bf16 MXU matmul with f32 accumulation.
    `w` is (Cout_p, 9*Cin_p) bf16, tap-major ((dh,dw) row-major) / cin-minor.
    """
    L = x.shape[1]
    taps = []
    k = 0
    for dh in (-1, 0, 1):
        for dw in (-1, 0, 1):
            off = dh * W + dw
            # t[:, p] == x[:, p + off]  (circular; invalid taps masked below)
            t = x if off == 0 else pltpu.roll(x, (-off) % L, axis=1)
            if dh != 0 or dw != 0:
                t = t * mask_rows[k]            # (1, L) {0,1} f32
            taps.append(t)
            k += 1
    patches = jnp.concatenate(taps, axis=0)     # (9*Cin_p, L) f32, 8-aligned pieces
    out = jnp.dot(w, patches.astype(jnp.bfloat16),
                  preferred_element_type=jnp.float32)
    return out + b                              # bias: (Cout_p, 1) f32


def _basic_block(x, w1, b1, w2, b2, mask_rows, W):
    """conv3x3+BN+ReLU -> conv3x3+BN -> +residual -> ReLU (BN folded, f32 path)."""
    h = jnp.maximum(_conv3x3_flat(x, w1, b1, mask_rows, W), 0.0)
    o = _conv3x3_flat(h, w2, b2, mask_rows, W) + x
    return jnp.maximum(o, 0.0)


def _fmi_kernel(x0_ref, x1_ref,
                wb0_ref, bb0_ref, wb1_ref, bb1_ref,
                w01_ref, b01_ref, w10_ref, b10_ref,
                up_ref, sub_ref, m0_ref, m1_ref,
                f0_ref, f1_ref, *, W0, W1):
    x0 = x0_ref[...]                 # (CP0, L0) f32, channel-padded with zeros
    x1 = x1_ref[...]                 # (CP1, L1) f32

    # Per-tap boundary masks: loaded ONCE and reused by all 5 convs per res.
    m0 = [m0_ref[k:k + 1, :] for k in range(9)]
    m1 = [m1_ref[k:k + 1, :] for k in range(9)]

    # branches: two BasicBlocks each (all intermediates stay in VMEM)
    b0 = _basic_block(x0, wb0_ref[0], bb0_ref[0], wb0_ref[1], bb0_ref[1], m0, W0)
    b0 = _basic_block(b0, wb0_ref[2], bb0_ref[2], wb0_ref[3], bb0_ref[3], m0, W0)
    b1 = _basic_block(x1, wb1_ref[0], bb1_ref[0], wb1_ref[1], bb1_ref[1], m1, W1)
    b1 = _basic_block(b1, wb1_ref[2], bb1_ref[2], wb1_ref[3], bb1_ref[3], m1, W1)

    # fuse output 0: relu( b0 + nearest_up2( BN(conv1x1(b1)) ) )
    y01 = jnp.dot(w01_ref[...], b1.astype(jnp.bfloat16),
                  preferred_element_type=jnp.float32) + b01_ref[...]
    up = jnp.dot(y01.astype(jnp.bfloat16), up_ref[...],
                 preferred_element_type=jnp.float32)            # (CP0, L0)
    f0_ref[...] = jnp.maximum(b0 + up, 0.0).astype(f0_ref.dtype)

    # fuse output 1: relu( BN(conv3x3_stride2(b0)) + b1 )
    full = _conv3x3_flat(b0, w10_ref[...], b10_ref[...], m0, W0)  # (CP1, L0)
    y10 = jnp.dot(full.astype(jnp.bfloat16), sub_ref[...],
                  preferred_element_type=jnp.float32)             # (CP1, L1)
    f1_ref[...] = jnp.maximum(y10 + b1, 0.0).astype(f1_ref.dtype)


# ---------------------------------------------------------------------------
# Host-side constant builders (masks / selection matrices, per grid step)
# ---------------------------------------------------------------------------
def _tap_masks(H, W, nb):
    """(9, nb*H*W) f32 {0,1}: mask[k, p] == 1 iff tap k of image-local p is valid."""
    HW = H * W
    q = jnp.arange(nb * HW) % HW            # image-local flat position
    row, col = q // W, q % W
    masks = []
    for dh in (-1, 0, 1):
        for dw in (-1, 0, 1):
            m = jnp.ones((nb * HW,), bool)
            if dh == -1:
                m &= row >= 1
            elif dh == 1:
                m &= row <= H - 2
            if dw == -1:
                m &= col >= 1
            elif dw == 1:
                m &= col <= W - 2
            masks.append(m)
    return jnp.stack(masks).astype(jnp.float32)


def _nearest_up2_matrix(H1, W1, nb):
    """U (nb*H1*W1, nb*H0*W0) bf16 0/1 block-diag: y @ U = nearest 2x upsample."""
    H0, W0 = 2 * H1, 2 * W1
    HW0, HW1 = H0 * W0, H1 * W1
    d = jnp.arange(nb * HW0)
    n, q = d // HW0, d % HW0
    src = n * HW1 + (q // W0 // 2) * W1 + (q % W0) // 2
    return (jnp.arange(nb * HW1)[:, None] == src[None, :]).astype(jnp.bfloat16)


def _stride2_subsample_matrix(H0, W0, nb):
    """S (nb*H0*W0, nb*H1*W1) bf16 0/1 block-diag: x @ S keeps positions (2i, 2j)."""
    H1, W1 = H0 // 2, W0 // 2
    HW0, HW1 = H0 * W0, H1 * W1
    q = jnp.arange(nb * HW1)
    n, r = q // HW1, q % HW1
    sel = n * HW0 + (r // W1) * 2 * W0 + (r % W1) * 2
    return (jnp.arange(nb * HW0)[:, None] == sel[None, :]).astype(jnp.bfloat16)


# ---------------------------------------------------------------------------
# Wrapper around pallas_call
# ---------------------------------------------------------------------------
def fmi_forward(params, x0_nchw, x1_nchw, *, FIF_flags=False, grid_steps=None):
    """FMI_Module forward (FIF_flags=False). Inputs/outputs are NCHW."""
    if FIF_flags:
        # TODO(synk): FIF_flags=True path not implemented.
        raise NotImplementedError("FIF_flags=True path is not implemented")

    N, C, H0, W0 = x0_nchw.shape
    _, C2, H1, W1 = x1_nchw.shape
    assert C2 == 2 * C and H0 == 2 * H1 and W0 == 2 * W1
    CP0, CP1 = _roundup(C, 8), _roundup(C2, 8)
    HW0, HW1 = H0 * W0, H1 * W1

    G = grid_steps if grid_steps is not None else _default_grid_steps(N)
    assert N % G == 0
    nb = N // G                        # images per grid step (folded into lanes)
    L0, L1 = nb * HW0, nb * HW1

    # NCHW -> channel-major with batch folded into the lane axis, channel-padded.
    def to_flat(x, cp):
        n, c, h, w = x.shape
        flat = jnp.transpose(x.reshape(n, c, h * w), (1, 0, 2)).reshape(c, n * h * w)
        return jnp.pad(flat, ((0, cp - c), (0, 0)))

    x0 = to_flat(x0_nchw, CP0)         # (CP0, N*HW0)
    x1 = to_flat(x1_nchw, CP1)         # (CP1, N*HW1)

    up_mat = _nearest_up2_matrix(H1, W1, nb)          # (L1, L0) bf16
    sub_mat = _stride2_subsample_matrix(H0, W0, nb)   # (L0, L1) bf16
    mask0 = _tap_masks(H0, W0, nb)                    # (9, L0) f32
    mask1 = _tap_masks(H1, W1, nb)                    # (9, L1) f32

    consts = (params["wb0"], params["bb0"], params["wb1"], params["bb1"],
              params["w01"], params["b01"], params["w10"], params["b10"],
              up_mat, sub_mat, mask0, mask1)

    def bcast_spec(a):
        zeros = (0,) * a.ndim
        return pl.BlockSpec(a.shape, lambda g: zeros)

    kernel = functools.partial(_fmi_kernel, W0=W0, W1=W1)

    flops = (2 * N * (4 * 9 * CP0 * CP0 * HW0 + 4 * 9 * CP1 * CP1 * HW1
                      + 9 * CP0 * CP1 * HW0 + CP0 * CP1 * HW1)
             + 2 * G * (CP0 * L1 * L0 + CP1 * L0 * L1))
    bytes_accessed = (4 * (x0.size + x1.size + CP0 * N * HW0 + CP1 * N * HW1)
                      + sum(int(a.size) * a.dtype.itemsize for a in consts))

    f0, f1 = pl.pallas_call(
        kernel,
        out_shape=(jax.ShapeDtypeStruct((CP0, N * HW0), jnp.float32),
                   jax.ShapeDtypeStruct((CP1, N * HW1), jnp.float32)),
        grid=(G,),
        in_specs=[pl.BlockSpec((CP0, L0), lambda g: (0, g)),
                  pl.BlockSpec((CP1, L1), lambda g: (0, g))]
                 + [bcast_spec(a) for a in consts],
        out_specs=(pl.BlockSpec((CP0, L0), lambda g: (0, g)),
                   pl.BlockSpec((CP1, L1), lambda g: (0, g))),
        compiler_params=pltpu.CompilerParams(
            dimension_semantics=("parallel",),        # dual-TC chips split the grid
            vmem_limit_bytes=32 * 1024 * 1024),
        cost_estimate=pl.CostEstimate(flops=int(flops), transcendentals=0,
                                      bytes_accessed=int(bytes_accessed)),
    )(x0, x1, *consts)

    # drop padded channels, unfold batch from the lane axis, back to NCHW
    def from_flat(y, c, h, w):
        return jnp.transpose(y[:c].reshape(c, N, h * w), (1, 0, 2)).reshape(N, c, h, w)

    return from_flat(f0, C, H0, W0), from_flat(f1, C2, H1, W1)


# ---------------------------------------------------------------------------
# Parameter construction (deterministic, BN folded; weights rounded to bf16)
# ---------------------------------------------------------------------------
def _conv_weight(key, cin, cout, k):
    fan_in = cin * k * k
    return jax.random.normal(key, (k, k, cin, cout), jnp.float32) / math.sqrt(fan_in)


def _bn_params(key, ch):
    k1, k2, k3, k4 = jax.random.split(key, 4)
    gamma = 1.0 + 0.1 * jax.random.normal(k1, (ch,), jnp.float32)
    beta = 0.1 * jax.random.normal(k2, (ch,), jnp.float32)
    mean = 0.1 * jax.random.normal(k3, (ch,), jnp.float32)
    var = 1.0 + 0.1 * jax.random.uniform(k4, (ch,), jnp.float32)
    return gamma, beta, mean, var


def _fold_conv_bn(w_hwio, gamma, beta, mean, var):
    scale = gamma / jnp.sqrt(var + _EPS)
    w = (w_hwio * scale[None, None, None, :])
    # round weights to bf16-representable values (MXU operands are bf16)
    return w.astype(jnp.bfloat16).astype(jnp.float32), beta - mean * scale


def _pack_w3x3(w_hwio, cin_p, cout_p):
    kh, kw, cin, cout = w_hwio.shape
    w = jnp.zeros((kh, kw, cin_p, cout_p), w_hwio.dtype)
    w = w.at[:, :, :cin, :cout].set(w_hwio)
    # (Cout_p, 9*Cin_p), K index = (kh*3 + kw)*Cin_p + cin  == kernel tap ordering
    return jnp.transpose(w, (3, 0, 1, 2)).reshape(cout_p, kh * kw * cin_p)


def init_params(key, c):
    """Returns (packed params for the Pallas kernel, raw folded HWIO params)."""
    cp0, cp1 = _roundup(c, 8), _roundup(2 * c, 8)
    ks = jax.random.split(key, 6)

    def make_branch(key, ch, chp):
        kk = jax.random.split(key, 8)
        raw = []
        for i in range(4):                               # 2 BasicBlocks x 2 convs
            w, b = _fold_conv_bn(_conv_weight(kk[2 * i], ch, ch, 3),
                                 *_bn_params(kk[2 * i + 1], ch))
            raw.append((w, b))
        w_pack = jnp.stack([_pack_w3x3(w, chp, chp) for w, _ in raw]
                           ).astype(jnp.bfloat16)                      # (4,chp,9chp)
        b_pack = jnp.stack([jnp.pad(b, (0, chp - ch)).reshape(chp, 1)
                            for _, b in raw])                          # (4,chp,1) f32
        return raw, w_pack, b_pack

    raw0, wb0, bb0 = make_branch(ks[0], c, cp0)
    raw1, wb1, bb1 = make_branch(ks[1], 2 * c, cp1)

    # fuse[0][1]: 1x1 conv (2c -> c) + BN   (nearest x2 upsample done in-kernel)
    w01, b01 = _fold_conv_bn(_conv_weight(ks[2], 2 * c, c, 1), *_bn_params(ks[3], c))
    # fuse[1][0]: 3x3 stride-2 conv (c -> 2c) + BN
    w10, b10 = _fold_conv_bn(_conv_weight(ks[4], c, 2 * c, 3), *_bn_params(ks[5], 2 * c))

    w01_mat = jnp.zeros((cp0, cp1), jnp.float32
                        ).at[:c, :2 * c].set(jnp.transpose(w01[0, 0], (1, 0))
                                             ).astype(jnp.bfloat16)     # (cp0, cp1)
    b01_vec = jnp.pad(b01, (0, cp0 - c)).reshape(cp0, 1)
    w10_mat = _pack_w3x3(w10, cp0, cp1).astype(jnp.bfloat16)            # (cp1, 9*cp0)
    b10_vec = jnp.pad(b10, (0, cp1 - 2 * c)).reshape(cp1, 1)

    packed = dict(wb0=wb0, bb0=bb0, wb1=wb1, bb1=bb1,
                  w01=w01_mat, b01=b01_vec, w10=w10_mat, b10=b10_vec)
    raw = dict(branch0=raw0, branch1=raw1, w01=w01, b01=b01, w10=w10, b10=b10)
    return packed, raw


# ---------------------------------------------------------------------------
# Pure-JAX reference (same bf16-rounded folded weights) for correctness check
# ---------------------------------------------------------------------------
def _ref_conv(x, w_hwio, b, stride, pad):
    out = lax.conv_general_dilated(
        x, w_hwio, window_strides=(stride, stride),
        padding=((pad, pad), (pad, pad)),
        dimension_numbers=("NCHW", "HWIO", "NCHW"))
    return out + b[None, :, None, None]


def _ref_block(x, w1, b1, w2, b2):
    h = jnp.maximum(_ref_conv(x, w1, b1, 1, 1), 0.0)
    return jnp.maximum(_ref_conv(h, w2, b2, 1, 1) + x, 0.0)


def ref_forward(raw, x0, x1):
    b0, b1 = x0, x1
    for i in (0, 2):
        b0 = _ref_block(b0, *raw["branch0"][i], *raw["branch0"][i + 1])
        b1 = _ref_block(b1, *raw["branch1"][i], *raw["branch1"][i + 1])
    y01 = _ref_conv(b1, raw["w01"], raw["b01"], 1, 0)
    f0 = jnp.maximum(b0 + jnp.repeat(jnp.repeat(y01, 2, axis=2), 2, axis=3), 0.0)
    y10 = _ref_conv(b0, raw["w10"], raw["b10"], 2, 1)
    f1 = jnp.maximum(y10 + b1, 0.0)
    return f0, f1


# ---------------------------------------------------------------------------
if __name__ == "__main__":
    c = 4
    N, H, W = 2, 16, 16

    key = jax.random.PRNGKey(0)
    kx0, kx1, kp = jax.random.split(key, 3)

    # PyTorch-convention NCHW inputs: branch0 full res, branch1 half res / 2x ch.
    x0 = jax.random.normal(kx0, (N, c, H, W), jnp.float32)
    x1 = jax.random.normal(kx1, (N, 2 * c, H // 2, W // 2), jnp.float32)

    packed, raw = init_params(kp, c)

    f0, f1 = jax.jit(fmi_forward)(packed, x0, x1)
    jax.block_until_ready((f0, f1))
    assert f0.shape == (N, c, H, W)
    assert f1.shape == (N, 2 * c, H // 2, W // 2)

    # correctness check against a pure-JAX reference of the same module
    # (only activation bf16 rounding differs; typical relative error ~1e-3)
    r0, r1 = jax.jit(ref_forward)(raw, x0, x1)
    rel0 = float(jnp.max(jnp.abs(f0 - r0))) / (float(jnp.max(jnp.abs(r0))) + 1e-6)
    rel1 = float(jnp.max(jnp.abs(f1 - r1))) / (float(jnp.max(jnp.abs(r1))) + 1e-6)
    assert rel0 < 2e-2 and rel1 < 2e-2, (rel0, rel1)

    print("KERNEL_OK")
</pallas_src>

<mosaic_0001>
module attributes {stable_mosaic.version = 11 : i64} {
  func.func @_fmi_kernel(%arg0: i32, %arg1: memref<8x512xf32, #tpu.memory_space<vmem>>, %arg2: memref<8x128xf32, #tpu.memory_space<vmem>>, %arg3: memref<4x8x72xbf16, #tpu.memory_space<vmem>>, %arg4: memref<4x8x1xf32, #tpu.memory_space<vmem>>, %arg5: memref<4x8x72xbf16, #tpu.memory_space<vmem>>, %arg6: memref<4x8x1xf32, #tpu.memory_space<vmem>>, %arg7: memref<8x8xbf16, #tpu.memory_space<vmem>>, %arg8: memref<8x1xf32, #tpu.memory_space<vmem>>, %arg9: memref<8x72xbf16, #tpu.memory_space<vmem>>, %arg10: memref<8x1xf32, #tpu.memory_space<vmem>>, %arg11: memref<128x512xbf16, #tpu.memory_space<vmem>>, %arg12: memref<512x128xbf16, #tpu.memory_space<vmem>>, %arg13: memref<9x512xf32, #tpu.memory_space<vmem>>, %arg14: memref<9x128xf32, #tpu.memory_space<vmem>>, %arg15: memref<8x512xf32, #tpu.memory_space<vmem>>, %arg16: memref<8x128xf32, #tpu.memory_space<vmem>>) attributes {dimension_semantics = [#tpu.dimension_semantics<parallel>], iteration_bounds = array<i64: 1>, scalar_prefetch = 0 : i64, scratch_operands = 0 : i64, tpu.core_type = #tpu.core_type<tc>, window_params = [{transform_indices = @transform_0, window_bounds = array<i64: 8, 512>}, {transform_indices = @transform_1, window_bounds = array<i64: 8, 128>}, {pipeline_mode = #tpu.pipeline_mode<synchronous>, transform_indices = @transform_2, window_bounds = array<i64: 4, 8, 72>}, {pipeline_mode = #tpu.pipeline_mode<synchronous>, transform_indices = @transform_3, window_bounds = array<i64: 4, 8, 1>}, {pipeline_mode = #tpu.pipeline_mode<synchronous>, transform_indices = @transform_4, window_bounds = array<i64: 4, 8, 72>}, {pipeline_mode = #tpu.pipeline_mode<synchronous>, transform_indices = @transform_5, window_bounds = array<i64: 4, 8, 1>}, {pipeline_mode = #tpu.pipeline_mode<synchronous>, transform_indices = @transform_6, window_bounds = array<i64: 8, 8>}, {pipeline_mode = #tpu.pipeline_mode<synchronous>, transform_indices = @transform_7, window_bounds = array<i64: 8, 1>}, {pipeline_mode = #tpu.pipeline_mode<synchronous>, transform_indices = @transform_8, window_bounds = array<i64: 8, 72>}, {pipeline_mode = #tpu.pipeline_mode<synchronous>, transform_indices = @transform_9, window_bounds = array<i64: 8, 1>}, {pipeline_mode = #tpu.pipeline_mode<synchronous>, transform_indices = @transform_10, window_bounds = array<i64: 128, 512>}, {pipeline_mode = #tpu.pipeline_mode<synchronous>, transform_indices = @transform_11, window_bounds = array<i64: 512, 128>}, {pipeline_mode = #tpu.pipeline_mode<synchronous>, transform_indices = @transform_12, window_bounds = array<i64: 9, 512>}, {pipeline_mode = #tpu.pipeline_mode<synchronous>, transform_indices = @transform_13, window_bounds = array<i64: 9, 128>}, {transform_indices = @transform_14, window_bounds = array<i64: 8, 512>}, {transform_indices = @transform_15, window_bounds = array<i64: 8, 128>}]} {
    %c0 = arith.constant 0 : index
    %c0_0 = arith.constant 0 : index
    %0 = vector.load %arg1[%c0, %c0_0] : memref<8x512xf32, #tpu.memory_space<vmem>>, vector<8x512xf32>
    %c0_1 = arith.constant 0 : index
    %c0_2 = arith.constant 0 : index
    %1 = vector.load %arg2[%c0_1, %c0_2] : memref<8x128xf32, #tpu.memory_space<vmem>>, vector<8x128xf32>
    %c0_3 = arith.constant 0 : index
    %c0_4 = arith.constant 0 : index
    %2 = vector.load %arg13[%c0_3, %c0_4] : memref<9x512xf32, #tpu.memory_space<vmem>>, vector<1x512xf32>
    %c1 = arith.constant 1 : index
    %c0_5 = arith.constant 0 : index
    %3 = vector.load %arg13[%c1, %c0_5] : memref<9x512xf32, #tpu.memory_space<vmem>>, vector<1x512xf32>
    %c2 = arith.constant 2 : index
    %c0_6 = arith.constant 0 : index
    %4 = vector.load %arg13[%c2, %c0_6] : memref<9x512xf32, #tpu.memory_space<vmem>>, vector<1x512xf32>
    %c3 = arith.constant 3 : index
    %c0_7 = arith.constant 0 : index
    %5 = vector.load %arg13[%c3, %c0_7] : memref<9x512xf32, #tpu.memory_space<vmem>>, vector<1x512xf32>
    %c5 = arith.constant 5 : index
    %c0_8 = arith.constant 0 : index
    %6 = vector.load %arg13[%c5, %c0_8] : memref<9x512xf32, #tpu.memory_space<vmem>>, vector<1x512xf32>
    %c6 = arith.constant 6 : index
    %c0_9 = arith.constant 0 : index
    %7 = vector.load %arg13[%c6, %c0_9] : memref<9x512xf32, #tpu.memory_space<vmem>>, vector<1x512xf32>
    %c7 = arith.constant 7 : index
    %c0_10 = arith.constant 0 : index
    %8 = vector.load %arg13[%c7, %c0_10] : memref<9x512xf32, #tpu.memory_space<vmem>>, vector<1x512xf32>
    %c8 = arith.constant 8 : index
    %c0_11 = arith.constant 0 : index
    %9 = vector.load %arg13[%c8, %c0_11] : memref<9x512xf32, #tpu.memory_space<vmem>>, vector<1x512xf32>
    %c0_12 = arith.constant 0 : index
    %c0_13 = arith.constant 0 : index
    %10 = vector.load %arg14[%c0_12, %c0_13] : memref<9x128xf32, #tpu.memory_space<vmem>>, vector<1x128xf32>
    %c1_14 = arith.constant 1 : index
    %c0_15 = arith.constant 0 : index
    %11 = vector.load %arg14[%c1_14, %c0_15] : memref<9x128xf32, #tpu.memory_space<vmem>>, vector<1x128xf32>
    %c2_16 = arith.constant 2 : index
    %c0_17 = arith.constant 0 : index
    %12 = vector.load %arg14[%c2_16, %c0_17] : memref<9x128xf32, #tpu.memory_space<vmem>>, vector<1x128xf32>
    %c3_18 = arith.constant 3 : index
    %c0_19 = arith.constant 0 : index
    %13 = vector.load %arg14[%c3_18, %c0_19] : memref<9x128xf32, #tpu.memory_space<vmem>>, vector<1x128xf32>
    %c5_20 = arith.constant 5 : index
    %c0_21 = arith.constant 0 : index
    %14 = vector.load %arg14[%c5_20, %c0_21] : memref<9x128xf32, #tpu.memory_space<vmem>>, vector<1x128xf32>
    %c6_22 = arith.constant 6 : index
    %c0_23 = arith.constant 0 : index
    %15 = vector.load %arg14[%c6_22, %c0_23] : memref<9x128xf32, #tpu.memory_space<vmem>>, vector<1x128xf32>
    %c7_24 = arith.constant 7 : index
    %c0_25 = arith.constant 0 : index
    %16 = vector.load %arg14[%c7_24, %c0_25] : memref<9x128xf32, #tpu.memory_space<vmem>>, vector<1x128xf32>
    %c8_26 = arith.constant 8 : index
    %c0_27 = arith.constant 0 : index
    %17 = vector.load %arg14[%c8_26, %c0_27] : memref<9x128xf32, #tpu.memory_space<vmem>>, vector<1x128xf32>
    %c0_28 = arith.constant 0 : index
    %c0_29 = arith.constant 0 : index
    %c0_30 = arith.constant 0 : index
    %18 = vector.load %arg3[%c0_28, %c0_29, %c0_30] : memref<4x8x72xbf16, #tpu.memory_space<vmem>>, vector<1x8x72xbf16>
    %19 = vector.shape_cast %18 : vector<1x8x72xbf16> to vector<8x72xbf16>
    %c0_31 = arith.constant 0 : index
    %c0_32 = arith.constant 0 : index
    %c0_33 = arith.constant 0 : index
    %20 = vector.load %arg4[%c0_31, %c0_32, %c0_33] : memref<4x8x1xf32, #tpu.memory_space<vmem>>, vector<1x8x1xf32>
    %21 = vector.shape_cast %20 : vector<1x8x1xf32> to vector<8x1xf32>
    %c1_34 = arith.constant 1 : index
    %c0_35 = arith.constant 0 : index
    %c0_36 = arith.constant 0 : index
    %22 = vector.load %arg3[%c1_34, %c0_35, %c0_36] : memref<4x8x72xbf16, #tpu.memory_space<vmem>>, vector<1x8x72xbf16>
    %23 = vector.shape_cast %22 : vector<1x8x72xbf16> to vector<8x72xbf16>
    %c1_37 = arith.constant 1 : index
    %c0_38 = arith.constant 0 : index
    %c0_39 = arith.constant 0 : index
    %24 = vector.load %arg4[%c1_37, %c0_38, %c0_39] : memref<4x8x1xf32, #tpu.memory_space<vmem>>, vector<1x8x1xf32>
    %25 = vector.shape_cast %24 : vector<1x8x1xf32> to vector<8x1xf32>
    %c17_i32 = arith.constant 17 : i32
    %26 = tpu.dynamic_rotate %0 by %c17_i32 dim 1 : vector<8x512xf32>, i32 -> vector<8x512xf32>
    %27 = vector.broadcast %2 : vector<1x512xf32> to vector<8x512xf32>
    %28 = arith.mulf %26, %27 : vector<8x512xf32>
    %c16_i32 = arith.constant 16 : i32
    %29 = tpu.dynamic_rotate %0 by %c16_i32 dim 1 : vector<8x512xf32>, i32 -> vector<8x512xf32>
    %30 = vector.broadcast %3 : vector<1x512xf32> to vector<8x512xf32>
    %31 = arith.mulf %29, %30 : vector<8x512xf32>
    %c15_i32 = arith.constant 15 : i32
    %32 = tpu.dynamic_rotate %0 by %c15_i32 dim 1 : vector<8x512xf32>, i32 -> vector<8x512xf32>
    %33 = vector.broadcast %4 : vector<1x512xf32> to vector<8x512xf32>
    %34 = arith.mulf %32, %33 : vector<8x512xf32>
    %c1_i32 = arith.constant 1 : i32
    %35 = tpu.dynamic_rotate %0 by %c1_i32 dim 1 : vector<8x512xf32>, i32 -> vector<8x512xf32>
    %36 = vector.broadcast %5 : vector<1x512xf32> to vector<8x512xf32>
    %37 = arith.mulf %35, %36 : vector<8x512xf32>
    %c511_i32 = arith.constant 511 : i32
    %38 = tpu.dynamic_rotate %0 by %c511_i32 dim 1 : vector<8x512xf32>, i32 -> vector<8x512xf32>
    %39 = vector.broadcast %6 : vector<1x512xf32> to vector<8x512xf32>
    %40 = arith.mulf %38, %39 : vector<8x512xf32>
    %c497_i32 = arith.constant 497 : i32
    %41 = tpu.dynamic_rotate %0 by %c497_i32 dim 1 : vector<8x512xf32>, i32 -> vector<8x512xf32>
    %42 = vector.broadcast %7 : vector<1x512xf32> to vector<8x512xf32>
    %43 = arith.mulf %41, %42 : vector<8x512xf32>
    %c496_i32 = arith.constant 496 : i32
    %44 = tpu.dynamic_rotate %0 by %c496_i32 dim 1 : vector<8x512xf32>, i32 -> vector<8x512xf32>
    %45 = vector.broadcast %8 : vector<1x512xf32> to vector<8x512xf32>
    %46 = arith.mulf %44, %45 : vector<8x512xf32>
    %c495_i32 = arith.constant 495 : i32
    %47 = tpu.dynamic_rotate %0 by %c495_i32 dim 1 : vector<8x512xf32>, i32 -> vector<8x512xf32>
    %48 = vector.broadcast %9 : vector<1x512xf32> to vector<8x512xf32>
    %49 = arith.mulf %47, %48 : vector<8x512xf32>
    %50 = tpu.concatenate %28, %31, %34, %37, %0, %40, %43, %46, %49 in 0 : vector<8x512xf32>, vector<8x512xf32>, vector<8x512xf32>, vector<8x512xf32>, vector<8x512xf32>, vector<8x512xf32>, vector<8x512xf32>, vector<8x512xf32>, vector<8x512xf32> -> vector<72x512xf32>
    %51 = arith.truncf %50 : vector<72x512xf32> to vector<72x512xbf16>
    %cst = arith.constant dense<0.000000e+00> : vector<8x512xf32>
    %52 = tpu.matmul %19, %51, %cst {dimension_numbers = #tpu.dot_dimension_numbers<[1], [0], [0], [1], [0, 0, 1, 1], [], []>} : vector<8x72xbf16>, vector<72x512xbf16>, vector<8x512xf32> -> vector<8x512xf32>
    %53 = vector.broadcast %21 : vector<8x1xf32> to vector<8x512xf32>
    %54 = arith.addf %52, %53 : vector<8x512xf32>
    %cst_40 = arith.constant 0.000000e+00 : f32
    %55 = vector.broadcast %cst_40 : f32 to vector<8x512xf32>
    %56 = arith.maximumf %54, %55 : vector<8x512xf32>
    %c17_i32_41 = arith.constant 17 : i32
    %57 = tpu.dynamic_rotate %56 by %c17_i32_41 dim 1 : vector<8x512xf32>, i32 -> vector<8x512xf32>
    %58 = vector.broadcast %2 : vector<1x512xf32> to vector<8x512xf32>
    %59 = arith.mulf %57, %58 : vector<8x512xf32>
    %c16_i32_42 = arith.constant 16 : i32
    %60 = tpu.dynamic_rotate %56 by %c16_i32_42 dim 1 : vector<8x512xf32>, i32 -> vector<8x512xf32>
    %61 = vector.broadcast %3 : vector<1x512xf32> to vector<8x512xf32>
    %62 = arith.mulf %60, %61 : vector<8x512xf32>
    %c15_i32_43 = arith.constant 15 : i32
    %63 = tpu.dynamic_rotate %56 by %c15_i32_43 dim 1 : vector<8x512xf32>, i32 -> vector<8x512xf32>
    %64 = vector.broadcast %4 : vector<1x512xf32> to vector<8x512xf32>
    %65 = arith.mulf %63, %64 : vector<8x512xf32>
    %c1_i32_44 = arith.constant 1 : i32
    %66 = tpu.dynamic_rotate %56 by %c1_i32_44 dim 1 : vector<8x512xf32>, i32 -> vector<8x512xf32>
    %67 = vector.broadcast %5 : vector<1x512xf32> to vector<8x512xf32>
    %68 = arith.mulf %66, %67 : vector<8x512xf32>
    %c511_i32_45 = arith.constant 511 : i32
    %69 = tpu.dynamic_rotate %56 by %c511_i32_45 dim 1 : vector<8x512xf32>, i32 -> vector<8x512xf32>
    %70 = vector.broadcast %6 : vector<1x512xf32> to vector<8x512xf32>
    %71 = arith.mulf %69, %70 : vector<8x512xf32>
    %c497_i32_46 = arith.constant 497 : i32
    %72 = tpu.dynamic_rotate %56 by %c497_i32_46 dim 1 : vector<8x512xf32>, i32 -> vector<8x512xf32>
    %73 = vector.broadcast %7 : vector<1x512xf32> to vector<8x512xf32>
    %74 = arith.mulf %72, %73 : vector<8x512xf32>
    %c496_i32_47 = arith.constant 496 : i32
    %75 = tpu.dynamic_rotate %56 by %c496_i32_47 dim 1 : vector<8x512xf32>, i32 -> vector<8x512xf32>
    %76 = vector.broadcast %8 : vector<1x512xf32> to vector<8x512xf32>
    %77 = arith.mulf %75, %76 : vector<8x512xf32>
    %c495_i32_48 = arith.constant 495 : i32
    %78 = tpu.dynamic_rotate %56 by %c495_i32_48 dim 1 : vector<8x512xf32>, i32 -> vector<8x512xf32>
    %79 = vector.broadcast %9 : vector<1x512xf32> to vector<8x512xf32>
    %80 = arith.mulf %78, %79 : vector<8x512xf32>
    %81 = tpu.concatenate %59, %62, %65, %68, %56, %71, %74, %77, %80 in 0 : vector<8x512xf32>, vector<8x512xf32>, vector<8x512xf32>, vector<8x512xf32>, vector<8x512xf32>, vector<8x512xf32>, vector<8x512xf32>, vector<8x512xf32>, vector<8x512xf32> -> vector<72x512xf32>
    %82 = arith.truncf %81 : vector<72x512xf32> to vector<72x512xbf16>
    %cst_49 = arith.constant dense<0.000000e+00> : vector<8x512xf32>
    %83 = tpu.matmul %23, %82, %cst_49 {dimension_numbers = #tpu.dot_dimension_numbers<[1], [0], [0], [1], [0, 0, 1, 1], [], []>} : vector<8x72xbf16>, vector<72x512xbf16>, vector<8x512xf32> -> vector<8x512xf32>
    %84 = vector.broadcast %25 : vector<8x1xf32> to vector<8x512xf32>
    %85 = arith.addf %83, %84 : vector<8x512xf32>
    %86 = arith.addf %85, %0 : vector<8x512xf32>
    %cst_50 = arith.constant 0.000000e+00 : f32
    %87 = vector.broadcast %cst_50 : f32 to vector<8x512xf32>
    %88 = arith.maximumf %86, %87 : vector<8x512xf32>
    %c2_51 = arith.constant 2 : index
    %c0_52 = arith.constant 0 : index
    %c0_53 = arith.constant 0 : index
    %89 = vector.load %arg3[%c2_51, %c0_52, %c0_53] : memref<4x8x72xbf16, #tpu.memory_space<vmem>>, vector<1x8x72xbf16>
    %90 = vector.shape_cast %89 : vector<1x8x72xbf16> to vector<8x72xbf16>
    %c2_54 = arith.constant 2 : index
    %c0_55 = arith.constant 0 : index
    %c0_56 = arith.constant 0 : index
    %91 = vector.load %arg4[%c2_54, %c0_55, %c0_56] : memref<4x8x1xf32, #tpu.memory_space<vmem>>, vector<1x8x1xf32>
    %92 = vector.shape_cast %91 : vector<1x8x1xf32> to vector<8x1xf32>
    %c3_57 = arith.constant 3 : index
    %c0_58 = arith.constant 0 : index
    %c0_59 = arith.constant 0 : index
    %93 = vector.load %arg3[%c3_57, %c0_58, %c0_59] : memref<4x8x72xbf16, #tpu.memory_space<vmem>>, vector<1x8x72xbf16>
    %94 = vector.shape_cast %93 : vector<1x8x72xbf16> to vector<8x72xbf16>
    %c3_60 = arith.constant 3 : index
    %c0_61 = arith.constant 0 : index
    %c0_62 = arith.constant 0 : index
    %95 = vector.load %arg4[%c3_60, %c0_61, %c0_62] : memref<4x8x1xf32, #tpu.memory_space<vmem>>, vector<1x8x1xf32>
    %96 = vector.shape_cast %95 : vector<1x8x1xf32> to vector<8x1xf32>
    %c17_i32_63 = arith.constant 17 : i32
    %97 = tpu.dynamic_rotate %88 by %c17_i32_63 dim 1 : vector<8x512xf32>, i32 -> vector<8x512xf32>
    %98 = vector.broadcast %2 : vector<1x512xf32> to vector<8x512xf32>
    %99 = arith.mulf %97, %98 : vector<8x512xf32>
    %c16_i32_64 = arith.constant 16 : i32
    %100 = tpu.dynamic_rotate %88 by %c16_i32_64 dim 1 : vector<8x512xf32>, i32 -> vector<8x512xf32>
    %101 = vector.broadcast %3 : vector<1x512xf32> to vector<8x512xf32>
    %102 = arith.mulf %100, %101 : vector<8x512xf32>
    %c15_i32_65 = arith.constant 15 : i32
    %103 = tpu.dynamic_rotate %88 by %c15_i32_65 dim 1 : vector<8x512xf32>, i32 -> vector<8x512xf32>
    %104 = vector.broadcast %4 : vector<1x512xf32> to vector<8x512xf32>
    %105 = arith.mulf %103, %104 : vector<8x512xf32>
    %c1_i32_66 = arith.constant 1 : i32
    %106 = tpu.dynamic_rotate %88 by %c1_i32_66 dim 1 : vector<8x512xf32>, i32 -> vector<8x512xf32>
    %107 = vector.broadcast %5 : vector<1x512xf32> to vector<8x512xf32>
    %108 = arith.mulf %106, %107 : vector<8x512xf32>
    %c511_i32_67 = arith.constant 511 : i32
    %109 = tpu.dynamic_rotate %88 by %c511_i32_67 dim 1 : vector<8x512xf32>, i32 -> vector<8x512xf32>
    %110 = vector.broadcast %6 : vector<1x512xf32> to vector<8x512xf32>
    %111 = arith.mulf %109, %110 : vector<8x512xf32>
    %c497_i32_68 = arith.constant 497 : i32
    %112 = tpu.dynamic_rotate %88 by %c497_i32_68 dim 1 : vector<8x512xf32>, i32 -> vector<8x512xf32>
    %113 = vector.broadcast %7 : vector<1x512xf32> to vector<8x512xf32>
    %114 = arith.mulf %112, %113 : vector<8x512xf32>
    %c496_i32_69 = arith.constant 496 : i32
    %115 = tpu.dynamic_rotate %88 by %c496_i32_69 dim 1 : vector<8x512xf32>, i32 -> vector<8x512xf32>
    %116 = vector.broadcast %8 : vector<1x512xf32> to vector<8x512xf32>
    %117 = arith.mulf %115, %116 : vector<8x512xf32>
    %c495_i32_70 = arith.constant 495 : i32
    %118 = tpu.dynamic_rotate %88 by %c495_i32_70 dim 1 : vector<8x512xf32>, i32 -> vector<8x512xf32>
    %119 = vector.broadcast %9 : vector<1x512xf32> to vector<8x512xf32>
    %120 = arith.mulf %118, %119 : vector<8x512xf32>
    %121 = tpu.concatenate %99, %102, %105, %108, %88, %111, %114, %117, %120 in 0 : vector<8x512xf32>, vector<8x512xf32>, vector<8x512xf32>, vector<8x512xf32>, vector<8x512xf32>, vector<8x512xf32>, vector<8x512xf32>, vector<8x512xf32>, vector<8x512xf32> -> vector<72x512xf32>
    %122 = arith.truncf %121 : vector<72x512xf32> to vector<72x512xbf16>
    %cst_71 = arith.constant dense<0.000000e+00> : vector<8x512xf32>
    %123 = tpu.matmul %90, %122, %cst_71 {dimension_numbers = #tpu.dot_dimension_numbers<[1], [0], [0], [1], [0, 0, 1, 1], [], []>} : vector<8x72xbf16>, vector<72x512xbf16>, vector<8x512xf32> -> vector<8x512xf32>
    %124 = vector.broadcast %92 : vector<8x1xf32> to vector<8x512xf32>
    %125 = arith.addf %123, %124 : vector<8x512xf32>
    %cst_72 = arith.constant 0.000000e+00 : f32
    %126 = vector.broadcast %cst_72 : f32 to vector<8x512xf32>
    %127 = arith.maximumf %125, %126 : vector<8x512xf32>
    %c17_i32_73 = arith.constant 17 : i32
    %128 = tpu.dynamic_rotate %127 by %c17_i32_73 dim 1 : vector<8x512xf32>, i32 -> vector<8x512xf32>
    %129 = vector.broadcast %2 : vector<1x512xf32> to vector<8x512xf32>
    %130 = arith.mulf %128, %129 : vector<8x512xf32>
    %c16_i32_74 = arith.constant 16 : i32
    %131 = tpu.dynamic_rotate %127 by %c16_i32_74 dim 1 : vector<8x512xf32>, i32 -> vector<8x512xf32>
    %132 = vector.broadcast %3 : vector<1x512xf32> to vector<8x512xf32>
    %133 = arith.mulf %131, %132 : vector<8x512xf32>
    %c15_i32_75 = arith.constant 15 : i32
    %134 = tpu.dynamic_rotate %127 by %c15_i32_75 dim 1 : vector<8x512xf32>, i32 -> vector<8x512xf32>
    %135 = vector.broadcast %4 : vector<1x512xf32> to vector<8x512xf32>
    %136 = arith.mulf %134, %135 : vector<8x512xf32>
    %c1_i32_76 = arith.constant 1 : i32
    %137 = tpu.dynamic_rotate %127 by %c1_i32_76 dim 1 : vector<8x512xf32>, i32 -> vector<8x512xf32>
    %138 = vector.broadcast %5 : vector<1x512xf32> to vector<8x512xf32>
    %139 = arith.mulf %137, %138 : vector<8x512xf32>
    %c511_i32_77 = arith.constant 511 : i32
    %140 = tpu.dynamic_rotate %127 by %c511_i32_77 dim 1 : vector<8x512xf32>, i32 -> vector<8x512xf32>
    %141 = vector.broadcast %6 : vector<1x512xf32> to vector<8x512xf32>
    %142 = arith.mulf %140, %141 : vector<8x512xf32>
    %c497_i32_78 = arith.constant 497 : i32
    %143 = tpu.dynamic_rotate %127 by %c497_i32_78 dim 1 : vector<8x512xf32>, i32 -> vector<8x512xf32>
    %144 = vector.broadcast %7 : vector<1x512xf32> to vector<8x512xf32>
    %145 = arith.mulf %143, %144 : vector<8x512xf32>
    %c496_i32_79 = arith.constant 496 : i32
    %146 = tpu.dynamic_rotate %127 by %c496_i32_79 dim 1 : vector<8x512xf32>, i32 -> vector<8x512xf32>
    %147 = vector.broadcast %8 : vector<1x512xf32> to vector<8x512xf32>
    %148 = arith.mulf %146, %147 : vector<8x512xf32>
    %c495_i32_80 = arith.constant 495 : i32
    %149 = tpu.dynamic_rotate %127 by %c495_i32_80 dim 1 : vector<8x512xf32>, i32 -> vector<8x512xf32>
    %150 = vector.broadcast %9 : vector<1x512xf32> to vector<8x512xf32>
    %151 = arith.mulf %149, %150 : vector<8x512xf32>
    %152 = tpu.concatenate %130, %133, %136, %139, %127, %142, %145, %148, %151 in 0 : vector<8x512xf32>, vector<8x512xf32>, vector<8x512xf32>, vector<8x512xf32>, vector<8x512xf32>, vector<8x512xf32>, vector<8x512xf32>, vector<8x512xf32>, vector<8x512xf32> -> vector<72x512xf32>
    %153 = arith.truncf %152 : vector<72x512xf32> to vector<72x512xbf16>
    %cst_81 = arith.constant dense<0.000000e+00> : vector<8x512xf32>
    %154 = tpu.matmul %94, %153, %cst_81 {dimension_numbers = #tpu.dot_dimension_numbers<[1], [0], [0], [1], [0, 0, 1, 1], [], []>} : vector<8x72xbf16>, vector<72x512xbf16>, vector<8x512xf32> -> vector<8x512xf32>
    %155 = vector.broadcast %96 : vector<8x1xf32> to vector<8x512xf32>
    %156 = arith.addf %154, %155 : vector<8x512xf32>
    %157 = arith.addf %156, %88 : vector<8x512xf32>
    %cst_82 = arith.constant 0.000000e+00 : f32
    %158 = vector.broadcast %cst_82 : f32 to vector<8x512xf32>
    %159 = arith.maximumf %157, %158 : vector<8x512xf32>
    %c0_83 = arith.constant 0 : index
    %c0_84 = arith.constant 0 : index
    %c0_85 = arith.constant 0 : index
    %160 = vector.load %arg5[%c0_83, %c0_84, %c0_85] : memref<4x8x72xbf16, #tpu.memory_space<vmem>>, vector<1x8x72xbf16>
    %161 = vector.shape_cast %160 : vector<1x8x72xbf16> to vector<8x72xbf16>
    %c0_86 = arith.constant 0 : index
    %c0_87 = arith.constant 0 : index
    %c0_88 = arith.constant 0 : index
    %162 = vector.load %arg6[%c0_86, %c0_87, %c0_88] : memref<4x8x1xf32, #tpu.memory_space<vmem>>, vector<1x8x1xf32>
    %163 = vector.shape_cast %162 : vector<1x8x1xf32> to vector<8x1xf32>
    %c1_89 = arith.constant 1 : index
    %c0_90 = arith.constant 0 : index
    %c0_91 = arith.constant 0 : index
    %164 = vector.load %arg5[%c1_89, %c0_90, %c0_91] : memref<4x8x72xbf16, #tpu.memory_space<vmem>>, vector<1x8x72xbf16>
    %165 = vector.shape_cast %164 : vector<1x8x72xbf16> to vector<8x72xbf16>
    %c1_92 = arith.constant 1 : index
    %c0_93 = arith.constant 0 : index
    %c0_94 = arith.constant 0 : index
    %166 = vector.load %arg6[%c1_92, %c0_93, %c0_94] : memref<4x8x1xf32, #tpu.memory_space<vmem>>, vector<1x8x1xf32>
    %167 = vector.shape_cast %166 : vector<1x8x1xf32> to vector<8x1xf32>
    %c9_i32 = arith.constant 9 : i32
    %168 = tpu.dynamic_rotate %1 by %c9_i32 dim 1 : vector<8x128xf32>, i32 -> vector<8x128xf32>
    %169 = vector.broadcast %10 : vector<1x128xf32> to vector<8x128xf32>
    %170 = arith.mulf %168, %169 : vector<8x128xf32>
    %c8_i32 = arith.constant 8 : i32
    %171 = tpu.dynamic_rotate %1 by %c8_i32 dim 1 : vector<8x128xf32>, i32 -> vector<8x128xf32>
    %172 = vector.broadcast %11 : vector<1x128xf32> to vector<8x128xf32>
    %173 = arith.mulf %171, %172 : vector<8x128xf32>
    %c7_i32 = arith.constant 7 : i32
    %174 = tpu.dynamic_rotate %1 by %c7_i32 dim 1 : vector<8x128xf32>, i32 -> vector<8x128xf32>
    %175 = vector.broadcast %12 : vector<1x128xf32> to vector<8x128xf32>
    %176 = arith.mulf %174, %175 : vector<8x128xf32>
    %c1_i32_95 = arith.constant 1 : i32
    %177 = tpu.dynamic_rotate %1 by %c1_i32_95 dim 1 : vector<8x128xf32>, i32 -> vector<8x128xf32>
    %178 = vector.broadcast %13 : vector<1x128xf32> to vector<8x128xf32>
    %179 = arith.mulf %177, %178 : vector<8x128xf32>
    %c127_i32 = arith.constant 127 : i32
    %180 = tpu.dynamic_rotate %1 by %c127_i32 dim 1 : vector<8x128xf32>, i32 -> vector<8x128xf32>
    %181 = vector.broadcast %14 : vector<1x128xf32> to vector<8x128xf32>
    %182 = arith.mulf %180, %181 : vector<8x128xf32>
    %c121_i32 = arith.constant 121 : i32
    %183 = tpu.dynamic_rotate %1 by %c121_i32 dim 1 : vector<8x128xf32>, i32 -> vector<8x128xf32>
    %184 = vector.broadcast %15 : vector<1x128xf32> to vector<8x128xf32>
    %185 = arith.mulf %183, %184 : vector<8x128xf32>
    %c120_i32 = arith.constant 120 : i32
    %186 = tpu.dynamic_rotate %1 by %c120_i32 dim 1 : vector<8x128xf32>, i32 -> vector<8x128xf32>
    %187 = vector.broadcast %16 : vector<1x128xf32> to vector<8x128xf32>
    %188 = arith.mulf %186, %187 : vector<8x128xf32>
    %c119_i32 = arith.constant 119 : i32
    %189 = tpu.dynamic_rotate %1 by %c119_i32 dim 1 : vector<8x128xf32>, i32 -> vector<8x128xf32>
    %190 = vector.broadcast %17 : vector<1x128xf32> to vector<8x128xf32>
    %191 = arith.mulf %189, %190 : vector<8x128xf32>
    %192 = tpu.concatenate %170, %173, %176, %179, %1, %182, %185, %188, %191 in 0 : vector<8x128xf32>, vector<8x128xf32>, vector<8x128xf32>, vector<8x128xf32>, vector<8x128xf32>, vector<8x128xf32>, vector<8x128xf32>, vector<8x128xf32>, vector<8x128xf32> -> vector<72x128xf32>
    %193 = arith.truncf %192 : vector<72x128xf32> to vector<72x128xbf16>
    %cst_96 = arith.constant dense<0.000000e+00> : vector<8x128xf32>
    %194 = tpu.matmul %161, %193, %cst_96 {dimension_numbers = #tpu.dot_dimension_numbers<[1], [0], [0], [1], [0, 0, 1, 1], [], []>} : vector<8x72xbf16>, vector<72x128xbf16>, vector<8x128xf32> -> vector<8x128xf32>
    %195 = vector.broadcast %163 : vector<8x1xf32> to vector<8x128xf32>
    %196 = arith.addf %194, %195 : vector<8x128xf32>
    %cst_97 = arith.constant 0.000000e+00 : f32
    %197 = vector.broadcast %cst_97 : f32 to vector<8x128xf32>
    %198 = arith.maximumf %196, %197 : vector<8x128xf32>
    %c9_i32_98 = arith.constant 9 : i32
    %199 = tpu.dynamic_rotate %198 by %c9_i32_98 dim 1 : vector<8x128xf32>, i32 -> vector<8x128xf32>
    %200 = vector.broadcast %10 : vector<1x128xf32> to vector<8x128xf32>
    %201 = arith.mulf %199, %200 : vector<8x128xf32>
    %c8_i32_99 = arith.constant 8 : i32
    %202 = tpu.dynamic_rotate %198 by %c8_i32_99 dim 1 : vector<8x128xf32>, i32 -> vector<8x128xf32>
    %203 = vector.broadcast %11 : vector<1x128xf32> to vector<8x128xf32>
    %204 = arith.mulf %202, %203 : vector<8x128xf32>
    %c7_i32_100 = arith.constant 7 : i32
    %205 = tpu.dynamic_rotate %198 by %c7_i32_100 dim 1 : vector<8x128xf32>, i32 -> vector<8x128xf32>
    %206 = vector.broadcast %12 : vector<1x128xf32> to vector<8x128xf32>
    %207 = arith.mulf %205, %206 : vector<8x128xf32>
    %c1_i32_101 = arith.constant 1 : i32
    %208 = tpu.dynamic_rotate %198 by %c1_i32_101 dim 1 : vector<8x128xf32>, i32 -> vector<8x128xf32>
    %209 = vector.broadcast %13 : vector<1x128xf32> to vector<8x128xf32>
    %210 = arith.mulf %208, %209 : vector<8x128xf32>
    %c127_i32_102 = arith.constant 127 : i32
    %211 = tpu.dynamic_rotate %198 by %c127_i32_102 dim 1 : vector<8x128xf32>, i32 -> vector<8x128xf32>
    %212 = vector.broadcast %14 : vector<1x128xf32> to vector<8x128xf32>
    %213 = arith.mulf %211, %212 : vector<8x128xf32>
    %c121_i32_103 = arith.constant 121 : i32
    %214 = tpu.dynamic_rotate %198 by %c121_i32_103 dim 1 : vector<8x128xf32>, i32 -> vector<8x128xf32>
    %215 = vector.broadcast %15 : vector<1x128xf32> to vector<8x128xf32>
    %216 = arith.mulf %214, %215 : vector<8x128xf32>
    %c120_i32_104 = arith.constant 120 : i32
    %217 = tpu.dynamic_rotate %198 by %c120_i32_104 dim 1 : vector<8x128xf32>, i32 -> vector<8x128xf32>
    %218 = vector.broadcast %16 : vector<1x128xf32> to vector<8x128xf32>
    %219 = arith.mulf %217, %218 : vector<8x128xf32>
    %c119_i32_105 = arith.constant 119 : i32
    %220 = tpu.dynamic_rotate %198 by %c119_i32_105 dim 1 : vector<8x128xf32>, i32 -> vector<8x128xf32>
    %221 = vector.broadcast %17 : vector<1x128xf32> to vector<8x128xf32>
    %222 = arith.mulf %220, %221 : vector<8x128xf32>
    %223 = tpu.concatenate %201, %204, %207, %210, %198, %213, %216, %219, %222 in 0 : vector<8x128xf32>, vector<8x128xf32>, vector<8x128xf32>, vector<8x128xf32>, vector<8x128xf32>, vector<8x128xf32>, vector<8x128xf32>, vector<8x128xf32>, vector<8x128xf32> -> vector<72x128xf32>
    %224 = arith.truncf %223 : vector<72x128xf32> to vector<72x128xbf16>
    %cst_106 = arith.constant dense<0.000000e+00> : vector<8x128xf32>
    %225 = tpu.matmul %165, %224, %cst_106 {dimension_numbers = #tpu.dot_dimension_numbers<[1], [0], [0], [1], [0, 0, 1, 1], [], []>} : vector<8x72xbf16>, vector<72x128xbf16>, vector<8x128xf32> -> vector<8x128xf32>
    %226 = vector.broadcast %167 : vector<8x1xf32> to vector<8x128xf32>
    %227 = arith.addf %225, %226 : vector<8x128xf32>
    %228 = arith.addf %227, %1 : vector<8x128xf32>
    %cst_107 = arith.constant 0.000000e+00 : f32
    %229 = vector.broadcast %cst_107 : f32 to vector<8x128xf32>
    %230 = arith.maximumf %228, %229 : vector<8x128xf32>
    %c2_108 = arith.constant 2 : index
    %c0_109 = arith.constant 0 : index
    %c0_110 = arith.constant 0 : index
    %231 = vector.load %arg5[%c2_108, %c0_109, %c0_110] : memref<4x8x72xbf16, #tpu.memory_space<vmem>>, vector<1x8x72xbf16>
    %232 = vector.shape_cast %231 : vector<1x8x72xbf16> to vector<8x72xbf16>
    %c2_111 = arith.constant 2 : index
    %c0_112 = arith.constant 0 : index
    %c0_113 = arith.constant 0 : index
    %233 = vector.load %arg6[%c2_111, %c0_112, %c0_113] : memref<4x8x1xf32, #tpu.memory_space<vmem>>, vector<1x8x1xf32>
    %234 = vector.shape_cast %233 : vector<1x8x1xf32> to vector<8x1xf32>
    %c3_114 = arith.constant 3 : index
    %c0_115 = arith.constant 0 : index
    %c0_116 = arith.constant 0 : index
    %235 = vector.load %arg5[%c3_114, %c0_115, %c0_116] : memref<4x8x72xbf16, #tpu.memory_space<vmem>>, vector<1x8x72xbf16>
    %236 = vector.shape_cast %235 : vector<1x8x72xbf16> to vector<8x72xbf16>
    %c3_117 = arith.constant 3 : index
    %c0_118 = arith.constant 0 : index
    %c0_119 = arith.constant 0 : index
    %237 = vector.load %arg6[%c3_117, %c0_118, %c0_119] : memref<4x8x1xf32, #tpu.memory_space<vmem>>, vector<1x8x1xf32>
    %238 = vector.shape_cast %237 : vector<1x8x1xf32> to vector<8x1xf32>
    %c9_i32_120 = arith.constant 9 : i32
    %239 = tpu.dynamic_rotate %230 by %c9_i32_120 dim 1 : vector<8x128xf32>, i32 -> vector<8x128xf32>
    %240 = vector.broadcast %10 : vector<1x128xf32> to vector<8x128xf32>
    %241 = arith.mulf %239, %240 : vector<8x128xf32>
    %c8_i32_121 = arith.constant 8 : i32
    %242 = tpu.dynamic_rotate %230 by %c8_i32_121 dim 1 : vector<8x128xf32>, i32 -> vector<8x128xf32>
    %243 = vector.broadcast %11 : vector<1x128xf32> to vector<8x128xf32>
    %244 = arith.mulf %242, %243 : vector<8x128xf32>
    %c7_i32_122 = arith.constant 7 : i32
    %245 = tpu.dynamic_rotate %230 by %c7_i32_122 dim 1 : vector<8x128xf32>, i32 -> vector<8x128xf32>
    %246 = vector.broadcast %12 : vector<1x128xf32> to vector<8x128xf32>
    %247 = arith.mulf %245, %246 : vector<8x128xf32>
    %c1_i32_123 = arith.constant 1 : i32
    %248 = tpu.dynamic_rotate %230 by %c1_i32_123 dim 1 : vector<8x128xf32>, i32 -> vector<8x128xf32>
    %249 = vector.broadcast %13 : vector<1x128xf32> to vector<8x128xf32>
    %250 = arith.mulf %248, %249 : vector<8x128xf32>
    %c127_i32_124 = arith.constant 127 : i32
    %251 = tpu.dynamic_rotate %230 by %c127_i32_124 dim 1 : vector<8x128xf32>, i32 -> vector<8x128xf32>
    %252 = vector.broadcast %14 : vector<1x128xf32> to vector<8x128xf32>
    %253 = arith.mulf %251, %252 : vector<8x128xf32>
    %c121_i32_125 = arith.constant 121 : i32
    %254 = tpu.dynamic_rotate %230 by %c121_i32_125 dim 1 : vector<8x128xf32>, i32 -> vector<8x128xf32>
    %255 = vector.broadcast %15 : vector<1x128xf32> to vector<8x128xf32>
    %256 = arith.mulf %254, %255 : vector<8x128xf32>
    %c120_i32_126 = arith.constant 120 : i32
    %257 = tpu.dynamic_rotate %230 by %c120_i32_126 dim 1 : vector<8x128xf32>, i32 -> vector<8x128xf32>
    %258 = vector.broadcast %16 : vector<1x128xf32> to vector<8x128xf32>
    %259 = arith.mulf %257, %258 : vector<8x128xf32>
    %c119_i32_127 = arith.constant 119 : i32
    %260 = tpu.dynamic_rotate %230 by %c119_i32_127 dim 1 : vector<8x128xf32>, i32 -> vector<8x128xf32>
    %261 = vector.broadcast %17 : vector<1x128xf32> to vector<8x128xf32>
    %262 = arith.mulf %260, %261 : vector<8x128xf32>
    %263 = tpu.concatenate %241, %244, %247, %250, %230, %253, %256, %259, %262 in 0 : vector<8x128xf32>, vector<8x128xf32>, vector<8x128xf32>, vector<8x128xf32>, vector<8x128xf32>, vector<8x128xf32>, vector<8x128xf32>, vector<8x128xf32>, vector<8x128xf32> -> vector<72x128xf32>
    %264 = arith.truncf %263 : vector<72x128xf32> to vector<72x128xbf16>
    %cst_128 = arith.constant dense<0.000000e+00> : vector<8x128xf32>
    %265 = tpu.matmul %232, %264, %cst_128 {dimension_numbers = #tpu.dot_dimension_numbers<[1], [0], [0], [1], [0, 0, 1, 1], [], []>} : vector<8x72xbf16>, vector<72x128xbf16>, vector<8x128xf32> -> vector<8x128xf32>
    %266 = vector.broadcast %234 : vector<8x1xf32> to vector<8x128xf32>
    %267 = arith.addf %265, %266 : vector<8x128xf32>
    %cst_129 = arith.constant 0.000000e+00 : f32
    %268 = vector.broadcast %cst_129 : f32 to vector<8x128xf32>
    %269 = arith.maximumf %267, %268 : vector<8x128xf32>
    %c9_i32_130 = arith.constant 9 : i32
    %270 = tpu.dynamic_rotate %269 by %c9_i32_130 dim 1 : vector<8x128xf32>, i32 -> vector<8x128xf32>
    %271 = vector.broadcast %10 : vector<1x128xf32> to vector<8x128xf32>
    %272 = arith.mulf %270, %271 : vector<8x128xf32>
    %c8_i32_131 = arith.constant 8 : i32
    %273 = tpu.dynamic_rotate %269 by %c8_i32_131 dim 1 : vector<8x128xf32>, i32 -> vector<8x128xf32>
    %274 = vector.broadcast %11 : vector<1x128xf32> to vector<8x128xf32>
    %275 = arith.mulf %273, %274 : vector<8x128xf32>
    %c7_i32_132 = arith.constant 7 : i32
    %276 = tpu.dynamic_rotate %269 by %c7_i32_132 dim 1 : vector<8x128xf32>, i32 -> vector<8x128xf32>
    %277 = vector.broadcast %12 : vector<1x128xf32> to vector<8x128xf32>
    %278 = arith.mulf %276, %277 : vector<8x128xf32>
    %c1_i32_133 = arith.constant 1 : i32
    %279 = tpu.dynamic_rotate %269 by %c1_i32_133 dim 1 : vector<8x128xf32>, i32 -> vector<8x128xf32>
    %280 = vector.broadcast %13 : vector<1x128xf32> to vector<8x128xf32>
    %281 = arith.mulf %279, %280 : vector<8x128xf32>
    %c127_i32_134 = arith.constant 127 : i32
    %282 = tpu.dynamic_rotate %269 by %c127_i32_134 dim 1 : vector<8x128xf32>, i32 -> vector<8x128xf32>
    %283 = vector.broadcast %14 : vector<1x128xf32> to vector<8x128xf32>
    %284 = arith.mulf %282, %283 : vector<8x128xf32>
    %c121_i32_135 = arith.constant 121 : i32
    %285 = tpu.dynamic_rotate %269 by %c121_i32_135 dim 1 : vector<8x128xf32>, i32 -> vector<8x128xf32>
    %286 = vector.broadcast %15 : vector<1x128xf32> to vector<8x128xf32>
    %287 = arith.mulf %285, %286 : vector<8x128xf32>
    %c120_i32_136 = arith.constant 120 : i32
    %288 = tpu.dynamic_rotate %269 by %c120_i32_136 dim 1 : vector<8x128xf32>, i32 -> vector<8x128xf32>
    %289 = vector.broadcast %16 : vector<1x128xf32> to vector<8x128xf32>
    %290 = arith.mulf %288, %289 : vector<8x128xf32>
    %c119_i32_137 = arith.constant 119 : i32
    %291 = tpu.dynamic_rotate %269 by %c119_i32_137 dim 1 : vector<8x128xf32>, i32 -> vector<8x128xf32>
    %292 = vector.broadcast %17 : vector<1x128xf32> to vector<8x128xf32>
    %293 = arith.mulf %291, %292 : vector<8x128xf32>
    %294 = tpu.concatenate %272, %275, %278, %281, %269, %284, %287, %290, %293 in 0 : vector<8x128xf32>, vector<8x128xf32>, vector<8x128xf32>, vector<8x128xf32>, vector<8x128xf32>, vector<8x128xf32>, vector<8x128xf32>, vector<8x128xf32>, vector<8x128xf32> -> vector<72x128xf32>
    %295 = arith.truncf %294 : vector<72x128xf32> to vector<72x128xbf16>
    %cst_138 = arith.constant dense<0.000000e+00> : vector<8x128xf32>
    %296 = tpu.matmul %236, %295, %cst_138 {dimension_numbers = #tpu.dot_dimension_numbers<[1], [0], [0], [1], [0, 0, 1, 1], [], []>} : vector<8x72xbf16>, vector<72x128xbf16>, vector<8x128xf32> -> vector<8x128xf32>
    %297 = vector.broadcast %238 : vector<8x1xf32> to vector<8x128xf32>
    %298 = arith.addf %296, %297 : vector<8x128xf32>
    %299 = arith.addf %298, %230 : vector<8x128xf32>
    %cst_139 = arith.constant 0.000000e+00 : f32
    %300 = vector.broadcast %cst_139 : f32 to vector<8x128xf32>
    %301 = arith.maximumf %299, %300 : vector<8x128xf32>
    %c0_140 = arith.constant 0 : index
    %c0_141 = arith.constant 0 : index
    %302 = vector.load %arg7[%c0_140, %c0_141] : memref<8x8xbf16, #tpu.memory_space<vmem>>, vector<8x8xbf16>
    %303 = arith.truncf %301 : vector<8x128xf32> to vector<8x128xbf16>
    %cst_142 = arith.constant dense<0.000000e+00> : vector<8x128xf32>
    %304 = tpu.matmul %302, %303, %cst_142 {dimension_numbers = #tpu.dot_dimension_numbers<[1], [0], [0], [1], [0, 0, 1, 1], [], []>} : vector<8x8xbf16>, vector<8x128xbf16>, vector<8x128xf32> -> vector<8x128xf32>
    %c0_143 = arith.constant 0 : index
    %c0_144 = arith.constant 0 : index
    %305 = vector.load %arg8[%c0_143, %c0_144] : memref<8x1xf32, #tpu.memory_space<vmem>>, vector<8x1xf32>
    %306 = vector.broadcast %305 : vector<8x1xf32> to vector<8x128xf32>
    %307 = arith.addf %304, %306 : vector<8x128xf32>
    %308 = arith.truncf %307 : vector<8x128xf32> to vector<8x128xbf16>
    %c0_145 = arith.constant 0 : index
    %c0_146 = arith.constant 0 : index
    %309 = vector.load %arg11[%c0_145, %c0_146] : memref<128x512xbf16, #tpu.memory_space<vmem>>, vector<128x512xbf16>
    %cst_147 = arith.constant dense<0.000000e+00> : vector<8x512xf32>
    %310 = tpu.matmul %308, %309, %cst_147 {dimension_numbers = #tpu.dot_dimension_numbers<[1], [0], [0], [1], [0, 0, 1, 1], [], []>} : vector<8x128xbf16>, vector<128x512xbf16>, vector<8x512xf32> -> vector<8x512xf32>
    %311 = arith.addf %159, %310 : vector<8x512xf32>
    %cst_148 = arith.constant 0.000000e+00 : f32
    %312 = vector.broadcast %cst_148 : f32 to vector<8x512xf32>
    %313 = arith.maximumf %311, %312 : vector<8x512xf32>
    %c0_149 = arith.constant 0 : index
    %c0_150 = arith.constant 0 : index
    %314 = vector.load %arg15[%c0_149, %c0_150] : memref<8x512xf32, #tpu.memory_space<vmem>>, vector<8x512xf32>
    tpu.vector_store %arg15[%c0_149, %c0_150], %313 {strides = array<i32>} : memref<8x512xf32, #tpu.memory_space<vmem>>, vector<8x512xf32>,
    %c0_151 = arith.constant 0 : index
    %c0_152 = arith.constant 0 : index
    %315 = vector.load %arg9[%c0_151, %c0_152] : memref<8x72xbf16, #tpu.memory_space<vmem>>, vector<8x72xbf16>
    %c0_153 = arith.constant 0 : index
    %c0_154 = arith.constant 0 : index
    %316 = vector.load %arg10[%c0_153, %c0_154] : memref<8x1xf32, #tpu.memory_space<vmem>>, vector<8x1xf32>
    %c17_i32_155 = arith.constant 17 : i32
    %317 = tpu.dynamic_rotate %159 by %c17_i32_155 dim 1 : vector<8x512xf32>, i32 -> vector<8x512xf32>
    %318 = vector.broadcast %2 : vector<1x512xf32> to vector<8x512xf32>
    %319 = arith.mulf %317, %318 : vector<8x512xf32>
    %c16_i32_156 = arith.constant 16 : i32
    %320 = tpu.dynamic_rotate %159 by %c16_i32_156 dim 1 : vector<8x512xf32>, i32 -> vector<8x512xf32>
    %321 = vector.broadcast %3 : vector<1x512xf32> to vector<8x512xf32>
    %322 = arith.mulf %320, %321 : vector<8x512xf32>
    %c15_i32_157 = arith.constant 15 : i32
    %323 = tpu.dynamic_rotate %159 by %c15_i32_157 dim 1 : vector<8x512xf32>, i32 -> vector<8x512xf32>
    %324 = vector.broadcast %4 : vector<1x512xf32> to vector<8x512xf32>
    %325 = arith.mulf %323, %324 : vector<8x512xf32>
    %c1_i32_158 = arith.constant 1 : i32
    %326 = tpu.dynamic_rotate %159 by %c1_i32_158 dim 1 : vector<8x512xf32>, i32 -> vector<8x512xf32>
    %327 = vector.broadcast %5 : vector<1x512xf32> to vector<8x512xf32>
    %328 = arith.mulf %326, %327 : vector<8x512xf32>
    %c511_i32_159 = arith.constant 511 : i32
    %329 = tpu.dynamic_rotate %159 by %c511_i32_159 dim 1 : vector<8x512xf32>, i32 -> vector<8x512xf32>
    %330 = vector.broadcast %6 : vector<1x512xf32> to vector<8x512xf32>
    %331 = arith.mulf %329, %330 : vector<8x512xf32>
    %c497_i32_160 = arith.constant 497 : i32
    %332 = tpu.dynamic_rotate %159 by %c497_i32_160 dim 1 : vector<8x512xf32>, i32 -> vector<8x512xf32>
    %333 = vector.broadcast %7 : vector<1x512xf32> to vector<8x512xf32>
    %334 = arith.mulf %332, %333 : vector<8x512xf32>
    %c496_i32_161 = arith.constant 496 : i32
    %335 = tpu.dynamic_rotate %159 by %c496_i32_161 dim 1 : vector<8x512xf32>, i32 -> vector<8x512xf32>
    %336 = vector.broadcast %8 : vector<1x512xf32> to vector<8x512xf32>
    %337 = arith.mulf %335, %336 : vector<8x512xf32>
    %c495_i32_162 = arith.constant 495 : i32
    %338 = tpu.dynamic_rotate %159 by %c495_i32_162 dim 1 : vector<8x512xf32>, i32 -> vector<8x512xf32>
    %339 = vector.broadcast %9 : vector<1x512xf32> to vector<8x512xf32>
    %340 = arith.mulf %338, %339 : vector<8x512xf32>
    %341 = tpu.concatenate %319, %322, %325, %328, %159, %331, %334, %337, %340 in 0 : vector<8x512xf32>, vector<8x512xf32>, vector<8x512xf32>, vector<8x512xf32>, vector<8x512xf32>, vector<8x512xf32>, vector<8x512xf32>, vector<8x512xf32>, vector<8x512xf32> -> vector<72x512xf32>
    %342 = arith.truncf %341 : vector<72x512xf32> to vector<72x512xbf16>
    %cst_163 = arith.constant dense<0.000000e+00> : vector<8x512xf32>
    %343 = tpu.matmul %315, %342, %cst_163 {dimension_numbers = #tpu.dot_dimension_numbers<[1], [0], [0], [1], [0, 0, 1, 1], [], []>} : vector<8x72xbf16>, vector<72x512xbf16>, vector<8x512xf32> -> vector<8x512xf32>
    %344 = vector.broadcast %316 : vector<8x1xf32> to vector<8x512xf32>
    %345 = arith.addf %343, %344 : vector<8x512xf32>
    %346 = arith.truncf %345 : vector<8x512xf32> to vector<8x512xbf16>
    %c0_164 = arith.constant 0 : index
    %c0_165 = arith.constant 0 : index
    %347 = vector.load %arg12[%c0_164, %c0_165] : memref<512x128xbf16, #tpu.memory_space<vmem>>, vector<512x128xbf16>
    %cst_166 = arith.constant dense<0.000000e+00> : vector<8x128xf32>
    %348 = tpu.matmul %346, %347, %cst_166 {dimension_numbers = #tpu.dot_dimension_numbers<[1], [0], [0], [1], [0, 0, 1, 1], [], []>} : vector<8x512xbf16>, vector<512x128xbf16>, vector<8x128xf32> -> vector<8x128xf32>
    %349 = arith.addf %348, %301 : vector<8x128xf32>
    %cst_167 = arith.constant 0.000000e+00 : f32
    %350 = vector.broadcast %cst_167 : f32 to vector<8x128xf32>
    %351 = arith.maximumf %349, %350 : vector<8x128xf32>
    %c0_168 = arith.constant 0 : index
    %c0_169 = arith.constant 0 : index
    %352 = vector.load %arg16[%c0_168, %c0_169] : memref<8x128xf32, #tpu.memory_space<vmem>>, vector<8x128xf32>
    tpu.vector_store %arg16[%c0_168, %c0_169], %351 {strides = array<i32>} : memref<8x128xf32, #tpu.memory_space<vmem>>, vector<8x128xf32>,
    return
  }
  func.func @transform_0(%arg0: i32) -> (i32, i32) {
    %c0_i32 = arith.constant 0 : i32
    %c0_i32_0 = arith.constant 0 : i32
    return %c0_i32, %arg0 : i32, i32
  }
  func.func @transform_1(%arg0: i32) -> (i32, i32) {
    %c0_i32 = arith.constant 0 : i32
    %c0_i32_0 = arith.constant 0 : i32
    return %c0_i32, %arg0 : i32, i32
  }
  func.func @transform_2(%arg0: i32) -> (i32, i32, i32) {
    %c0_i32 = arith.constant 0 : i32
    %c0_i32_0 = arith.constant 0 : i32
    %c0_i32_1 = arith.constant 0 : i32
    %c0_i32_2 = arith.constant 0 : i32
    return %c0_i32, %c0_i32_0, %c0_i32_1 : i32, i32, i32
  }
  func.func @transform_3(%arg0: i32) -> (i32, i32, i32) {
    %c0_i32 = arith.constant 0 : i32
    %c0_i32_0 = arith.constant 0 : i32
    %c0_i32_1 = arith.constant 0 : i32
    %c0_i32_2 = arith.constant 0 : i32
    return %c0_i32, %c0_i32_0, %c0_i32_1 : i32, i32, i32
  }
  func.func @transform_4(%arg0: i32) -> (i32, i32, i32) {
    %c0_i32 = arith.constant 0 : i32
    %c0_i32_0 = arith.constant 0 : i32
    %c0_i32_1 = arith.constant 0 : i32
    %c0_i32_2 = arith.constant 0 : i32
    return %c0_i32, %c0_i32_0, %c0_i32_1 : i32, i32, i32
  }
  func.func @transform_5(%arg0: i32) -> (i32, i32, i32) {
    %c0_i32 = arith.constant 0 : i32
    %c0_i32_0 = arith.constant 0 : i32
    %c0_i32_1 = arith.constant 0 : i32
    %c0_i32_2 = arith.constant 0 : i32
    return %c0_i32, %c0_i32_0, %c0_i32_1 : i32, i32, i32
  }
  func.func @transform_6(%arg0: i32) -> (i32, i32) {
    %c0_i32 = arith.constant 0 : i32
    %c0_i32_0 = arith.constant 0 : i32
    %c0_i32_1 = arith.constant 0 : i32
    return %c0_i32, %c0_i32_0 : i32, i32
  }
  func.func @transform_7(%arg0: i32) -> (i32, i32) {
    %c0_i32 = arith.constant 0 : i32
    %c0_i32_0 = arith.constant 0 : i32
    %c0_i32_1 = arith.constant 0 : i32
    return %c0_i32, %c0_i32_0 : i32, i32
  }
  func.func @transform_8(%arg0: i32) -> (i32, i32) {
    %c0_i32 = arith.constant 0 : i32
    %c0_i32_0 = arith.constant 0 : i32
    %c0_i32_1 = arith.constant 0 : i32
    return %c0_i32, %c0_i32_0 : i32, i32
  }
  func.func @transform_9(%arg0: i32) -> (i32, i32) {
    %c0_i32 = arith.constant 0 : i32
    %c0_i32_0 = arith.constant 0 : i32
    %c0_i32_1 = arith.constant 0 : i32
    return %c0_i32, %c0_i32_0 : i32, i32
  }
  func.func @transform_10(%arg0: i32) -> (i32, i32) {
    %c0_i32 = arith.constant 0 : i32
    %c0_i32_0 = arith.constant 0 : i32
    %c0_i32_1 = arith.constant 0 : i32
    return %c0_i32, %c0_i32_0 : i32, i32
  }
  func.func @transform_11(%arg0: i32) -> (i32, i32) {
    %c0_i32 = arith.constant 0 : i32
    %c0_i32_0 = arith.constant 0 : i32
    %c0_i32_1 = arith.constant 0 : i32
    return %c0_i32, %c0_i32_0 : i32, i32
  }
  func.func @transform_12(%arg0: i32) -> (i32, i32) {
    %c0_i32 = arith.constant 0 : i32
    %c0_i32_0 = arith.constant 0 : i32
    %c0_i32_1 = arith.constant 0 : i32
    return %c0_i32, %c0_i32_0 : i32, i32
  }
  func.func @transform_13(%arg0: i32) -> (i32, i32) {
    %c0_i32 = arith.constant 0 : i32
    %c0_i32_0 = arith.constant 0 : i32
    %c0_i32_1 = arith.constant 0 : i32
    return %c0_i32, %c0_i32_0 : i32, i32
  }
  func.func @transform_14(%arg0: i32) -> (i32, i32) {
    %c0_i32 = arith.constant 0 : i32
    %c0_i32_0 = arith.constant 0 : i32
    return %c0_i32, %arg0 : i32, i32
  }
  func.func @transform_15(%arg0: i32) -> (i32, i32) {
    %c0_i32 = arith.constant 0 : i32
    %c0_i32_0 = arith.constant 0 : i32
    return %c0_i32, %arg0 : i32, i32
  }
}

</mosaic_0001>

<llo_original>
// kernel: fmi_forward.1
$region0: #{fmi_forward.1}
  #allocation0 [shape = 'u32[]', space=smem, size = 0x4, offset = 0x4, fixed_abs, tag = 'smem constant byte address 0x4 - core index']
  #allocation1 [shape = 'u32[144,128]{1,0:T(1,128)}', space=vmem, size = 0x12000, scoped, tag = 'internal scratch']
  %s0 = inlined_call_operand.vmem [shape: f32[8,512], index: 0, kind: input, shape index: {}]
  %s1 = inlined_call_operand.vmem [shape: f32[8,128], index: 1, kind: input, shape index: {}]
  %s2 = inlined_call_operand.vmem [shape: bf16[4,8,72], index: 2, kind: input, shape index: {}]
  %s3 = inlined_call_operand.vmem [shape: f32[4,8,1], index: 3, kind: input, shape index: {}]
  %s4 = inlined_call_operand.vmem [shape: bf16[4,8,72], index: 4, kind: input, shape index: {}]
  %s5 = inlined_call_operand.vmem [shape: f32[4,8,1], index: 5, kind: input, shape index: {}]
  %s6 = inlined_call_operand.vmem [shape: bf16[8,8], index: 6, kind: input, shape index: {}]
  %s7 = inlined_call_operand.vmem [shape: f32[8,1], index: 7, kind: input, shape index: {}]
  %s8 = inlined_call_operand.vmem [shape: bf16[8,72], index: 8, kind: input, shape index: {}]
  %s9 = inlined_call_operand.vmem [shape: f32[8,1], index: 9, kind: input, shape index: {}]
  %s10 = inlined_call_operand.vmem [shape: bf16[128,512], index: 10, kind: input, shape index: {}]
  %s11 = inlined_call_operand.vmem [shape: bf16[512,128], index: 11, kind: input, shape index: {}]
  %s12 = inlined_call_operand.vmem [shape: f32[9,512], index: 12, kind: input, shape index: {}]
  %s13 = inlined_call_operand.vmem [shape: f32[9,128], index: 13, kind: input, shape index: {}]
  %s14 = inlined_call_operand.vmem [shape: f32[8,512], index: 14, kind: output, shape index: {0}]
  %s15 = inlined_call_operand.vmem [shape: f32[8,128], index: 15, kind: output, shape index: {1}]
  %16 = xla_tuple %s14, %s15
  %s17 = sld [smem:[#allocation0]]
  $region74: #{fmi_forward.1} parent=0
    _
  %s19 = ssub.s32 1, %s17
  %s20 = scalar_select 0, %s19, %s17
  // Predicated region
  $region2: #{fmi_forward.1} parent=0 // pred_check
    _
  $region3: #{fmi_forward.1} parent=0 // pred_check_branch
    %22 = sbr.rel (0) target = $region5
  $region4: #{fmi_forward.1} parent=0 // pred_region
    _
  $region5: #{fmi_forward.1} parent=0 // pred_fallthru
    _
  // Predicated region
  $region6: #{fmi_forward.1} parent=0 // pred_check
    _
  $region7: #{fmi_forward.1} parent=0 // pred_check_branch
    %24 = sbr.rel (0) target = $region9
  $region8: #{fmi_forward.1} parent=0 // pred_region
    _
  $region9: #{fmi_forward.1} parent=0 // pred_fallthru
    _
  // Predicated region
  $region10: #{fmi_forward.1} parent=0 // pred_check
    _
  $region11: #{fmi_forward.1} parent=0 // pred_check_branch
    %26 = sbr.rel (0) target = $region13
  $region12: #{fmi_forward.1} parent=0 // pred_region
    _
  $region13: #{fmi_forward.1} parent=0 // pred_fallthru
    _
  // Predicated region
  $region14: #{fmi_forward.1} parent=0 // pred_check
    _
  $region15: #{fmi_forward.1} parent=0 // pred_check_branch
    %28 = sbr.rel (0) target = $region17
  $region16: #{fmi_forward.1} parent=0 // pred_region
    _
  $region17: #{fmi_forward.1} parent=0 // pred_fallthru
    _
  // Predicated region
  $region18: #{fmi_forward.1} parent=0 // pred_check
    _
  $region19: #{fmi_forward.1} parent=0 // pred_check_branch
    %30 = sbr.rel (0) target = $region21
  $region20: #{fmi_forward.1} parent=0 // pred_region
    _
  $region21: #{fmi_forward.1} parent=0 // pred_fallthru
    _
  // Predicated region
  $region22: #{fmi_forward.1} parent=0 // pred_check
    _
  $region23: #{fmi_forward.1} parent=0 // pred_check_branch
    %32 = sbr.rel (0) target = $region25
  $region24: #{fmi_forward.1} parent=0 // pred_region
    _
  $region25: #{fmi_forward.1} parent=0 // pred_fallthru
    _
  // Predicated region
  $region26: #{fmi_forward.1} parent=0 // pred_check
    _
  $region27: #{fmi_forward.1} parent=0 // pred_check_branch
    %34 = sbr.rel (0) target = $region29
  $region28: #{fmi_forward.1} parent=0 // pred_region
    _
  $region29: #{fmi_forward.1} parent=0 // pred_fallthru
    _
  // Predicated region
  $region30: #{fmi_forward.1} parent=0 // pred_check
    _
  $region31: #{fmi_forward.1} parent=0 // pred_check_branch
    %36 = sbr.rel (0) target = $region33
  $region32: #{fmi_forward.1} parent=0 // pred_region
    _
  $region33: #{fmi_forward.1} parent=0 // pred_fallthru
    _
  // Predicated region
  $region34: #{fmi_forward.1} parent=0 // pred_check
    _
  $region35: #{fmi_forward.1} parent=0 // pred_check_branch
    %38 = sbr.rel (0) target = $region37
  $region36: #{fmi_forward.1} parent=0 // pred_region
    _
  $region37: #{fmi_forward.1} parent=0 // pred_fallthru
    _
  // Predicated region
  $region38: #{fmi_forward.1} parent=0 // pred_check
    _
  $region39: #{fmi_forward.1} parent=0 // pred_check_branch
    %40 = sbr.rel (0) target = $region41
  $region40: #{fmi_forward.1} parent=0 // pred_region
    _
  $region41: #{fmi_forward.1} parent=0 // pred_fallthru
    _
  // Predicated region
  $region42: #{fmi_forward.1} parent=0 // pred_check
    _
  $region43: #{fmi_forward.1} parent=0 // pred_check_branch
    %42 = sbr.rel (0) target = $region45
  $region44: #{fmi_forward.1} parent=0 // pred_region
    _
  $region45: #{fmi_forward.1} parent=0 // pred_fallthru
    _
  // Predicated region
  $region46: #{fmi_forward.1} parent=0 // pred_check
    _
  $region47: #{fmi_forward.1} parent=0 // pred_check_branch
    %44 = sbr.rel (0) target = $region49
  $region48: #{fmi_forward.1} parent=0 // pred_region
    _
  $region49: #{fmi_forward.1} parent=0 // pred_fallthru
    _
  // Predicated region
  $region50: #{fmi_forward.1} parent=0 // pred_check
    _
  $region51: #{fmi_forward.1} parent=0 // pred_check_branch
    %46 = sbr.rel (0) target = $region53
  $region52: #{fmi_forward.1} parent=0 // pred_region
    _
  $region53: #{fmi_forward.1} parent=0 // pred_fallthru
    _
  // Predicated region
  $region54: #{fmi_forward.1} parent=0 // pred_check
    _
  $region55: #{fmi_forward.1} parent=0 // pred_check_branch
    %48 = sbr.rel (0) target = $region57
  $region56: #{fmi_forward.1} parent=0 // pred_region
    _
  $region57: #{fmi_forward.1} parent=0 // pred_fallthru
    _
  %v50 = vld [vmem:[%s0] sm:$0xff]
  %v51 = vld [vmem:[%s0 + $0x8] sm:$0xff]
  %v52 = vld [vmem:[%s0 + $0x10] sm:$0xff]
  %v53 = vld [vmem:[%s0 + $0x18] sm:$0xff]
  %v54 = vld [vmem:[%s1] sm:$0xff]
  %v55 = vld [vmem:[%s12] ss:$8 sm:$0xf]
  %s56 = scalar_lea.vmem %s12, 1
  %v57 = vld [vmem:[%s56] ss:$8 sm:$0xf]
  %s58 = scalar_lea.vmem %s12, 2
  %v59 = vld [vmem:[%s58] ss:$8 sm:$0xf]
  %s60 = scalar_lea.vmem %s12, 3
  %v61 = vld [vmem:[%s60] ss:$8 sm:$0xf]
  %s62 = scalar_lea.vmem %s12, 5
  %v63 = vld [vmem:[%s62] ss:$8 sm:$0xf]
  %s64 = scalar_lea.vmem %s12, 6
  %v65 = vld [vmem:[%s64] ss:$8 sm:$0xf]
  %s66 = scalar_lea.vmem %s12, 7
  %v67 = vld [vmem:[%s66] ss:$8 sm:$0xf]
  %s68 = scalar_lea.vmem %s12, 32
  %v69 = vld [vmem:[%s68] ss:$8 sm:$0xf]
  %v70 = vld [vmem:[%s13] sm:$0x1]
  %v71 = vld [vmem:[%s13 + $0x1] sm:$0x1]
  %v72 = vld [vmem:[%s13 + $0x2] sm:$0x1]
  %v73 = vld [vmem:[%s13 + $0x3] sm:$0x1]
  %v74 = vld [vmem:[%s13 + $0x5] sm:$0x1]
  %v75 = vld [vmem:[%s13 + $0x6] sm:$0x1]
  %v76 = vld [vmem:[%s13 + $0x7] sm:$0x1]
  %v77 = vld [vmem:[%s13 + $0x8] sm:$0x1]
  %v78 = vld [vmem:[%s2] sm:$0xf]
  %v79 = vld [vmem:[%s3] sm:$0xff]
  %s80 = scalar_lea.vmem %s2, 4
  %v81 = vld [vmem:[%s80] sm:$0xf]
  %s82 = scalar_lea.vmem %s3, 8
  %v83 = vld [vmem:[%s82] sm:$0xff]
  %84 = vrot.lane.b32.xlu0 %v50, 17
  %v85 = vpop.permute.xlu0 %84
  %86 = vrot.lane.b32.xlu0 %v51, 17
  %v87 = vpop.permute.xlu0 %86
  %88 = vrot.lane.b32.xlu0 %v52, 17
  %v89 = vpop.permute.xlu0 %88
  %90 = vrot.lane.b32.xlu0 %v53, 17
  %v91 = vpop.permute.xlu0 %90
  %v92 = vlaneseq
  %v93 = vand.u32 %v92, 127
  %vm94 = vcmp.lt.s32.totalorder %v93, 17
  %v95 = vsel %vm94, %v89, %v91
  %v96 = vsel %vm94, %v87, %v89
  %v97 = vsel %vm94, %v85, %v87
  %v98 = vsel %vm94, %v91, %v85
  %v100 = vlaneseq
  %v101 = vshrl.u32 %v100, 7
  %v102 = vsub.s32 0, %v101
  %v103 = vrot.slane %v55, %v102
  %v104 = vlaneseq
  %v105 = vshrl.u32 %v104, 7
  %v106 = vsub.s32 1, %v105
  %v107 = vrot.slane %v55, %v106
  %v108 = vlaneseq
  %v109 = vshrl.u32 %v108, 7
  %v110 = vsub.s32 2, %v109
  %v111 = vrot.slane %v55, %v110
  %v112 = vlaneseq
  %v113 = vshrl.u32 %v112, 7
  %v114 = vsub.s32 3, %v113
  %v115 = vrot.slane %v55, %v114
  %v120 = vmul.f32 %v98, %v103
  %v121 = vmul.f32 %v97, %v107
  %v122 = vmul.f32 %v96, %v111
  %v123 = vmul.f32 %v95, %v115
  %124 = vrot.lane.b32.xlu0 %v50, 16
  %v125 = vpop.permute.xlu0 %124
  %126 = vrot.lane.b32.xlu0 %v51, 16
  %v127 = vpop.permute.xlu0 %126
  %128 = vrot.lane.b32.xlu0 %v52, 16
  %v129 = vpop.permute.xlu0 %128
  %130 = vrot.lane.b32.xlu0 %v53, 16
  %v131 = vpop.permute.xlu0 %130
  %vm132 = vcmp.lt.s32.totalorder %v93, 16
  %v133 = vsel %vm132, %v129, %v131
  %v134 = vsel %vm132, %v127, %v129
  %v135 = vsel %vm132, %v125, %v127
  %v136 = vsel %vm132, %v131, %v125
  %v138 = vlaneseq
  %v139 = vshrl.u32 %v138, 7
  %v140 = vsub.s32 0, %v139
  %v141 = vrot.slane %v57, %v140
  %v142 = vlaneseq
  %v143 = vshrl.u32 %v142, 7
  %v144 = vsub.s32 1, %v143
  %v145 = vrot.slane %v57, %v144
  %v146 = vlaneseq
  %v147 = vshrl.u32 %v146, 7
  %v148 = vsub.s32 2, %v147
  %v149 = vrot.slane %v57, %v148
  %v150 = vlaneseq
  %v151 = vshrl.u32 %v150, 7
  %v152 = vsub.s32 3, %v151
  %v153 = vrot.slane %v57, %v152
  %v158 = vmul.f32 %v136, %v141
  %v159 = vmul.f32 %v135, %v145
  %v160 = vmul.f32 %v134, %v149
  %v161 = vmul.f32 %v133, %v153
  %162 = vrot.lane.b32.xlu0 %v50, 15
  %v163 = vpop.permute.xlu0 %162
  %164 = vrot.lane.b32.xlu0 %v51, 15
  %v165 = vpop.permute.xlu0 %164
  %166 = vrot.lane.b32.xlu0 %v52, 15
  %v167 = vpop.permute.xlu0 %166
  %168 = vrot.lane.b32.xlu0 %v53, 15
  %v169 = vpop.permute.xlu0 %168
  %vm170 = vcmp.lt.s32.totalorder %v93, 15
  %v171 = vsel %vm170, %v167, %v169
  %v172 = vsel %vm170, %v165, %v167
  %v173 = vsel %vm170, %v163, %v165
  %v174 = vsel %vm170, %v169, %v163
  %v176 = vlaneseq
  %v177 = vshrl.u32 %v176, 7
  %v178 = vsub.s32 0, %v177
  %v179 = vrot.slane %v59, %v178
  %v180 = vlaneseq
  %v181 = vshrl.u32 %v180, 7
  %v182 = vsub.s32 1, %v181
  %v183 = vrot.slane %v59, %v182
  %v184 = vlaneseq
  %v185 = vshrl.u32 %v184, 7
  %v186 = vsub.s32 2, %v185
  %v187 = vrot.slane %v59, %v186
  %v188 = vlaneseq
  %v189 = vshrl.u32 %v188, 7
  %v190 = vsub.s32 3, %v189
  %v191 = vrot.slane %v59, %v190
  %v196 = vmul.f32 %v174, %v179
  %v197 = vmul.f32 %v173, %v183
  %v198 = vmul.f32 %v172, %v187
  %v199 = vmul.f32 %v171, %v191
  %200 = vrot.lane.b32.xlu0 %v50, 1
  %v201 = vpop.permute.xlu0 %200
  %202 = vrot.lane.b32.xlu0 %v51, 1
  %v203 = vpop.permute.xlu0 %202
  %204 = vrot.lane.b32.xlu0 %v52, 1
  %v205 = vpop.permute.xlu0 %204
  %206 = vrot.lane.b32.xlu0 %v53, 1
  %v207 = vpop.permute.xlu0 %206
  %vm208 = vcmp.lt.s32.totalorder %v93, 1
  %v209 = vsel %vm208, %v205, %v207
  %v210 = vsel %vm208, %v203, %v205
  %v211 = vsel %vm208, %v201, %v203
  %v212 = vsel %vm208, %v207, %v201
  %v214 = vlaneseq
  %v215 = vshrl.u32 %v214, 7
  %v216 = vsub.s32 0, %v215
  %v217 = vrot.slane %v61, %v216
  %v218 = vlaneseq
  %v219 = vshrl.u32 %v218, 7
  %v220 = vsub.s32 1, %v219
  %v221 = vrot.slane %v61, %v220
  %v222 = vlaneseq
  %v223 = vshrl.u32 %v222, 7
  %v224 = vsub.s32 2, %v223
  %v225 = vrot.slane %v61, %v224
  %v226 = vlaneseq
  %v227 = vshrl.u32 %v226, 7
  %v228 = vsub.s32 3, %v227
  %v229 = vrot.slane %v61, %v228
  %v234 = vmul.f32 %v212, %v217
  %v235 = vmul.f32 %v211, %v221
  %v236 = vmul.f32 %v210, %v225
  %v237 = vmul.f32 %v209, %v229
  %238 = vrot.lane.b32.xlu0 %v50, 127
  %v239 = vpop.permute.xlu0 %238
  %240 = vrot.lane.b32.xlu0 %v51, 127
  %v241 = vpop.permute.xlu0 %240
  %242 = vrot.lane.b32.xlu0 %v52, 127
  %v243 = vpop.permute.xlu0 %242
  %244 = vrot.lane.b32.xlu0 %v53, 127
  %v245 = vpop.permute.xlu0 %244
  %vm246 = vcmp.lt.s32.totalorder %v93, 127
  %v247 = vsel %vm246, %v243, %v245
  %v248 = vsel %vm246, %v241, %v243
  %v249 = vsel %vm246, %v239, %v241
  %v250 = vsel %vm246, %v245, %v239
  %v252 = vlaneseq
  %v253 = vshrl.u32 %v252, 7
  %v254 = vsub.s32 0, %v253
  %v255 = vrot.slane %v63, %v254
  %v256 = vlaneseq
  %v257 = vshrl.u32 %v256, 7
  %v258 = vsub.s32 1, %v257
  %v259 = vrot.slane %v63, %v258
  %v260 = vlaneseq
  %v261 = vshrl.u32 %v260, 7
  %v262 = vsub.s32 2, %v261
  %v263 = vrot.slane %v63, %v262
  %v264 = vlaneseq
  %v265 = vshrl.u32 %v264, 7
  %v266 = vsub.s32 3, %v265
  %v267 = vrot.slane %v63, %v266
  %v272 = vmul.f32 %v249, %v255
  %v273 = vmul.f32 %v248, %v259
  %v274 = vmul.f32 %v247, %v263
  %v275 = vmul.f32 %v250, %v267
  %276 = vrot.lane.b32.xlu0 %v50, 113
  %v277 = vpop.permute.xlu0 %276
  %278 = vrot.lane.b32.xlu0 %v51, 113
  %v279 = vpop.permute.xlu0 %278
  %280 = vrot.lane.b32.xlu0 %v52, 113
  %v281 = vpop.permute.xlu0 %280
  %282 = vrot.lane.b32.xlu0 %v53, 113
  %v283 = vpop.permute.xlu0 %282
  %vm284 = vcmp.lt.s32.totalorder %v93, 113
  %v285 = vsel %vm284, %v281, %v283
  %v286 = vsel %vm284, %v279, %v281
  %v287 = vsel %vm284, %v277, %v279
  %v288 = vsel %vm284, %v283, %v277
  %v290 = vlaneseq
  %v291 = vshrl.u32 %v290, 7
  %v292 = vsub.s32 0, %v291
  %v293 = vrot.slane %v65, %v292
  %v294 = vlaneseq
  %v295 = vshrl.u32 %v294, 7
  %v296 = vsub.s32 1, %v295
  %v297 = vrot.slane %v65, %v296
  %v298 = vlaneseq
  %v299 = vshrl.u32 %v298, 7
  %v300 = vsub.s32 2, %v299
  %v301 = vrot.slane %v65, %v300
  %v302 = vlaneseq
  %v303 = vshrl.u32 %v302, 7
  %v304 = vsub.s32 3, %v303
  %v305 = vrot.slane %v65, %v304
  %v310 = vmul.f32 %v287, %v293
  %v311 = vmul.f32 %v286, %v297
  %v312 = vmul.f32 %v285, %v301
  %v313 = vmul.f32 %v288, %v305
  %314 = vrot.lane.b32.xlu0 %v50, 112
  %v315 = vpop.permute.xlu0 %314
  %316 = vrot.lane.b32.xlu0 %v51, 112
  %v317 = vpop.permute.xlu0 %316
  %318 = vrot.lane.b32.xlu0 %v52, 112
  %v319 = vpop.permute.xlu0 %318
  %320 = vrot.lane.b32.xlu0 %v53, 112
  %v321 = vpop.permute.xlu0 %320
  %vm322 = vcmp.lt.s32.totalorder %v93, 112
  %v323 = vsel %vm322, %v319, %v321
  %v324 = vsel %vm322, %v317, %v319
  %v325 = vsel %vm322, %v315, %v317
  %v326 = vsel %vm322, %v321, %v315
  %v328 = vlaneseq
  %v329 = vshrl.u32 %v328, 7
  %v330 = vsub.s32 0, %v329
  %v331 = vrot.slane %v67, %v330
  %v332 = vlaneseq
  %v333 = vshrl.u32 %v332, 7
  %v334 = vsub.s32 1, %v333
  %v335 = vrot.slane %v67, %v334
  %v336 = vlaneseq
  %v337 = vshrl.u32 %v336, 7
  %v338 = vsub.s32 2, %v337
  %v339 = vrot.slane %v67, %v338
  %v340 = vlaneseq
  %v341 = vshrl.u32 %v340, 7
  %v342 = vsub.s32 3, %v341
  %v343 = vrot.slane %v67, %v342
  %v348 = vmul.f32 %v325, %v331
  %v349 = vmul.f32 %v324, %v335
  %v350 = vmul.f32 %v323, %v339
  %v351 = vmul.f32 %v326, %v343
  %352 = vrot.lane.b32.xlu0 %v50, 111
  %v353 = vpop.permute.xlu0 %352
  %354 = vrot.lane.b32.xlu0 %v51, 111
  %v355 = vpop.permute.xlu0 %354
  %356 = vrot.lane.b32.xlu0 %v52, 111
  %v357 = vpop.permute.xlu0 %356
  %358 = vrot.lane.b32.xlu0 %v53, 111
  %v359 = vpop.permute.xlu0 %358
  %vm360 = vcmp.lt.s32.totalorder %v93, 111
  %v361 = vsel %vm360, %v357, %v359
  %v362 = vsel %vm360, %v355, %v357
  %v363 = vsel %vm360, %v353, %v355
  %v364 = vsel %vm360, %v359, %v353
  %v366 = vlaneseq
  %v367 = vshrl.u32 %v366, 7
  %v368 = vsub.s32 0, %v367
  %v369 = vrot.slane %v69, %v368
  %v370 = vlaneseq
  %v371 = vshrl.u32 %v370, 7
  %v372 = vsub.s32 1, %v371
  %v373 = vrot.slane %v69, %v372
  %v374 = vlaneseq
  %v375 = vshrl.u32 %v374, 7
  %v376 = vsub.s32 2, %v375
  %v377 = vrot.slane %v69, %v376
  %v378 = vlaneseq
  %v379 = vshrl.u32 %v378, 7
  %v380 = vsub.s32 3, %v379
  %v381 = vrot.slane %v69, %v380
  %v386 = vmul.f32 %v363, %v369
  %v387 = vmul.f32 %v362, %v373
  %v388 = vmul.f32 %v361, %v377
  %v389 = vmul.f32 %v364, %v381
  %v390 = vpack.c.bf16 %v158, %v120
  %v391 = vpack.c.bf16 %v159, %v121
  %v392 = vpack.c.bf16 %v160, %v122
  %v393 = vpack.c.bf16 %v161, %v123
  %v394 = vpack.c.bf16 %v234, %v196
  %v395 = vpack.c.bf16 %v235, %v197
  %v396 = vpack.c.bf16 %v236, %v198
  %v397 = vpack.c.bf16 %v237, %v199
  %v398 = vpack.c.bf16 %v272, %v50
  %v399 = vpack.c.bf16 %v273, %v51
  %v400 = vpack.c.bf16 %v274, %v52
  %v401 = vpack.c.bf16 %v275, %v53
  %v402 = vpack.c.bf16 %v348, %v310
  %v403 = vpack.c.bf16 %v349, %v311
  %v404 = vpack.c.bf16 %v350, %v312
  %v405 = vpack.c.bf16 %v351, %v313
  %v406 = vpack.c.bf16 %v386, %v386
  %v407 = vpack.c.bf16 %v387, %v387
  %v408 = vpack.c.bf16 %v388, %v388
  %v409 = vpack.c.bf16 %v389, %v389
  %411 = vset.pattern.permute.xlu0 0
  %412 = vperm.xlu0 %411, %v79
  %v413 = vpop.permute.xlu0 %412
  %vm415 = vcmask 588800
  %v417 = vsel %vm415, %v78, 0
  %vm419 = vcmask 1043456
  %v421 = vsel %vm419, %v406, 0
  %v424 = vsel %vm419, %v407, 0
  %v427 = vsel %vm419, %v408, 0
  %v430 = vsel %vm419, %v409, 0
  %432 = vmatprep.subr.bf16.mxu0 %v391
  %433 = vmatpush1.bf16.msra.mxu0 %v390
  %434 = vmatprep.subr.bf16.mxu0 %v395
  %435 = vmatpush1.bf16.msra.mxu0 %v394
  %436 = vmatprep.subr.bf16.mxu0 %v399
  %437 = vmatpush1.bf16.msra.mxu0 %v398
  %438 = vmatprep.subr.bf16.mxu0 %v403
  %439 = vmatpush1.bf16.msra.mxu0 %v402
  %440 = vmatprep.subr.bf16.mxu0 %v424
  %441 = vmatpush1.bf16.msra.mxu0 %v421
  %442 = vmatprep.subr.bf16.mxu0 0
  %443 = vmatpush1.bf16.msra.mxu0 0
  %444 = vmatprep.subr.bf16.mxu0 0
  %445 = vmatpush1.bf16.msra.mxu0 0
  %446 = vmatprep.subr.bf16.mxu0 0
  %447 = vmatpush1.bf16.msra.mxu0 0
  %448 = vmatprep.subr.bf16.mxu0 0
  %449 = vmatpush1.bf16.msra.mxu0 0
  %450 = vmatprep.subr.bf16.mxu0 0
  %451 = vmatpush1.bf16.msra.mxu0 0
  %452 = vmatprep.subr.bf16.mxu0 0
  %453 = vmatpush1.bf16.msra.mxu0 0
  %454 = vmatprep.subr.bf16.mxu0 0
  %455 = vmatpush1.bf16.msra.mxu0 0
  %456 = vmatprep.subr.bf16.mxu0 0
  %457 = vmatpush1.bf16.msra.mxu0 0
  %458 = vmatprep.subr.bf16.mxu0 0
  %459 = vmatpush1.bf16.msra.mxu0 0
  %460 = vmatprep.subr.bf16.mxu0 0
  %461 = vmatpush1.bf16.msra.mxu0 0
  %462 = vmatprep.subr.bf16.mxu0 0
  %463 = vmatpush1.bf16.msra.mxu0 0
  %464 = vmatprep.mubr.bf16.mxu0 0
  %465 = vmatmul.mubr.bf16.gmra.mrb[0].mxu0 %v417
  %v466 = vpop.f32.mrb[0].mxu0
  %v467 = vadd.f32 %v413, %v466
  %v468 = vpop.f32.mrb[0].mxu0
  %v469 = vadd.f32 %v413, %v468
  %v470 = vpop.f32.mrb[0].mxu0
  %v471 = vpop.f32.mrb[0].mxu0
  %472 = vdwg.mxu0
  %473 = vmatprep.subr.bf16.mxu0 %v393
  %474 = vmatpush1.bf16.msra.mxu0 %v392
  %475 = vmatprep.subr.bf16.mxu0 %v397
  %476 = vmatpush1.bf16.msra.mxu0 %v396
  %477 = vmatprep.subr.bf16.mxu0 %v401
  %478 = vmatpush1.bf16.msra.mxu0 %v400
  %479 = vmatprep.subr.bf16.mxu0 %v405
  %480 = vmatpush1.bf16.msra.mxu0 %v404
  %481 = vmatprep.subr.bf16.mxu0 %v430
  %482 = vmatpush1.bf16.msra.mxu0 %v427
  %483 = vmatprep.subr.bf16.mxu0 0
  %484 = vmatpush1.bf16.msra.mxu0 0
  %485 = vmatprep.subr.bf16.mxu0 0
  %486 = vmatpush1.bf16.msra.mxu0 0
  %487 = vmatprep.subr.bf16.mxu0 0
  %488 = vmatpush1.bf16.msra.mxu0 0
  %489 = vmatprep.subr.bf16.mxu0 0
  %490 = vmatpush1.bf16.msra.mxu0 0
  %491 = vmatprep.subr.bf16.mxu0 0
  %492 = vmatpush1.bf16.msra.mxu0 0
  %493 = vmatprep.subr.bf16.mxu0 0
  %494 = vmatpush1.bf16.msra.mxu0 0
  %495 = vmatprep.subr.bf16.mxu0 0
  %496 = vmatpush1.bf16.msra.mxu0 0
  %497 = vmatprep.subr.bf16.mxu0 0
  %498 = vmatpush1.bf16.msra.mxu0 0
  %499 = vmatprep.subr.bf16.mxu0 0
  %500 = vmatpush1.bf16.msra.mxu0 0
  %501 = vmatprep.subr.bf16.mxu0 0
  %502 = vmatpush1.bf16.msra.mxu0 0
  %503 = vmatprep.subr.bf16.mxu0 0
  %504 = vmatpush1.bf16.msra.mxu0 0
  %505 = vmatprep.mubr.bf16.mxu0 0
  %506 = vmatmul.mubr.bf16.gmra.mrb[0].mxu0 %v417
  %v507 = vpop.f32.mrb[0].mxu0
  %v508 = vadd.f32 %v413, %v507
  %v509 = vpop.f32.mrb[0].mxu0
  %v510 = vadd.f32 %v413, %v509
  %v511 = vpop.f32.mrb[0].mxu0
  %v512 = vpop.f32.mrb[0].mxu0
  %513 = vdwg.mxu0
  %v514 = vmax.f32 %v467, 0.0
  %v515 = vmax.f32 %v469, 0.0
  %v516 = vmax.f32 %v508, 0.0
  %v517 = vmax.f32 %v510, 0.0
  %518 = vrot.lane.b32.xlu0 %v514, 17
  %v519 = vpop.permute.xlu0 %518
  %520 = vrot.lane.b32.xlu0 %v515, 17
  %v521 = vpop.permute.xlu0 %520
  %522 = vrot.lane.b32.xlu0 %v516, 17
  %v523 = vpop.permute.xlu0 %522
  %524 = vrot.lane.b32.xlu0 %v517, 17
  %v525 = vpop.permute.xlu0 %524
  %v526 = vsel %vm94, %v523, %v525
  %v527 = vsel %vm94, %v521, %v523
  %v528 = vsel %vm94, %v519, %v521
  %v529 = vsel %vm94, %v525, %v519
  %v530 = vmul.f32 %v529, %v103
  %v531 = vmul.f32 %v528, %v107
  %v532 = vmul.f32 %v527, %v111
  %v533 = vmul.f32 %v526, %v115
  %534 = vrot.lane.b32.xlu0 %v514, 16
  %v535 = vpop.permute.xlu0 %534
  %536 = vrot.lane.b32.xlu0 %v515, 16
  %v537 = vpop.permute.xlu0 %536
  %538 = vrot.lane.b32.xlu0 %v516, 16
  %v539 = vpop.permute.xlu0 %538
  %540 = vrot.lane.b32.xlu0 %v517, 16
  %v541 = vpop.permute.xlu0 %540
  %v542 = vsel %vm132, %v539, %v541
  %v543 = vsel %vm132, %v537, %v539
  %v544 = vsel %vm132, %v535, %v537
  %v545 = vsel %vm132, %v541, %v535
  %v546 = vmul.f32 %v545, %v141
  %v547 = vmul.f32 %v544, %v145
  %v548 = vmul.f32 %v543, %v149
  %v549 = vmul.f32 %v542, %v153
  %550 = vrot.lane.b32.xlu0 %v514, 15
  %v551 = vpop.permute.xlu0 %550
  %552 = vrot.lane.b32.xlu0 %v515, 15
  %v553 = vpop.permute.xlu0 %552
  %554 = vrot.lane.b32.xlu0 %v516, 15
  %v555 = vpop.permute.xlu0 %554
  %556 = vrot.lane.b32.xlu0 %v517, 15
  %v557 = vpop.permute.xlu0 %556
  %v558 = vsel %vm170, %v555, %v557
  %v559 = vsel %vm170, %v553, %v555
  %v560 = vsel %vm170, %v551, %v553
  %v561 = vsel %vm170, %v557, %v551
  %v562 = vmul.f32 %v561, %v179
  %v563 = vmul.f32 %v560, %v183
  %v564 = vmul.f32 %v559, %v187
  %v565 = vmul.f32 %v558, %v191
  %566 = vrot.lane.b32.xlu0 %v514, 1
  %v567 = vpop.permute.xlu0 %566
  %568 = vrot.lane.b32.xlu0 %v515, 1
  %v569 = vpop.permute.xlu0 %568
  %570 = vrot.lane.b32.xlu0 %v516, 1
  %v571 = vpop.permute.xlu0 %570
  %572 = vrot.lane.b32.xlu0 %v517, 1
  %v573 = vpop.permute.xlu0 %572
  %v574 = vsel %vm208, %v571, %v573
  %v575 = vsel %vm208, %v569, %v571
  %v576 = vsel %vm208, %v567, %v569
  %v577 = vsel %vm208, %v573, %v567
  %v578 = vmul.f32 %v577, %v217
  %v579 = vmul.f32 %v576, %v221
  %v580 = vmul.f32 %v575, %v225
  %v581 = vmul.f32 %v574, %v229
  %582 = vrot.lane.b32.xlu0 %v514, 127
  %v583 = vpop.permute.xlu0 %582
  %584 = vrot.lane.b32.xlu0 %v515, 127
  %v585 = vpop.permute.xlu0 %584
  %586 = vrot.lane.b32.xlu0 %v516, 127
  %v587 = vpop.permute.xlu0 %586
  %588 = vrot.lane.b32.xlu0 %v517, 127
  %v589 = vpop.permute.xlu0 %588
  %v590 = vsel %vm246, %v587, %v589
  %v591 = vsel %vm246, %v585, %v587
  %v592 = vsel %vm246, %v583, %v585
  %v593 = vsel %vm246, %v589, %v583
  %v594 = vmul.f32 %v592, %v255
  %v595 = vmul.f32 %v591, %v259
  %v596 = vmul.f32 %v590, %v263
  %v597 = vmul.f32 %v593, %v267
  %598 = vrot.lane.b32.xlu0 %v514, 113
  %v599 = vpop.permute.xlu0 %598
  %600 = vrot.lane.b32.xlu0 %v515, 113
  %v601 = vpop.permute.xlu0 %600
  %602 = vrot.lane.b32.xlu0 %v516, 113
  %v603 = vpop.permute.xlu0 %602
  %604 = vrot.lane.b32.xlu0 %v517, 113
  %v605 = vpop.permute.xlu0 %604
  %v606 = vsel %vm284, %v603, %v605
  %v607 = vsel %vm284, %v601, %v603
  %v608 = vsel %vm284, %v599, %v601
  %v609 = vsel %vm284, %v605, %v599
  %v610 = vmul.f32 %v608, %v293
  %v611 = vmul.f32 %v607, %v297
  %v612 = vmul.f32 %v606, %v301
  %v613 = vmul.f32 %v609, %v305
  %614 = vrot.lane.b32.xlu0 %v514, 112
  %v615 = vpop.permute.xlu0 %614
  %616 = vrot.lane.b32.xlu0 %v515, 112
  %v617 = vpop.permute.xlu0 %616
  %618 = vrot.lane.b32.xlu0 %v516, 112
  %v619 = vpop.permute.xlu0 %618
  %620 = vrot.lane.b32.xlu0 %v517, 112
  %v621 = vpop.permute.xlu0 %620
  %v622 = vsel %vm322, %v619, %v621
  %v623 = vsel %vm322, %v617, %v619
  %v624 = vsel %vm322, %v615, %v617
  %v625 = vsel %vm322, %v621, %v615
  %v626 = vmul.f32 %v624, %v331
  %v627 = vmul.f32 %v623, %v335
  %v628 = vmul.f32 %v622, %v339
  %v629 = vmul.f32 %v625, %v343
  %630 = vrot.lane.b32.xlu0 %v514, 111
  %v631 = vpop.permute.xlu0 %630
  %632 = vrot.lane.b32.xlu0 %v515, 111
  %v633 = vpop.permute.xlu0 %632
  %634 = vrot.lane.b32.xlu0 %v516, 111
  %v635 = vpop.permute.xlu0 %634
  %636 = vrot.lane.b32.xlu0 %v517, 111
  %v637 = vpop.permute.xlu0 %636
  %v638 = vsel %vm360, %v635, %v637
  %v639 = vsel %vm360, %v633, %v635
  %v640 = vsel %vm360, %v631, %v633
  %v641 = vsel %vm360, %v637, %v631
  %v642 = vmul.f32 %v640, %v369
  %v643 = vmul.f32 %v639, %v373
  %v644 = vmul.f32 %v638, %v377
  %v645 = vmul.f32 %v641, %v381
  %v646 = vpack.c.bf16 %v546, %v530
  %v647 = vpack.c.bf16 %v547, %v531
  %v648 = vpack.c.bf16 %v548, %v532
  %v649 = vpack.c.bf16 %v549, %v533
  %v650 = vpack.c.bf16 %v578, %v562
  %v651 = vpack.c.bf16 %v579, %v563
  %v652 = vpack.c.bf16 %v580, %v564
  %v653 = vpack.c.bf16 %v581, %v565
  %v654 = vpack.c.bf16 %v594, %v514
  %v655 = vpack.c.bf16 %v595, %v515
  %v656 = vpack.c.bf16 %v596, %v516
  %v657 = vpack.c.bf16 %v597, %v517
  %v658 = vpack.c.bf16 %v626, %v610
  %v659 = vpack.c.bf16 %v627, %v611
  %v660 = vpack.c.bf16 %v628, %v612
  %v661 = vpack.c.bf16 %v629, %v613
  %v662 = vpack.c.bf16 %v642, %v642
  %v663 = vpack.c.bf16 %v643, %v643
  %v664 = vpack.c.bf16 %v644, %v644
  %v665 = vpack.c.bf16 %v645, %v645
  %667 = vset.pattern.permute.xlu0 0
  %668 = vperm.xlu0 %667, %v83
  %v669 = vpop.permute.xlu0 %668
  %v672 = vsel %vm415, %v81, 0
  %v675 = vsel %vm419, %v662, 0
  %v678 = vsel %vm419, %v663, 0
  %v681 = vsel %vm419, %v664, 0
  %v684 = vsel %vm419, %v665, 0
  %686 = vmatprep.subr.bf16.mxu0 %v647
  %687 = vmatpush1.bf16.msra.mxu0 %v646
  %688 = vmatprep.subr.bf16.mxu0 %v651
  %689 = vmatpush1.bf16.msra.mxu0 %v650
  %690 = vmatprep.subr.bf16.mxu0 %v655
  %691 = vmatpush1.bf16.msra.mxu0 %v654
  %692 = vmatprep.subr.bf16.mxu0 %v659
  %693 = vmatpush1.bf16.msra.mxu0 %v658
  %694 = vmatprep.subr.bf16.mxu0 %v678
  %695 = vmatpush1.bf16.msra.mxu0 %v675
  %696 = vmatprep.subr.bf16.mxu0 0
  %697 = vmatpush1.bf16.msra.mxu0 0
  %698 = vmatprep.subr.bf16.mxu0 0
  %699 = vmatpush1.bf16.msra.mxu0 0
  %700 = vmatprep.subr.bf16.mxu0 0
  %701 = vmatpush1.bf16.msra.mxu0 0
  %702 = vmatprep.subr.bf16.mxu0 0
  %703 = vmatpush1.bf16.msra.mxu0 0
  %704 = vmatprep.subr.bf16.mxu0 0
  %705 = vmatpush1.bf16.msra.mxu0 0
  %706 = vmatprep.subr.bf16.mxu0 0
  %707 = vmatpush1.bf16.msra.mxu0 0
  %708 = vmatprep.subr.bf16.mxu0 0
  %709 = vmatpush1.bf16.msra.mxu0 0
  %710 = vmatprep.subr.bf16.mxu0 0
  %711 = vmatpush1.bf16.msra.mxu0 0
  %712 = vmatprep.subr.bf16.mxu0 0
  %713 = vmatpush1.bf16.msra.mxu0 0
  %714 = vmatprep.subr.bf16.mxu0 0
  %715 = vmatpush1.bf16.msra.mxu0 0
  %716 = vmatprep.subr.bf16.mxu0 0
  %717 = vmatpush1.bf16.msra.mxu0 0
  %718 = vmatprep.mubr.bf16.mxu0 0
  %719 = vmatmul.mubr.bf16.gmra.mrb[0].mxu0 %v672
  %v720 = vpop.f32.mrb[0].mxu0
  %v721 = vadd.f32 %v669, %v720
  %v722 = vpop.f32.mrb[0].mxu0
  %v723 = vadd.f32 %v669, %v722
  %v724 = vpop.f32.mrb[0].mxu0
  %v725 = vpop.f32.mrb[0].mxu0
  %726 = vdwg.mxu0
  %727 = vmatprep.subr.bf16.mxu0 %v649
  %728 = vmatpush1.bf16.msra.mxu0 %v648
  %729 = vmatprep.subr.bf16.mxu0 %v653
  %730 = vmatpush1.bf16.msra.mxu0 %v652
  %731 = vmatprep.subr.bf16.mxu0 %v657
  %732 = vmatpush1.bf16.msra.mxu0 %v656
  %733 = vmatprep.subr.bf16.mxu0 %v661
  %734 = vmatpush1.bf16.msra.mxu0 %v660
  %735 = vmatprep.subr.bf16.mxu0 %v684
  %736 = vmatpush1.bf16.msra.mxu0 %v681
  %737 = vmatprep.subr.bf16.mxu0 0
  %738 = vmatpush1.bf16.msra.mxu0 0
  %739 = vmatprep.subr.bf16.mxu0 0
  %740 = vmatpush1.bf16.msra.mxu0 0
  %741 = vmatprep.subr.bf16.mxu0 0
  %742 = vmatpush1.bf16.msra.mxu0 0
  %743 = vmatprep.subr.bf16.mxu0 0
  %744 = vmatpush1.bf16.msra.mxu0 0
  %745 = vmatprep.subr.bf16.mxu0 0
  %746 = vmatpush1.bf16.msra.mxu0 0
  %747 = vmatprep.subr.bf16.mxu0 0
  %748 = vmatpush1.bf16.msra.mxu0 0
  %749 = vmatprep.subr.bf16.mxu0 0
  %750 = vmatpush1.bf16.msra.mxu0 0
  %751 = vmatprep.subr.bf16.mxu0 0
  %752 = vmatpush1.bf16.msra.mxu0 0
  %753 = vmatprep.subr.bf16.mxu0 0
  %754 = vmatpush1.bf16.msra.mxu0 0
  %755 = vmatprep.subr.bf16.mxu0 0
  %756 = vmatpush1.bf16.msra.mxu0 0
  %757 = vmatprep.subr.bf16.mxu0 0
  %758 = vmatpush1.bf16.msra.mxu0 0
  %759 = vmatprep.mubr.bf16.mxu0 0
  %760 = vmatmul.mubr.bf16.gmra.mrb[0].mxu0 %v672
  %v761 = vpop.f32.mrb[0].mxu0
  %v762 = vadd.f32 %v669, %v761
  %v763 = vpop.f32.mrb[0].mxu0
  %v764 = vadd.f32 %v669, %v763
  %v765 = vpop.f32.mrb[0].mxu0
  %v766 = vpop.f32.mrb[0].mxu0
  %767 = vdwg.mxu0
  %v768 = vadd.f32 %v721, %v50
  %v769 = vadd.f32 %v723, %v51
  %v770 = vadd.f32 %v762, %v52
  %v771 = vadd.f32 %v764, %v53
  %v772 = vmax.f32 %v768, 0.0
  %v773 = vmax.f32 %v769, 0.0
  %v774 = vmax.f32 %v770, 0.0
  %v775 = vmax.f32 %v771, 0.0
  %s776 = scalar_lea.vmem %s2, 8
  %v777 = vld [vmem:[%s776] sm:$0xf]
  %s778 = scalar_lea.vmem %s3, 16
  %v779 = vld [vmem:[%s778] sm:$0xff]
  %s780 = scalar_lea.vmem %s2, 12
  %v781 = vld [vmem:[%s780] sm:$0xf]
  %s782 = scalar_lea.vmem %s3, 24
  %v783 = vld [vmem:[%s782] sm:$0xff]
  %784 = vrot.lane.b32.xlu0 %v772, 17
  %v785 = vpop.permute.xlu0 %784
  %786 = vrot.lane.b32.xlu0 %v773, 17
  %v787 = vpop.permute.xlu0 %786
  %788 = vrot.lane.b32.xlu0 %v774, 17
  %v789 = vpop.permute.xlu0 %788
  %790 = vrot.lane.b32.xlu0 %v775, 17
  %v791 = vpop.permute.xlu0 %790
  %v792 = vsel %vm94, %v789, %v791
  %v793 = vsel %vm94, %v787, %v789
  %v794 = vsel %vm94, %v785, %v787
  %v795 = vsel %vm94, %v791, %v785
  %v796 = vmul.f32 %v795, %v103
  %v797 = vmul.f32 %v794, %v107
  %v798 = vmul.f32 %v793, %v111
  %v799 = vmul.f32 %v792, %v115
  %800 = vrot.lane.b32.xlu0 %v772, 16
  %v801 = vpop.permute.xlu0 %800
  %802 = vrot.lane.b32.xlu0 %v773, 16
  %v803 = vpop.permute.xlu0 %802
  %804 = vrot.lane.b32.xlu0 %v774, 16
  %v805 = vpop.permute.xlu0 %804
  %806 = vrot.lane.b32.xlu0 %v775, 16
  %v807 = vpop.permute.xlu0 %806
  %v808 = vsel %vm132, %v805, %v807
  %v809 = vsel %vm132, %v803, %v805
  %v810 = vsel %vm132, %v801, %v803
  %v811 = vsel %vm132, %v807, %v801
  %v812 = vmul.f32 %v811, %v141
  %v813 = vmul.f32 %v810, %v145
  %v814 = vmul.f32 %v809, %v149
  %v815 = vmul.f32 %v808, %v153
  %816 = vrot.lane.b32.xlu0 %v772, 15
  %v817 = vpop.permute.xlu0 %816
  %818 = vrot.lane.b32.xlu0 %v773, 15
  %v819 = vpop.permute.xlu0 %818
  %820 = vrot.lane.b32.xlu0 %v774, 15
  %v821 = vpop.permute.xlu0 %820
  %822 = vrot.lane.b32.xlu0 %v775, 15
  %v823 = vpop.permute.xlu0 %822
  %v824 = vsel %vm170, %v821, %v823
  %v825 = vsel %vm170, %v819, %v821
  %v826 = vsel %vm170, %v817, %v819
  %v827 = vsel %vm170, %v823, %v817
  %v828 = vmul.f32 %v827, %v179
  %v829 = vmul.f32 %v826, %v183
  %v830 = vmul.f32 %v825, %v187
  %v831 = vmul.f32 %v824, %v191
  %832 = vrot.lane.b32.xlu0 %v772, 1
  %v833 = vpop.permute.xlu0 %832
  %834 = vrot.lane.b32.xlu0 %v773, 1
  %v835 = vpop.permute.xlu0 %834
  %836 = vrot.lane.b32.xlu0 %v774, 1
  %v837 = vpop.permute.xlu0 %836
  %838 = vrot.lane.b32.xlu0 %v775, 1
  %v839 = vpop.permute.xlu0 %838
  %v840 = vsel %vm208, %v837, %v839
  %v841 = vsel %vm208, %v835, %v837
  %v842 = vsel %vm208, %v833, %v835
  %v843 = vsel %vm208, %v839, %v833
  %v844 = vmul.f32 %v843, %v217
  %v845 = vmul.f32 %v842, %v221
  %v846 = vmul.f32 %v841, %v225
  %v847 = vmul.f32 %v840, %v229
  %848 = vrot.lane.b32.xlu0 %v772, 127
  %v849 = vpop.permute.xlu0 %848
  %850 = vrot.lane.b32.xlu0 %v773, 127
  %v851 = vpop.permute.xlu0 %850
  %852 = vrot.lane.b32.xlu0 %v774, 127
  %v853 = vpop.permute.xlu0 %852
  %854 = vrot.lane.b32.xlu0 %v775, 127
  %v855 = vpop.permute.xlu0 %854
  %v856 = vsel %vm246, %v853, %v855
  %v857 = vsel %vm246, %v851, %v853
  %v858 = vsel %vm246, %v849, %v851
  %v859 = vsel %vm246, %v855, %v849
  %v860 = vmul.f32 %v858, %v255
  %v861 = vmul.f32 %v857, %v259
  %v862 = vmul.f32 %v856, %v263
  %v863 = vmul.f32 %v859, %v267
  %864 = vrot.lane.b32.xlu0 %v772, 113
  %v865 = vpop.permute.xlu0 %864
  %866 = vrot.lane.b32.xlu0 %v773, 113
  %v867 = vpop.permute.xlu0 %866
  %868 = vrot.lane.b32.xlu0 %v774, 113
  %v869 = vpop.permute.xlu0 %868
  %870 = vrot.lane.b32.xlu0 %v775, 113
  %v871 = vpop.permute.xlu0 %870
  %v872 = vsel %vm284, %v869, %v871
  %v873 = vsel %vm284, %v867, %v869
  %v874 = vsel %vm284, %v865, %v867
  %v875 = vsel %vm284, %v871, %v865
  %v876 = vmul.f32 %v874, %v293
  %v877 = vmul.f32 %v873, %v297
  %v878 = vmul.f32 %v872, %v301
  %v879 = vmul.f32 %v875, %v305
  %880 = vrot.lane.b32.xlu0 %v772, 112
  %v881 = vpop.permute.xlu0 %880
  %882 = vrot.lane.b32.xlu0 %v773, 112
  %v883 = vpop.permute.xlu0 %882
  %884 = vrot.lane.b32.xlu0 %v774, 112
  %v885 = vpop.permute.xlu0 %884
  %886 = vrot.lane.b32.xlu0 %v775, 112
  %v887 = vpop.permute.xlu0 %886
  %v888 = vsel %vm322, %v885, %v887
  %v889 = vsel %vm322, %v883, %v885
  %v890 = vsel %vm322, %v881, %v883
  %v891 = vsel %vm322, %v887, %v881
  %v892 = vmul.f32 %v890, %v331
  %v893 = vmul.f32 %v889, %v335
  %v894 = vmul.f32 %v888, %v339
  %v895 = vmul.f32 %v891, %v343
  %896 = vrot.lane.b32.xlu0 %v772, 111
  %v897 = vpop.permute.xlu0 %896
  %898 = vrot.lane.b32.xlu0 %v773, 111
  %v899 = vpop.permute.xlu0 %898
  %900 = vrot.lane.b32.xlu0 %v774, 111
  %v901 = vpop.permute.xlu0 %900
  %902 = vrot.lane.b32.xlu0 %v775, 111
  %v903 = vpop.permute.xlu0 %902
  %v904 = vsel %vm360, %v901, %v903
  %v905 = vsel %vm360, %v899, %v901
  %v906 = vsel %vm360, %v897, %v899
  %v907 = vsel %vm360, %v903, %v897
  %v908 = vmul.f32 %v906, %v369
  %v909 = vmul.f32 %v905, %v373
  %v910 = vmul.f32 %v904, %v377
  %v911 = vmul.f32 %v907, %v381
  %v912 = vpack.c.bf16 %v812, %v796
  %v913 = vpack.c.bf16 %v813, %v797
  %v914 = vpack.c.bf16 %v814, %v798
  %v915 = vpack.c.bf16 %v815, %v799
  %v916 = vpack.c.bf16 %v844, %v828
  %v917 = vpack.c.bf16 %v845, %v829
  %v918 = vpack.c.bf16 %v846, %v830
  %v919 = vpack.c.bf16 %v847, %v831
  %v920 = vpack.c.bf16 %v860, %v772
  %v921 = vpack.c.bf16 %v861, %v773
  %v922 = vpack.c.bf16 %v862, %v774
  %v923 = vpack.c.bf16 %v863, %v775
  %v924 = vpack.c.bf16 %v892, %v876
  %v925 = vpack.c.bf16 %v893, %v877
  %v926 = vpack.c.bf16 %v894, %v878
  %v927 = vpack.c.bf16 %v895, %v879
  %v928 = vpack.c.bf16 %v908, %v908
  %v929 = vpack.c.bf16 %v909, %v909
  %v930 = vpack.c.bf16 %v910, %v910
  %v931 = vpack.c.bf16 %v911, %v911
  %933 = vset.pattern.permute.xlu0 0
  %934 = vperm.xlu0 %933, %v779
  %v935 = vpop.permute.xlu0 %934
  %v938 = vsel %vm415, %v777, 0
  %v941 = vsel %vm419, %v928, 0
  %v944 = vsel %vm419, %v929, 0
  %v947 = vsel %vm419, %v930, 0
  %v950 = vsel %vm419, %v931, 0
  %952 = vmatprep.subr.bf16.mxu0 %v913
  %953 = vmatpush1.bf16.msra.mxu0 %v912
  %954 = vmatprep.subr.bf16.mxu0 %v917
  %955 = vmatpush1.bf16.msra.mxu0 %v916
  %956 = vmatprep.subr.bf16.mxu0 %v921
  %957 = vmatpush1.bf16.msra.mxu0 %v920
  %958 = vmatprep.subr.bf16.mxu0 %v925
  %959 = vmatpush1.bf16.msra.mxu0 %v924
  %960 = vmatprep.subr.bf16.mxu0 %v944
  %961 = vmatpush1.bf16.msra.mxu0 %v941
  %962 = vmatprep.subr.bf16.mxu0 0
  %963 = vmatpush1.bf16.msra.mxu0 0
  %964 = vmatprep.subr.bf16.mxu0 0
  %965 = vmatpush1.bf16.msra.mxu0 0
  %966 = vmatprep.subr.bf16.mxu0 0
  %967 = vmatpush1.bf16.msra.mxu0 0
  %968 = vmatprep.subr.bf16.mxu0 0
  %969 = vmatpush1.bf16.msra.mxu0 0
  %970 = vmatprep.subr.bf16.mxu0 0
  %971 = vmatpush1.bf16.msra.mxu0 0
  %972 = vmatprep.subr.bf16.mxu0 0
  %973 = vmatpush1.bf16.msra.mxu0 0
  %974 = vmatprep.subr.bf16.mxu0 0
  %975 = vmatpush1.bf16.msra.mxu0 0
  %976 = vmatprep.subr.bf16.mxu0 0
  %977 = vmatpush1.bf16.msra.mxu0 0
  %978 = vmatprep.subr.bf16.mxu0 0
  %979 = vmatpush1.bf16.msra.mxu0 0
  %980 = vmatprep.subr.bf16.mxu0 0
  %981 = vmatpush1.bf16.msra.mxu0 0
  %982 = vmatprep.subr.bf16.mxu0 0
  %983 = vmatpush1.bf16.msra.mxu0 0
  %984 = vmatprep.mubr.bf16.mxu0 0
  %985 = vmatmul.mubr.bf16.gmra.mrb[0].mxu0 %v938
  %v986 = vpop.f32.mrb[0].mxu0
  %v987 = vadd.f32 %v935, %v986
  %v988 = vpop.f32.mrb[0].mxu0
  %v989 = vadd.f32 %v935, %v988
  %v990 = vpop.f32.mrb[0].mxu0
  %v991 = vpop.f32.mrb[0].mxu0
  %992 = vdwg.mxu0
  %993 = vmatprep.subr.bf16.mxu0 %v915
  %994 = vmatpush1.bf16.msra.mxu0 %v914
  %995 = vmatprep.subr.bf16.mxu0 %v919
  %996 = vmatpush1.bf16.msra.mxu0 %v918
  %997 = vmatprep.subr.bf16.mxu0 %v923
  %998 = vmatpush1.bf16.msra.mxu0 %v922
  %999 = vmatprep.subr.bf16.mxu0 %v927
  %1000 = vmatpush1.bf16.msra.mxu0 %v926
  %1001 = vmatprep.subr.bf16.mxu0 %v950
  %1002 = vmatpush1.bf16.msra.mxu0 %v947
  %1003 = vmatprep.subr.bf16.mxu0 0
  %1004 = vmatpush1.bf16.msra.mxu0 0
  %1005 = vmatprep.subr.bf16.mxu0 0
  %1006 = vmatpush1.bf16.msra.mxu0 0
  %1007 = vmatprep.subr.bf16.mxu0 0
  %1008 = vmatpush1.bf16.msra.mxu0 0
  %1009 = vmatprep.subr.bf16.mxu0 0
  %1010 = vmatpush1.bf16.msra.mxu0 0
  %1011 = vmatprep.subr.bf16.mxu0 0
  %1012 = vmatpush1.bf16.msra.mxu0 0
  %1013 = vmatprep.subr.bf16.mxu0 0
  %1014 = vmatpush1.bf16.msra.mxu0 0
  %1015 = vmatprep.subr.bf16.mxu0 0
  %1016 = vmatpush1.bf16.msra.mxu0 0
  %1017 = vmatprep.subr.bf16.mxu0 0
  %1018 = vmatpush1.bf16.msra.mxu0 0
  %1019 = vmatprep.subr.bf16.mxu0 0
  %1020 = vmatpush1.bf16.msra.mxu0 0
  %1021 = vmatprep.subr.bf16.mxu0 0
  %1022 = vmatpush1.bf16.msra.mxu0 0
  %1023 = vmatprep.subr.bf16.mxu0 0
  %1024 = vmatpush1.bf16.msra.mxu0 0
  %1025 = vmatprep.mubr.bf16.mxu0 0
  %1026 = vmatmul.mubr.bf16.gmra.mrb[0].mxu0 %v938
  %v1027 = vpop.f32.mrb[0].mxu0
  %v1028 = vadd.f32 %v935, %v1027
  %v1029 = vpop.f32.mrb[0].mxu0
  %v1030 = vadd.f32 %v935, %v1029
  %v1031 = vpop.f32.mrb[0].mxu0
  %v1032 = vpop.f32.mrb[0].mxu0
  %1033 = vdwg.mxu0
  %v1034 = vmax.f32 %v987, 0.0
  %v1035 = vmax.f32 %v989, 0.0
  %v1036 = vmax.f32 %v1028, 0.0
  %v1037 = vmax.f32 %v1030, 0.0
  %1038 = vrot.lane.b32.xlu0 %v1034, 17
  %v1039 = vpop.permute.xlu0 %1038
  %1040 = vrot.lane.b32.xlu0 %v1035, 17
  %v1041 = vpop.permute.xlu0 %1040
  %1042 = vrot.lane.b32.xlu0 %v1036, 17
  %v1043 = vpop.permute.xlu0 %1042
  %1044 = vrot.lane.b32.xlu0 %v1037, 17
  %v1045 = vpop.permute.xlu0 %1044
  %v1046 = vsel %vm94, %v1043, %v1045
  %v1047 = vsel %vm94, %v1041, %v1043
  %v1048 = vsel %vm94, %v1039, %v1041
  %v1049 = vsel %vm94, %v1045, %v1039
  %v1050 = vmul.f32 %v1049, %v103
  %v1051 = vmul.f32 %v1048, %v107
  %v1052 = vmul.f32 %v1047, %v111
  %v1053 = vmul.f32 %v1046, %v115
  %1054 = vrot.lane.b32.xlu0 %v1034, 16
  %v1055 = vpop.permute.xlu0 %1054
  %1056 = vrot.lane.b32.xlu0 %v1035, 16
  %v1057 = vpop.permute.xlu0 %1056
  %1058 = vrot.lane.b32.xlu0 %v1036, 16
  %v1059 = vpop.permute.xlu0 %1058
  %1060 = vrot.lane.b32.xlu0 %v1037, 16
  %v1061 = vpop.permute.xlu0 %1060
  %v1062 = vsel %vm132, %v1059, %v1061
  %v1063 = vsel %vm132, %v1057, %v1059
  %v1064 = vsel %vm132, %v1055, %v1057
  %v1065 = vsel %vm132, %v1061, %v1055
  %v1066 = vmul.f32 %v1065, %v141
  %v1067 = vmul.f32 %v1064, %v145
  %v1068 = vmul.f32 %v1063, %v149
  %v1069 = vmul.f32 %v1062, %v153
  %1070 = vrot.lane.b32.xlu0 %v1034, 15
  %v1071 = vpop.permute.xlu0 %1070
  %1072 = vrot.lane.b32.xlu0 %v1035, 15
  %v1073 = vpop.permute.xlu0 %1072
  %1074 = vrot.lane.b32.xlu0 %v1036, 15
  %v1075 = vpop.permute.xlu0 %1074
  %1076 = vrot.lane.b32.xlu0 %v1037, 15
  %v1077 = vpop.permute.xlu0 %1076
  %v1078 = vsel %vm170, %v1075, %v1077
  %v1079 = vsel %vm170, %v1073, %v1075
  %v1080 = vsel %vm170, %v1071, %v1073
  %v1081 = vsel %vm170, %v1077, %v1071
  %v1082 = vmul.f32 %v1081, %v179
  %v1083 = vmul.f32 %v1080, %v183
  %v1084 = vmul.f32 %v1079, %v187
  %v1085 = vmul.f32 %v1078, %v191
  %1086 = vrot.lane.b32.xlu0 %v1034, 1
  %v1087 = vpop.permute.xlu0 %1086
  %1088 = vrot.lane.b32.xlu0 %v1035, 1
  %v1089 = vpop.permute.xlu0 %1088
  %1090 = vrot.lane.b32.xlu0 %v1036, 1
  %v1091 = vpop.permute.xlu0 %1090
  %1092 = vrot.lane.b32.xlu0 %v1037, 1
  %v1093 = vpop.permute.xlu0 %1092
  %v1094 = vsel %vm208, %v1091, %v1093
  %v1095 = vsel %vm208, %v1089, %v1091
  %v1096 = vsel %vm208, %v1087, %v1089
  %v1097 = vsel %vm208, %v1093, %v1087
  %v1098 = vmul.f32 %v1097, %v217
  %v1099 = vmul.f32 %v1096, %v221
  %v1100 = vmul.f32 %v1095, %v225
  %v1101 = vmul.f32 %v1094, %v229
  %1102 = vrot.lane.b32.xlu0 %v1034, 127
  %v1103 = vpop.permute.xlu0 %1102
  %1104 = vrot.lane.b32.xlu0 %v1035, 127
  %v1105 = vpop.permute.xlu0 %1104
  %1106 = vrot.lane.b32.xlu0 %v1036, 127
  %v1107 = vpop.permute.xlu0 %1106
  %1108 = vrot.lane.b32.xlu0 %v1037, 127
  %v1109 = vpop.permute.xlu0 %1108
  %v1110 = vsel %vm246, %v1107, %v1109
  %v1111 = vsel %vm246, %v1105, %v1107
  %v1112 = vsel %vm246, %v1103, %v1105
  %v1113 = vsel %vm246, %v1109, %v1103
  %v1114 = vmul.f32 %v1112, %v255
  %v1115 = vmul.f32 %v1111, %v259
  %v1116 = vmul.f32 %v1110, %v263
  %v1117 = vmul.f32 %v1113, %v267
  %1118 = vrot.lane.b32.xlu0 %v1034, 113
  %v1119 = vpop.permute.xlu0 %1118
  %1120 = vrot.lane.b32.xlu0 %v1035, 113
  %v1121 = vpop.permute.xlu0 %1120
  %1122 = vrot.lane.b32.xlu0 %v1036, 113
  %v1123 = vpop.permute.xlu0 %1122
  %1124 = vrot.lane.b32.xlu0 %v1037, 113
  %v1125 = vpop.permute.xlu0 %1124
  %v1126 = vsel %vm284, %v1123, %v1125
  %v1127 = vsel %vm284, %v1121, %v1123
  %v1128 = vsel %vm284, %v1119, %v1121
  %v1129 = vsel %vm284, %v1125, %v1119
  %v1130 = vmul.f32 %v1128, %v293
  %v1131 = vmul.f32 %v1127, %v297
  %v1132 = vmul.f32 %v1126, %v301
  %v1133 = vmul.f32 %v1129, %v305
  %1134 = vrot.lane.b32.xlu0 %v1034, 112
  %v1135 = vpop.permute.xlu0 %1134
  %1136 = vrot.lane.b32.xlu0 %v1035, 112
  %v1137 = vpop.permute.xlu0 %1136
  %1138 = vrot.lane.b32.xlu0 %v1036, 112
  %v1139 = vpop.permute.xlu0 %1138
  %1140 = vrot.lane.b32.xlu0 %v1037, 112
  %v1141 = vpop.permute.xlu0 %1140
  %v1142 = vsel %vm322, %v1139, %v1141
  %v1143 = vsel %vm322, %v1137, %v1139
  %v1144 = vsel %vm322, %v1135, %v1137
  %v1145 = vsel %vm322, %v1141, %v1135
  %v1146 = vmul.f32 %v1144, %v331
  %v1147 = vmul.f32 %v1143, %v335
  %v1148 = vmul.f32 %v1142, %v339
  %v1149 = vmul.f32 %v1145, %v343
  %1150 = vrot.lane.b32.xlu0 %v1034, 111
  %v1151 = vpop.permute.xlu0 %1150
  %1152 = vrot.lane.b32.xlu0 %v1035, 111
  %v1153 = vpop.permute.xlu0 %1152
  %1154 = vrot.lane.b32.xlu0 %v1036, 111
  %v1155 = vpop.permute.xlu0 %1154
  %1156 = vrot.lane.b32.xlu0 %v1037, 111
  %v1157 = vpop.permute.xlu0 %1156
  %v1158 = vsel %vm360, %v1155, %v1157
  %v1159 = vsel %vm360, %v1153, %v1155
  %v1160 = vsel %vm360, %v1151, %v1153
  %v1161 = vsel %vm360, %v1157, %v1151
  %v1162 = vmul.f32 %v1160, %v369
  %v1163 = vmul.f32 %v1159, %v373
  %v1164 = vmul.f32 %v1158, %v377
  %v1165 = vmul.f32 %v1161, %v381
  %v1166 = vpack.c.bf16 %v1066, %v1050
  %v1167 = vpack.c.bf16 %v1067, %v1051
  %v1168 = vpack.c.bf16 %v1068, %v1052
  %v1169 = vpack.c.bf16 %v1069, %v1053
  %v1170 = vpack.c.bf16 %v1098, %v1082
  %v1171 = vpack.c.bf16 %v1099, %v1083
  %v1172 = vpack.c.bf16 %v1100, %v1084
  %v1173 = vpack.c.bf16 %v1101, %v1085
  %v1174 = vpack.c.bf16 %v1114, %v1034
  %v1175 = vpack.c.bf16 %v1115, %v1035
  %v1176 = vpack.c.bf16 %v1116, %v1036
  %v1177 = vpack.c.bf16 %v1117, %v1037
  %v1178 = vpack.c.bf16 %v1146, %v1130
  %v1179 = vpack.c.bf16 %v1147, %v1131
  %v1180 = vpack.c.bf16 %v1148, %v1132
  %v1181 = vpack.c.bf16 %v1149, %v1133
  %v1182 = vpack.c.bf16 %v1162, %v1162
  %v1183 = vpack.c.bf16 %v1163, %v1163
  %v1184 = vpack.c.bf16 %v1164, %v1164
  %v1185 = vpack.c.bf16 %v1165, %v1165
  %1187 = vset.pattern.permute.xlu0 0
  %1188 = vperm.xlu0 %1187, %v783
  %v1189 = vpop.permute.xlu0 %1188
  %v1192 = vsel %vm415, %v781, 0
  %v1195 = vsel %vm419, %v1182, 0
  %v1198 = vsel %vm419, %v1183, 0
  %v1201 = vsel %vm419, %v1184, 0
  %v1204 = vsel %vm419, %v1185, 0
  %1206 = vmatprep.subr.bf16.mxu0 %v1167
  %1207 = vmatpush1.bf16.msra.mxu0 %v1166
  %1208 = vmatprep.subr.bf16.mxu0 %v1171
  %1209 = vmatpush1.bf16.msra.mxu0 %v1170
  %1210 = vmatprep.subr.bf16.mxu0 %v1175
  %1211 = vmatpush1.bf16.msra.mxu0 %v1174
  %1212 = vmatprep.subr.bf16.mxu0 %v1179
  %1213 = vmatpush1.bf16.msra.mxu0 %v1178
  %1214 = vmatprep.subr.bf16.mxu0 %v1198
  %1215 = vmatpush1.bf16.msra.mxu0 %v1195
  %1216 = vmatprep.subr.bf16.mxu0 0
  %1217 = vmatpush1.bf16.msra.mxu0 0
  %1218 = vmatprep.subr.bf16.mxu0 0
  %1219 = vmatpush1.bf16.msra.mxu0 0
  %1220 = vmatprep.subr.bf16.mxu0 0
  %1221 = vmatpush1.bf16.msra.mxu0 0
  %1222 = vmatprep.subr.bf16.mxu0 0
  %1223 = vmatpush1.bf16.msra.mxu0 0
  %1224 = vmatprep.subr.bf16.mxu0 0
  %1225 = vmatpush1.bf16.msra.mxu0 0
  %1226 = vmatprep.subr.bf16.mxu0 0
  %1227 = vmatpush1.bf16.msra.mxu0 0
  %1228 = vmatprep.subr.bf16.mxu0 0
  %1229 = vmatpush1.bf16.msra.mxu0 0
  %1230 = vmatprep.subr.bf16.mxu0 0
  %1231 = vmatpush1.bf16.msra.mxu0 0
  %1232 = vmatprep.subr.bf16.mxu0 0
  %1233 = vmatpush1.bf16.msra.mxu0 0
  %1234 = vmatprep.subr.bf16.mxu0 0
  %1235 = vmatpush1.bf16.msra.mxu0 0
  %1236 = vmatprep.subr.bf16.mxu0 0
  %1237 = vmatpush1.bf16.msra.mxu0 0
  %1238 = vmatprep.mubr.bf16.mxu0 0
  %1239 = vmatmul.mubr.bf16.gmra.mrb[0].mxu0 %v1192
  %v1240 = vpop.f32.mrb[0].mxu0
  %v1241 = vadd.f32 %v1189, %v1240
  %v1242 = vpop.f32.mrb[0].mxu0
  %v1243 = vadd.f32 %v1189, %v1242
  %v1244 = vpop.f32.mrb[0].mxu0
  %v1245 = vpop.f32.mrb[0].mxu0
  %1246 = vdwg.mxu0
  %1247 = vmatprep.subr.bf16.mxu0 %v1169
  %1248 = vmatpush1.bf16.msra.mxu0 %v1168
  %1249 = vmatprep.subr.bf16.mxu0 %v1173
  %1250 = vmatpush1.bf16.msra.mxu0 %v1172
  %1251 = vmatprep.subr.bf16.mxu0 %v1177
  %1252 = vmatpush1.bf16.msra.mxu0 %v1176
  %1253 = vmatprep.subr.bf16.mxu0 %v1181
  %1254 = vmatpush1.bf16.msra.mxu0 %v1180
  %1255 = vmatprep.subr.bf16.mxu0 %v1204
  %1256 = vmatpush1.bf16.msra.mxu0 %v1201
  %1257 = vmatprep.subr.bf16.mxu0 0
  %1258 = vmatpush1.bf16.msra.mxu0 0
  %1259 = vmatprep.subr.bf16.mxu0 0
  %1260 = vmatpush1.bf16.msra.mxu0 0
  %1261 = vmatprep.subr.bf16.mxu0 0
  %1262 = vmatpush1.bf16.msra.mxu0 0
  %1263 = vmatprep.subr.bf16.mxu0 0
  %1264 = vmatpush1.bf16.msra.mxu0 0
  %1265 = vmatprep.subr.bf16.mxu0 0
  %1266 = vmatpush1.bf16.msra.mxu0 0
  %1267 = vmatprep.subr.bf16.mxu0 0
  %1268 = vmatpush1.bf16.msra.mxu0 0
  %1269 = vmatprep.subr.bf16.mxu0 0
  %1270 = vmatpush1.bf16.msra.mxu0 0
  %1271 = vmatprep.subr.bf16.mxu0 0
  %1272 = vmatpush1.bf16.msra.mxu0 0
  %1273 = vmatprep.subr.bf16.mxu0 0
  %1274 = vmatpush1.bf16.msra.mxu0 0
  %1275 = vmatprep.subr.bf16.mxu0 0
  %1276 = vmatpush1.bf16.msra.mxu0 0
  %1277 = vmatprep.subr.bf16.mxu0 0
  %1278 = vmatpush1.bf16.msra.mxu0 0
  %1279 = vmatprep.mubr.bf16.mxu0 0
  %1280 = vmatmul.mubr.bf16.gmra.mrb[0].mxu0 %v1192
  %v1281 = vpop.f32.mrb[0].mxu0
  %v1282 = vadd.f32 %v1189, %v1281
  %v1283 = vpop.f32.mrb[0].mxu0
  %v1284 = vadd.f32 %v1189, %v1283
  %v1285 = vpop.f32.mrb[0].mxu0
  %v1286 = vpop.f32.mrb[0].mxu0
  %1287 = vdwg.mxu0
  %v1288 = vadd.f32 %v1241, %v772
  %v1289 = vadd.f32 %v1243, %v773
  %v1290 = vadd.f32 %v1282, %v774
  %v1291 = vadd.f32 %v1284, %v775
  %v1292 = vmax.f32 %v1288, 0.0
  %v1293 = vmax.f32 %v1289, 0.0
  %v1294 = vmax.f32 %v1290, 0.0
  %v1295 = vmax.f32 %v1291, 0.0
  %v1296 = vld [vmem:[%s4] sm:$0xf]
  %v1297 = vld [vmem:[%s5] sm:$0xff]
  %s1298 = scalar_lea.vmem %s4, 4
  %v1299 = vld [vmem:[%s1298] sm:$0xf]
  %s1300 = scalar_lea.vmem %s5, 8
  %v1301 = vld [vmem:[%s1300] sm:$0xff]
  %1302 = vrot.lane.b32.xlu0 %v54, 9
  %v1303 = vpop.permute.xlu0 %1302
  %v1304 = vlaneseq
  %v1305 = vshrl.u32 %v1304, 7
  %v1306 = vsub.s32 0, %v1305
  %v1307 = vrot.slane %v70, %v1306
  %v1308 = vmul.f32 %v1303, %v1307
  %1309 = vrot.lane.b32.xlu0 %v54, 8
  %v1310 = vpop.permute.xlu0 %1309
  %v1311 = vlaneseq
  %v1312 = vshrl.u32 %v1311, 7
  %v1313 = vsub.s32 0, %v1312
  %v1314 = vrot.slane %v71, %v1313
  %v1315 = vmul.f32 %v1310, %v1314
  %1316 = vrot.lane.b32.xlu0 %v54, 7
  %v1317 = vpop.permute.xlu0 %1316
  %v1318 = vlaneseq
  %v1319 = vshrl.u32 %v1318, 7
  %v1320 = vsub.s32 0, %v1319
  %v1321 = vrot.slane %v72, %v1320
  %v1322 = vmul.f32 %v1317, %v1321
  %1323 = vrot.lane.b32.xlu0 %v54, 1
  %v1324 = vpop.permute.xlu0 %1323
  %v1325 = vlaneseq
  %v1326 = vshrl.u32 %v1325, 7
  %v1327 = vsub.s32 0, %v1326
  %v1328 = vrot.slane %v73, %v1327
  %v1329 = vmul.f32 %v1324, %v1328
  %1330 = vrot.lane.b32.xlu0 %v54, 127
  %v1331 = vpop.permute.xlu0 %1330
  %v1332 = vlaneseq
  %v1333 = vshrl.u32 %v1332, 7
  %v1334 = vsub.s32 0, %v1333
  %v1335 = vrot.slane %v74, %v1334
  %v1336 = vmul.f32 %v1331, %v1335
  %1337 = vrot.lane.b32.xlu0 %v54, 121
  %v1338 = vpop.permute.xlu0 %1337
  %v1339 = vlaneseq
  %v1340 = vshrl.u32 %v1339, 7
  %v1341 = vsub.s32 0, %v1340
  %v1342 = vrot.slane %v75, %v1341
  %v1343 = vmul.f32 %v1338, %v1342
  %1344 = vrot.lane.b32.xlu0 %v54, 120
  %v1345 = vpop.permute.xlu0 %1344
  %v1346 = vlaneseq
  %v1347 = vshrl.u32 %v1346, 7
  %v1348 = vsub.s32 0, %v1347
  %v1349 = vrot.slane %v76, %v1348
  %v1350 = vmul.f32 %v1345, %v1349
  %1351 = vrot.lane.b32.xlu0 %v54, 119
  %v1352 = vpop.permute.xlu0 %1351
  %v1353 = vlaneseq
  %v1354 = vshrl.u32 %v1353, 7
  %v1355 = vsub.s32 0, %v1354
  %v1356 = vrot.slane %v77, %v1355
  %v1357 = vmul.f32 %v1352, %v1356
  %v1358 = vpack.c.bf16 %v1315, %v1308
  %v1359 = vpack.c.bf16 %v1329, %v1322
  %v1360 = vpack.c.bf16 %v1336, %v54
  %v1361 = vpack.c.bf16 %v1350, %v1343
  %v1362 = vpack.c.bf16 %v1357, %v1357
  %1364 = vset.pattern.permute.xlu0 0
  %1365 = vperm.xlu0 %1364, %v1297
  %v1366 = vpop.permute.xlu0 %1365
  %v1369 = vsel %vm415, %v1296, 0
  %v1372 = vsel %vm419, %v1362, 0
  %1374 = vmatprep.subr.bf16.mxu0 0
  %1375 = vmatpush1.bf16.msra.mxu0 %v1358
  %1376 = vmatprep.subr.bf16.mxu0 0
  %1377 = vmatpush1.bf16.msra.mxu0 %v1359
  %1378 = vmatprep.subr.bf16.mxu0 0
  %1379 = vmatpush1.bf16.msra.mxu0 %v1360
  %1380 = vmatprep.subr.bf16.mxu0 0
  %1381 = vmatpush1.bf16.msra.mxu0 %v1361
  %1382 = vmatprep.subr.bf16.mxu0 0
  %1383 = vmatpush1.bf16.msra.mxu0 %v1372
  %1384 = vmatprep.subr.bf16.mxu0 0
  %1385 = vmatpush1.bf16.msra.mxu0 0
  %1386 = vmatprep.subr.bf16.mxu0 0
  %1387 = vmatpush1.bf16.msra.mxu0 0
  %1388 = vmatprep.subr.bf16.mxu0 0
  %1389 = vmatpush1.bf16.msra.mxu0 0
  %1390 = vmatprep.subr.bf16.mxu0 0
  %1391 = vmatpush1.bf16.msra.mxu0 0
  %1392 = vmatprep.subr.bf16.mxu0 0
  %1393 = vmatpush1.bf16.msra.mxu0 0
  %1394 = vmatprep.subr.bf16.mxu0 0
  %1395 = vmatpush1.bf16.msra.mxu0 0
  %1396 = vmatprep.subr.bf16.mxu0 0
  %1397 = vmatpush1.bf16.msra.mxu0 0
  %1398 = vmatprep.subr.bf16.mxu0 0
  %1399 = vmatpush1.bf16.msra.mxu0 0
  %1400 = vmatprep.subr.bf16.mxu0 0
  %1401 = vmatpush1.bf16.msra.mxu0 0
  %1402 = vmatprep.subr.bf16.mxu0 0
  %1403 = vmatpush1.bf16.msra.mxu0 0
  %1404 = vmatprep.subr.bf16.mxu0 0
  %1405 = vmatpush1.bf16.msra.mxu0 0
  %1406 = vmatprep.mubr.bf16.mxu0 0
  %1407 = vmatmul.mubr.bf16.gmra.mrb[0].mxu0 %v1369
  %v1408 = vpop.f32.mrb[0].mxu0
  %v1409 = vadd.f32 %v1366, %v1408
  %v1410 = vpop.f32.mrb[0].mxu0
  %v1411 = vpop.f32.mrb[0].mxu0
  %v1412 = vpop.f32.mrb[0].mxu0
  %1413 = vdwg.mxu0
  %v1414 = vmax.f32 %v1409, 0.0
  %1415 = vrot.lane.b32.xlu0 %v1414, 9
  %v1416 = vpop.permute.xlu0 %1415
  %v1417 = vmul.f32 %v1416, %v1307
  %1418 = vrot.lane.b32.xlu0 %v1414, 8
  %v1419 = vpop.permute.xlu0 %1418
  %v1420 = vmul.f32 %v1419, %v1314
  %1421 = vrot.lane.b32.xlu0 %v1414, 7
  %v1422 = vpop.permute.xlu0 %1421
  %v1423 = vmul.f32 %v1422, %v1321
  %1424 = vrot.lane.b32.xlu0 %v1414, 1
  %v1425 = vpop.permute.xlu0 %1424
  %v1426 = vmul.f32 %v1425, %v1328
  %1427 = vrot.lane.b32.xlu0 %v1414, 127
  %v1428 = vpop.permute.xlu0 %1427
  %v1429 = vmul.f32 %v1428, %v1335
  %1430 = vrot.lane.b32.xlu0 %v1414, 121
  %v1431 = vpop.permute.xlu0 %1430
  %v1432 = vmul.f32 %v1431, %v1342
  %1433 = vrot.lane.b32.xlu0 %v1414, 120
  %v1434 = vpop.permute.xlu0 %1433
  %v1435 = vmul.f32 %v1434, %v1349
  %1436 = vrot.lane.b32.xlu0 %v1414, 119
  %v1437 = vpop.permute.xlu0 %1436
  %v1438 = vmul.f32 %v1437, %v1356
  %v1439 = vpack.c.bf16 %v1420, %v1417
  %v1440 = vpack.c.bf16 %v1426, %v1423
  %v1441 = vpack.c.bf16 %v1429, %v1414
  %v1442 = vpack.c.bf16 %v1435, %v1432
  %v1443 = vpack.c.bf16 %v1438, %v1438
  %1445 = vset.pattern.permute.xlu0 0
  %1446 = vperm.xlu0 %1445, %v1301
  %v1447 = vpop.permute.xlu0 %1446
  %v1450 = vsel %vm415, %v1299, 0
  %v1453 = vsel %vm419, %v1443, 0
  %1455 = vmatprep.subr.bf16.mxu0 0
  %1456 = vmatpush1.bf16.msra.mxu0 %v1439
  %1457 = vmatprep.subr.bf16.mxu0 0
  %1458 = vmatpush1.bf16.msra.mxu0 %v1440
  %1459 = vmatprep.subr.bf16.mxu0 0
  %1460 = vmatpush1.bf16.msra.mxu0 %v1441
  %1461 = vmatprep.subr.bf16.mxu0 0
  %1462 = vmatpush1.bf16.msra.mxu0 %v1442
  %1463 = vmatprep.subr.bf16.mxu0 0
  %1464 = vmatpush1.bf16.msra.mxu0 %v1453
  %1465 = vmatprep.subr.bf16.mxu0 0
  %1466 = vmatpush1.bf16.msra.mxu0 0
  %1467 = vmatprep.subr.bf16.mxu0 0
  %1468 = vmatpush1.bf16.msra.mxu0 0
  %1469 = vmatprep.subr.bf16.mxu0 0
  %1470 = vmatpush1.bf16.msra.mxu0 0
  %1471 = vmatprep.subr.bf16.mxu0 0
  %1472 = vmatpush1.bf16.msra.mxu0 0
  %1473 = vmatprep.subr.bf16.mxu0 0
  %1474 = vmatpush1.bf16.msra.mxu0 0
  %1475 = vmatprep.subr.bf16.mxu0 0
  %1476 = vmatpush1.bf16.msra.mxu0 0
  %1477 = vmatprep.subr.bf16.mxu0 0
  %1478 = vmatpush1.bf16.msra.mxu0 0
  %1479 = vmatprep.subr.bf16.mxu0 0
  %1480 = vmatpush1.bf16.msra.mxu0 0
  %1481 = vmatprep.subr.bf16.mxu0 0
  %1482 = vmatpush1.bf16.msra.mxu0 0
  %1483 = vmatprep.subr.bf16.mxu0 0
  %1484 = vmatpush1.bf16.msra.mxu0 0
  %1485 = vmatprep.subr.bf16.mxu0 0
  %1486 = vmatpush1.bf16.msra.mxu0 0
  %1487 = vmatprep.mubr.bf16.mxu0 0
  %1488 = vmatmul.mubr.bf16.gmra.mrb[0].mxu0 %v1450
  %v1489 = vpop.f32.mrb[0].mxu0
  %v1490 = vadd.f32 %v1447, %v1489
  %v1491 = vpop.f32.mrb[0].mxu0
  %v1492 = vpop.f32.mrb[0].mxu0
  %v1493 = vpop.f32.mrb[0].mxu0
  %1494 = vdwg.mxu0
  %v1495 = vadd.f32 %v1490, %v54
  %v1496 = vmax.f32 %v1495, 0.0
  %s1497 = scalar_lea.vmem %s4, 8
  %v1498 = vld [vmem:[%s1497] sm:$0xf]
  %s1499 = scalar_lea.vmem %s5, 16
  %v1500 = vld [vmem:[%s1499] sm:$0xff]
  %s1501 = scalar_lea.vmem %s4, 12
  %v1502 = vld [vmem:[%s1501] sm:$0xf]
  %s1503 = scalar_lea.vmem %s5, 24
  %v1504 = vld [vmem:[%s1503] sm:$0xff]
  %1505 = vrot.lane.b32.xlu0 %v1496, 9
  %v1506 = vpop.permute.xlu0 %1505
  %v1507 = vmul.f32 %v1506, %v1307
  %1508 = vrot.lane.b32.xlu0 %v1496, 8
  %v1509 = vpop.permute.xlu0 %1508
  %v1510 = vmul.f32 %v1509, %v1314
  %1511 = vrot.lane.b32.xlu0 %v1496, 7
  %v1512 = vpop.permute.xlu0 %1511
  %v1513 = vmul.f32 %v1512, %v1321
  %1514 = vrot.lane.b32.xlu0 %v1496, 1
  %v1515 = vpop.permute.xlu0 %1514
  %v1516 = vmul.f32 %v1515, %v1328
  %1517 = vrot.lane.b32.xlu0 %v1496, 127
  %v1518 = vpop.permute.xlu0 %1517
  %v1519 = vmul.f32 %v1518, %v1335
  %1520 = vrot.lane.b32.xlu0 %v1496, 121
  %v1521 = vpop.permute.xlu0 %1520
  %v1522 = vmul.f32 %v1521, %v1342
  %1523 = vrot.lane.b32.xlu0 %v1496, 120
  %v1524 = vpop.permute.xlu0 %1523
  %v1525 = vmul.f32 %v1524, %v1349
  %1526 = vrot.lane.b32.xlu0 %v1496, 119
  %v1527 = vpop.permute.xlu0 %1526
  %v1528 = vmul.f32 %v1527, %v1356
  %v1529 = vpack.c.bf16 %v1510, %v1507
  %v1530 = vpack.c.bf16 %v1516, %v1513
  %v1531 = vpack.c.bf16 %v1519, %v1496
  %v1532 = vpack.c.bf16 %v1525, %v1522
  %v1533 = vpack.c.bf16 %v1528, %v1528
  %1535 = vset.pattern.permute.xlu0 0
  %1536 = vperm.xlu0 %1535, %v1500
  %v1537 = vpop.permute.xlu0 %1536
  %v1540 = vsel %vm415, %v1498, 0
  %v1543 = vsel %vm419, %v1533, 0
  %1545 = vmatprep.subr.bf16.mxu0 0
  %1546 = vmatpush1.bf16.msra.mxu0 %v1529
  %1547 = vmatprep.subr.bf16.mxu0 0
  %1548 = vmatpush1.bf16.msra.mxu0 %v1530
  %1549 = vmatprep.subr.bf16.mxu0 0
  %1550 = vmatpush1.bf16.msra.mxu0 %v1531
  %1551 = vmatprep.subr.bf16.mxu0 0
  %1552 = vmatpush1.bf16.msra.mxu0 %v1532
  %1553 = vmatprep.subr.bf16.mxu0 0
  %1554 = vmatpush1.bf16.msra.mxu0 %v1543
  %1555 = vmatprep.subr.bf16.mxu0 0
  %1556 = vmatpush1.bf16.msra.mxu0 0
  %1557 = vmatprep.subr.bf16.mxu0 0
  %1558 = vmatpush1.bf16.msra.mxu0 0
  %1559 = vmatprep.subr.bf16.mxu0 0
  %1560 = vmatpush1.bf16.msra.mxu0 0
  %1561 = vmatprep.subr.bf16.mxu0 0
  %1562 = vmatpush1.bf16.msra.mxu0 0
  %1563 = vmatprep.subr.bf16.mxu0 0
  %1564 = vmatpush1.bf16.msra.mxu0 0
  %1565 = vmatprep.subr.bf16.mxu0 0
  %1566 = vmatpush1.bf16.msra.mxu0 0
  %1567 = vmatprep.subr.bf16.mxu0 0
  %1568 = vmatpush1.bf16.msra.mxu0 0
  %1569 = vmatprep.subr.bf16.mxu0 0
  %1570 = vmatpush1.bf16.msra.mxu0 0
  %1571 = vmatprep.subr.bf16.mxu0 0
  %1572 = vmatpush1.bf16.msra.mxu0 0
  %1573 = vmatprep.subr.bf16.mxu0 0
  %1574 = vmatpush1.bf16.msra.mxu0 0
  %1575 = vmatprep.subr.bf16.mxu0 0
  %1576 = vmatpush1.bf16.msra.mxu0 0
  %1577 = vmatprep.mubr.bf16.mxu0 0
  %1578 = vmatmul.mubr.bf16.gmra.mrb[0].mxu0 %v1540
  %v1579 = vpop.f32.mrb[0].mxu0
  %v1580 = vadd.f32 %v1537, %v1579
  %v1581 = vpop.f32.mrb[0].mxu0
  %v1582 = vpop.f32.mrb[0].mxu0
  %v1583 = vpop.f32.mrb[0].mxu0
  %1584 = vdwg.mxu0
  %v1585 = vmax.f32 %v1580, 0.0
  %1586 = vrot.lane.b32.xlu0 %v1585, 9
  %v1587 = vpop.permute.xlu0 %1586
  %v1588 = vmul.f32 %v1587, %v1307
  %1589 = vrot.lane.b32.xlu0 %v1585, 8
  %v1590 = vpop.permute.xlu0 %1589
  %v1591 = vmul.f32 %v1590, %v1314
  %1592 = vrot.lane.b32.xlu0 %v1585, 7
  %v1593 = vpop.permute.xlu0 %1592
  %v1594 = vmul.f32 %v1593, %v1321
  %1595 = vrot.lane.b32.xlu0 %v1585, 1
  %v1596 = vpop.permute.xlu0 %1595
  %v1597 = vmul.f32 %v1596, %v1328
  %1598 = vrot.lane.b32.xlu0 %v1585, 127
  %v1599 = vpop.permute.xlu0 %1598
  %v1600 = vmul.f32 %v1599, %v1335
  %1601 = vrot.lane.b32.xlu0 %v1585, 121
  %v1602 = vpop.permute.xlu0 %1601
  %v1603 = vmul.f32 %v1602, %v1342
  %1604 = vrot.lane.b32.xlu0 %v1585, 120
  %v1605 = vpop.permute.xlu0 %1604
  %v1606 = vmul.f32 %v1605, %v1349
  %1607 = vrot.lane.b32.xlu0 %v1585, 119
  %v1608 = vpop.permute.xlu0 %1607
  %v1609 = vmul.f32 %v1608, %v1356
  %v1610 = vpack.c.bf16 %v1591, %v1588
  %v1611 = vpack.c.bf16 %v1597, %v1594
  %v1612 = vpack.c.bf16 %v1600, %v1585
  %v1613 = vpack.c.bf16 %v1606, %v1603
  %v1614 = vpack.c.bf16 %v1609, %v1609
  %1616 = vset.pattern.permute.xlu0 0
  %1617 = vperm.xlu0 %1616, %v1504
  %v1618 = vpop.permute.xlu0 %1617
  %v1621 = vsel %vm415, %v1502, 0
  %v1624 = vsel %vm419, %v1614, 0
  %1626 = vmatprep.subr.bf16.mxu0 0
  %1627 = vmatpush1.bf16.msra.mxu0 %v1610
  %1628 = vmatprep.subr.bf16.mxu0 0
  %1629 = vmatpush1.bf16.msra.mxu0 %v1611
  %1630 = vmatprep.subr.bf16.mxu0 0
  %1631 = vmatpush1.bf16.msra.mxu0 %v1612
  %1632 = vmatprep.subr.bf16.mxu0 0
  %1633 = vmatpush1.bf16.msra.mxu0 %v1613
  %1634 = vmatprep.subr.bf16.mxu0 0
  %1635 = vmatpush1.bf16.msra.mxu0 %v1624
  %1636 = vmatprep.subr.bf16.mxu0 0
  %1637 = vmatpush1.bf16.msra.mxu0 0
  %1638 = vmatprep.subr.bf16.mxu0 0
  %1639 = vmatpush1.bf16.msra.mxu0 0
  %1640 = vmatprep.subr.bf16.mxu0 0
  %1641 = vmatpush1.bf16.msra.mxu0 0
  %1642 = vmatprep.subr.bf16.mxu0 0
  %1643 = vmatpush1.bf16.msra.mxu0 0
  %1644 = vmatprep.subr.bf16.mxu0 0
  %1645 = vmatpush1.bf16.msra.mxu0 0
  %1646 = vmatprep.subr.bf16.mxu0 0
  %1647 = vmatpush1.bf16.msra.mxu0 0
  %1648 = vmatprep.subr.bf16.mxu0 0
  %1649 = vmatpush1.bf16.msra.mxu0 0
  %1650 = vmatprep.subr.bf16.mxu0 0
  %1651 = vmatpush1.bf16.msra.mxu0 0
  %1652 = vmatprep.subr.bf16.mxu0 0
  %1653 = vmatpush1.bf16.msra.mxu0 0
  %1654 = vmatprep.subr.bf16.mxu0 0
  %1655 = vmatpush1.bf16.msra.mxu0 0
  %1656 = vmatprep.subr.bf16.mxu0 0
  %1657 = vmatpush1.bf16.msra.mxu0 0
  %1658 = vmatprep.mubr.bf16.mxu0 0
  %1659 = vmatmul.mubr.bf16.gmra.mrb[0].mxu0 %v1621
  %v1660 = vpop.f32.mrb[0].mxu0
  %v1661 = vadd.f32 %v1618, %v1660
  %v1662 = vpop.f32.mrb[0].mxu0
  %v1663 = vpop.f32.mrb[0].mxu0
  %v1664 = vpop.f32.mrb[0].mxu0
  %1665 = vdwg.mxu0
  %v1666 = vadd.f32 %v1661, %v1496
  %v1667 = vmax.f32 %v1666, 0.0
  %v1668 = vld [vmem:[%s6] sm:$0xf]
  %v1669 = vpack.c.bf16 %v1667, %v1667
  %v1670 = vld [vmem:[%s7] sm:$0xff]
  %1672 = vset.pattern.permute.xlu0 0
  %1673 = vperm.xlu0 %1672, %v1670
  %v1674 = vpop.permute.xlu0 %1673
  %vm1676 = vcmask 64512
  %v1678 = vsel %vm1676, %v1668, 0
  %v1681 = vsel %vm419, %v1669, 0
  %1683 = vmatprep.subr.bf16.mxu0 0
  %1684 = vmatpush1.bf16.msra.mxu0 %v1681
  %1685 = vmatprep.subr.bf16.mxu0 0
  %1686 = vmatpush1.bf16.msra.mxu0 0
  %1687 = vmatprep.subr.bf16.mxu0 0
  %1688 = vmatpush1.bf16.msra.mxu0 0
  %1689 = vmatprep.subr.bf16.mxu0 0
  %1690 = vmatpush1.bf16.msra.mxu0 0
  %1691 = vmatprep.subr.bf16.mxu0 0
  %1692 = vmatpush1.bf16.msra.mxu0 0
  %1693 = vmatprep.subr.bf16.mxu0 0
  %1694 = vmatpush1.bf16.msra.mxu0 0
  %1695 = vmatprep.subr.bf16.mxu0 0
  %1696 = vmatpush1.bf16.msra.mxu0 0
  %1697 = vmatprep.subr.bf16.mxu0 0
  %1698 = vmatpush1.bf16.msra.mxu0 0
  %1699 = vmatprep.subr.bf16.mxu0 0
  %1700 = vmatpush1.bf16.msra.mxu0 0
  %1701 = vmatprep.subr.bf16.mxu0 0
  %1702 = vmatpush1.bf16.msra.mxu0 0
  %1703 = vmatprep.subr.bf16.mxu0 0
  %1704 = vmatpush1.bf16.msra.mxu0 0
  %1705 = vmatprep.subr.bf16.mxu0 0
  %1706 = vmatpush1.bf16.msra.mxu0 0
  %1707 = vmatprep.subr.bf16.mxu0 0
  %1708 = vmatpush1.bf16.msra.mxu0 0
  %1709 = vmatprep.subr.bf16.mxu0 0
  %1710 = vmatpush1.bf16.msra.mxu0 0
  %1711 = vmatprep.subr.bf16.mxu0 0
  %1712 = vmatpush1.bf16.msra.mxu0 0
  %1713 = vmatprep.subr.bf16.mxu0 0
  %1714 = vmatpush1.bf16.msra.mxu0 0
  %1715 = vmatprep.mubr.bf16.mxu0 0
  %1716 = vmatmul.mubr.bf16.gmra.mrb[0].mxu0 %v1678
  %v1717 = vpop.f32.mrb[0].mxu0
  %v1718 = vadd.f32 %v1674, %v1717
  %v1719 = vpop.f32.mrb[0].mxu0
  %v1720 = vpop.f32.mrb[0].mxu0
  %v1721 = vpop.f32.mrb[0].mxu0
  %1722 = vdwg.mxu0
  %v1723 = vpack.c.bf16 %v1718, %v1718
  %v1724 = vld [vmem:[%s10] sm:$0xff]
  %v1725 = vld [vmem:[%s10 + $0x8] sm:$0xff]
  %v1726 = vld [vmem:[%s10 + $0x10] sm:$0xff]
  %v1727 = vld [vmem:[%s10 + $0x18] sm:$0xff]
  %v1728 = vld [vmem:[%s10 + $0x20] sm:$0xff]
  %v1729 = vld [vmem:[%s10 + $0x28] sm:$0xff]
  %v1730 = vld [vmem:[%s10 + $0x30] sm:$0xff]
  %v1731 = vld [vmem:[%s10 + $0x38] sm:$0xff]
  %v1732 = vld [vmem:[%s10 + $0x40] sm:$0xff]
  %v1733 = vld [vmem:[%s10 + $0x48] sm:$0xff]
  %v1734 = vld [vmem:[%s10 + $0x50] sm:$0xff]
  %v1735 = vld [vmem:[%s10 + $0x58] sm:$0xff]
  %v1736 = vld [vmem:[%s10 + $0x60] sm:$0xff]
  %v1737 = vld [vmem:[%s10 + $0x68] sm:$0xff]
  %v1738 = vld [vmem:[%s10 + $0x70] sm:$0xff]
  %v1739 = vld [vmem:[%s10 + $0x78] sm:$0xff]
  %v1740 = vld [vmem:[%s10 + $0x80] sm:$0xff]
  %v1741 = vld [vmem:[%s10 + $0x88] sm:$0xff]
  %v1742 = vld [vmem:[%s10 + $0x90] sm:$0xff]
  %v1743 = vld [vmem:[%s10 + $0x98] sm:$0xff]
  %v1744 = vld [vmem:[%s10 + $0xa0] sm:$0xff]
  %v1745 = vld [vmem:[%s10 + $0xa8] sm:$0xff]
  %v1746 = vld [vmem:[%s10 + $0xb0] sm:$0xff]
  %v1747 = vld [vmem:[%s10 + $0xb8] sm:$0xff]
  %v1748 = vld [vmem:[%s10 + $0xc0] sm:$0xff]
  %v1749 = vld [vmem:[%s10 + $0xc8] sm:$0xff]
  %v1750 = vld [vmem:[%s10 + $0xd0] sm:$0xff]
  %v1751 = vld [vmem:[%s10 + $0xd8] sm:$0xff]
  %v1752 = vld [vmem:[%s10 + $0xe0] sm:$0xff]
  %v1753 = vld [vmem:[%s10 + $0xe8] sm:$0xff]
  %v1754 = vld [vmem:[%s10 + $0xf0] sm:$0xff]
  %v1755 = vld [vmem:[%s10 + $0xf8] sm:$0xff]
  %v1788 = vunpack.c.l.b16 %v1724
  %v1789 = vunpack.c.h.b16 %v1724
  %v1790 = vunpack.c.l.b16 %v1725
  %v1791 = vunpack.c.h.b16 %v1725
  %v1792 = vunpack.c.l.b16 %v1726
  %v1793 = vunpack.c.h.b16 %v1726
  %v1794 = vunpack.c.l.b16 %v1727
  %v1795 = vunpack.c.h.b16 %v1727
  %v1796 = vunpack.c.l.b16 %v1728
  %v1797 = vunpack.c.h.b16 %v1728
  %v1798 = vunpack.c.l.b16 %v1729
  %v1799 = vunpack.c.h.b16 %v1729
  %v1800 = vunpack.c.l.b16 %v1730
  %v1801 = vunpack.c.h.b16 %v1730
  %v1802 = vunpack.c.l.b16 %v1731
  %v1803 = vunpack.c.h.b16 %v1731
  %v1804 = vunpack.c.l.b16 %v1732
  %v1805 = vunpack.c.h.b16 %v1732
  %v1806 = vunpack.c.l.b16 %v1733
  %v1807 = vunpack.c.h.b16 %v1733
  %v1808 = vunpack.c.l.b16 %v1734
  %v1809 = vunpack.c.h.b16 %v1734
  %v1810 = vunpack.c.l.b16 %v1735
  %v1811 = vunpack.c.h.b16 %v1735
  %v1812 = vunpack.c.l.b16 %v1736
  %v1813 = vunpack.c.h.b16 %v1736
  %v1814 = vunpack.c.l.b16 %v1737
  %v1815 = vunpack.c.h.b16 %v1737
  %v1816 = vunpack.c.l.b16 %v1738
  %v1817 = vunpack.c.h.b16 %v1738
  %v1818 = vunpack.c.l.b16 %v1739
  %v1819 = vunpack.c.h.b16 %v1739
  %v1820 = vunpack.c.l.b16 %v1740
  %v1821 = vunpack.c.h.b16 %v1740
  %v1822 = vunpack.c.l.b16 %v1741
  %v1823 = vunpack.c.h.b16 %v1741
  %v1824 = vunpack.c.l.b16 %v1742
  %v1825 = vunpack.c.h.b16 %v1742
  %v1826 = vunpack.c.l.b16 %v1743
  %v1827 = vunpack.c.h.b16 %v1743
  %v1828 = vunpack.c.l.b16 %v1744
  %v1829 = vunpack.c.h.b16 %v1744
  %v1830 = vunpack.c.l.b16 %v1745
  %v1831 = vunpack.c.h.b16 %v1745
  %v1832 = vunpack.c.l.b16 %v1746
  %v1833 = vunpack.c.h.b16 %v1746
  %v1834 = vunpack.c.l.b16 %v1747
  %v1835 = vunpack.c.h.b16 %v1747
  %v1836 = vunpack.c.l.b16 %v1748
  %v1837 = vunpack.c.h.b16 %v1748
  %v1838 = vunpack.c.l.b16 %v1749
  %v1839 = vunpack.c.h.b16 %v1749
  %v1840 = vunpack.c.l.b16 %v1750
  %v1841 = vunpack.c.h.b16 %v1750
  %v1842 = vunpack.c.l.b16 %v1751
  %v1843 = vunpack.c.h.b16 %v1751
  %v1844 = vunpack.c.l.b16 %v1752
  %v1845 = vunpack.c.h.b16 %v1752
  %v1846 = vunpack.c.l.b16 %v1753
  %v1847 = vunpack.c.h.b16 %v1753
  %v1848 = vunpack.c.l.b16 %v1754
  %v1849 = vunpack.c.h.b16 %v1754
  %v1850 = vunpack.c.l.b16 %v1755
  %v1851 = vunpack.c.h.b16 %v1755
  %v1852 = vpack.c.b16 %v1792, %v1788
  %v1853 = vpack.c.b16 %v1793, %v1789
  %v1854 = vpack.c.b16 %v1794, %v1790
  %v1855 = vpack.c.b16 %v1795, %v1791
  %v1856 = vpack.c.b16 %v1800, %v1796
  %v1857 = vpack.c.b16 %v1801, %v1797
  %v1858 = vpack.c.b16 %v1802, %v1798
  %v1859 = vpack.c.b16 %v1803, %v1799
  %v1860 = vpack.c.b16 %v1808, %v1804
  %v1861 = vpack.c.b16 %v1809, %v1805
  %v1862 = vpack.c.b16 %v1810, %v1806
  %v1863 = vpack.c.b16 %v1811, %v1807
  %v1864 = vpack.c.b16 %v1816, %v1812
  %v1865 = vpack.c.b16 %v1817, %v1813
  %v1866 = vpack.c.b16 %v1818, %v1814
  %v1867 = vpack.c.b16 %v1819, %v1815
  %v1868 = vpack.c.b16 %v1824, %v1820
  %v1869 = vpack.c.b16 %v1825, %v1821
  %v1870 = vpack.c.b16 %v1826, %v1822
  %v1871 = vpack.c.b16 %v1827, %v1823
  %v1872 = vpack.c.b16 %v1832, %v1828
  %v1873 = vpack.c.b16 %v1833, %v1829
  %v1874 = vpack.c.b16 %v1834, %v1830
  %v1875 = vpack.c.b16 %v1835, %v1831
  %v1876 = vpack.c.b16 %v1840, %v1836
  %v1877 = vpack.c.b16 %v1841, %v1837
  %v1878 = vpack.c.b16 %v1842, %v1838
  %v1879 = vpack.c.b16 %v1843, %v1839
  %v1880 = vpack.c.b16 %v1848, %v1844
  %v1881 = vpack.c.b16 %v1849, %v1845
  %v1882 = vpack.c.b16 %v1850, %v1846
  %v1883 = vpack.c.b16 %v1851, %v1847
  %1916 = vmatprep.subr.bf16.mxu0 %v1853
  %1917 = vmatpush1.bf16.msra.mxu0 %v1852
  %1918 = vmatprep.subr.bf16.mxu0 %v1857
  %1919 = vmatpush1.bf16.msra.mxu0 %v1856
  %1920 = vmatprep.subr.bf16.mxu0 %v1861
  %1921 = vmatpush1.bf16.msra.mxu0 %v1860
  %1922 = vmatprep.subr.bf16.mxu0 %v1865
  %1923 = vmatpush1.bf16.msra.mxu0 %v1864
  %1924 = vmatprep.subr.bf16.mxu0 %v1869
  %1925 = vmatpush1.bf16.msra.mxu0 %v1868
  %1926 = vmatprep.subr.bf16.mxu0 %v1873
  %1927 = vmatpush1.bf16.msra.mxu0 %v1872
  %1928 = vmatprep.subr.bf16.mxu0 %v1877
  %1929 = vmatpush1.bf16.msra.mxu0 %v1876
  %1930 = vmatprep.subr.bf16.mxu0 %v1881
  %1931 = vmatpush1.bf16.msra.mxu0 %v1880
  %1932 = vmatprep.subr.bf16.mxu0 0
  %1933 = vmatpush1.bf16.msra.mxu0 0
  %1934 = vmatprep.subr.bf16.mxu0 0
  %1935 = vmatpush1.bf16.msra.mxu0 0
  %1936 = vmatprep.subr.bf16.mxu0 0
  %1937 = vmatpush1.bf16.msra.mxu0 0
  %1938 = vmatprep.subr.bf16.mxu0 0
  %1939 = vmatpush1.bf16.msra.mxu0 0
  %1940 = vmatprep.subr.bf16.mxu0 0
  %1941 = vmatpush1.bf16.msra.mxu0 0
  %1942 = vmatprep.subr.bf16.mxu0 0
  %1943 = vmatpush1.bf16.msra.mxu0 0
  %1944 = vmatprep.subr.bf16.mxu0 0
  %1945 = vmatpush1.bf16.msra.mxu0 0
  %1946 = vmatprep.subr.bf16.mxu0 0
  %1947 = vmatpush1.bf16.msra.mxu0 0
  %1948 = vmatprep.mubr.bf16.mxu0 0
  %1949 = vmatmul.mubr.bf16.gmra.mrb[0].mxu0 %v1723
  %v1950 = vpop.f32.mrb[0].mxu0
  %v1951 = vadd.f32 0.0, %v1950
  %v1952 = vpop.f32.mrb[0].mxu0
  %v1953 = vadd.f32 0.0, %v1952
  %v1954 = vpop.f32.mrb[0].mxu0
  %v1955 = vpop.f32.mrb[0].mxu0
  %1956 = vdwg.mxu0
  %1957 = vmatprep.subr.bf16.mxu0 %v1855
  %1958 = vmatpush1.bf16.msra.mxu0 %v1854
  %1959 = vmatprep.subr.bf16.mxu0 %v1859
  %1960 = vmatpush1.bf16.msra.mxu0 %v1858
  %1961 = vmatprep.subr.bf16.mxu0 %v1863
  %1962 = vmatpush1.bf16.msra.mxu0 %v1862
  %1963 = vmatprep.subr.bf16.mxu0 %v1867
  %1964 = vmatpush1.bf16.msra.mxu0 %v1866
  %1965 = vmatprep.subr.bf16.mxu0 %v1871
  %1966 = vmatpush1.bf16.msra.mxu0 %v1870
  %1967 = vmatprep.subr.bf16.mxu0 %v1875
  %1968 = vmatpush1.bf16.msra.mxu0 %v1874
  %1969 = vmatprep.subr.bf16.mxu0 %v1879
  %1970 = vmatpush1.bf16.msra.mxu0 %v1878
  %1971 = vmatprep.subr.bf16.mxu0 %v1883
  %1972 = vmatpush1.bf16.msra.mxu0 %v1882
  %1973 = vmatprep.subr.bf16.mxu0 0
  %1974 = vmatpush1.bf16.msra.mxu0 0
  %1975 = vmatprep.subr.bf16.mxu0 0
  %1976 = vmatpush1.bf16.msra.mxu0 0
  %1977 = vmatprep.subr.bf16.mxu0 0
  %1978 = vmatpush1.bf16.msra.mxu0 0
  %1979 = vmatprep.subr.bf16.mxu0 0
  %1980 = vmatpush1.bf16.msra.mxu0 0
  %1981 = vmatprep.subr.bf16.mxu0 0
  %1982 = vmatpush1.bf16.msra.mxu0 0
  %1983 = vmatprep.subr.bf16.mxu0 0
  %1984 = vmatpush1.bf16.msra.mxu0 0
  %1985 = vmatprep.subr.bf16.mxu0 0
  %1986 = vmatpush1.bf16.msra.mxu0 0
  %1987 = vmatprep.subr.bf16.mxu0 0
  %1988 = vmatpush1.bf16.msra.mxu0 0
  %1989 = vmatprep.mubr.bf16.mxu0 0
  %1990 = vmatmul.mubr.bf16.gmra.mrb[0].mxu0 %v1723
  %v1991 = vpop.f32.mrb[0].mxu0
  %v1992 = vadd.f32 0.0, %v1991
  %v1993 = vpop.f32.mrb[0].mxu0
  %v1994 = vadd.f32 0.0, %v1993
  %v1995 = vpop.f32.mrb[0].mxu0
  %v1996 = vpop.f32.mrb[0].mxu0
  %1997 = vdwg.mxu0
  %v1998 = vadd.f32 %v1292, %v1951
  %v1999 = vadd.f32 %v1293, %v1953
  %v2000 = vadd.f32 %v1294, %v1992
  %v2001 = vadd.f32 %v1295, %v1994
  %v2002 = vmax.f32 %v1998, 0.0
  %v2003 = vmax.f32 %v1999, 0.0
  %v2004 = vmax.f32 %v2000, 0.0
  %v2005 = vmax.f32 %v2001, 0.0
  %2006 = vst [vmem:[%s14] sm:$0xff] %v2002
  %2007 = vst [vmem:[%s14 + $0x8] sm:$0xff] %v2003
  %2008 = vst [vmem:[%s14 + $0x10] sm:$0xff] %v2004
  %2009 = vst [vmem:[%s14 + $0x18] sm:$0xff] %v2005
  %v2010 = vld [vmem:[%s8] sm:$0xf]
  %v2011 = vld [vmem:[%s9] sm:$0xff]
  %2012 = vrot.lane.b32.xlu0 %v1292, 17
  %v2013 = vpop.permute.xlu0 %2012
  %2014 = vrot.lane.b32.xlu0 %v1293, 17
  %v2015 = vpop.permute.xlu0 %2014
  %2016 = vrot.lane.b32.xlu0 %v1294, 17
  %v2017 = vpop.permute.xlu0 %2016
  %2018 = vrot.lane.b32.xlu0 %v1295, 17
  %v2019 = vpop.permute.xlu0 %2018
  %v2020 = vsel %vm94, %v2017, %v2019
  %v2021 = vsel %vm94, %v2015, %v2017
  %v2022 = vsel %vm94, %v2013, %v2015
  %v2023 = vsel %vm94, %v2019, %v2013
  %v2024 = vmul.f32 %v2023, %v103
  %v2025 = vmul.f32 %v2022, %v107
  %v2026 = vmul.f32 %v2021, %v111
  %v2027 = vmul.f32 %v2020, %v115
  %2028 = vrot.lane.b32.xlu0 %v1292, 16
  %v2029 = vpop.permute.xlu0 %2028
  %2030 = vrot.lane.b32.xlu0 %v1293, 16
  %v2031 = vpop.permute.xlu0 %2030
  %2032 = vrot.lane.b32.xlu0 %v1294, 16
  %v2033 = vpop.permute.xlu0 %2032
  %2034 = vrot.lane.b32.xlu0 %v1295, 16
  %v2035 = vpop.permute.xlu0 %2034
  %v2036 = vsel %vm132, %v2033, %v2035
  %v2037 = vsel %vm132, %v2031, %v2033
  %v2038 = vsel %vm132, %v2029, %v2031
  %v2039 = vsel %vm132, %v2035, %v2029
  %v2040 = vmul.f32 %v2039, %v141
  %v2041 = vmul.f32 %v2038, %v145
  %v2042 = vmul.f32 %v2037, %v149
  %v2043 = vmul.f32 %v2036, %v153
  %2044 = vrot.lane.b32.xlu0 %v1292, 15
  %v2045 = vpop.permute.xlu0 %2044
  %2046 = vrot.lane.b32.xlu0 %v1293, 15
  %v2047 = vpop.permute.xlu0 %2046
  %2048 = vrot.lane.b32.xlu0 %v1294, 15
  %v2049 = vpop.permute.xlu0 %2048
  %2050 = vrot.lane.b32.xlu0 %v1295, 15
  %v2051 = vpop.permute.xlu0 %2050
  %v2052 = vsel %vm170, %v2049, %v2051
  %v2053 = vsel %vm170, %v2047, %v2049
  %v2054 = vsel %vm170, %v2045, %v2047
  %v2055 = vsel %vm170, %v2051, %v2045
  %v2056 = vmul.f32 %v2055, %v179
  %v2057 = vmul.f32 %v2054, %v183
  %v2058 = vmul.f32 %v2053, %v187
  %v2059 = vmul.f32 %v2052, %v191
  %2060 = vrot.lane.b32.xlu0 %v1292, 1
  %v2061 = vpop.permute.xlu0 %2060
  %2062 = vrot.lane.b32.xlu0 %v1293, 1
  %v2063 = vpop.permute.xlu0 %2062
  %2064 = vrot.lane.b32.xlu0 %v1294, 1
  %v2065 = vpop.permute.xlu0 %2064
  %2066 = vrot.lane.b32.xlu0 %v1295, 1
  %v2067 = vpop.permute.xlu0 %2066
  %v2068 = vsel %vm208, %v2065, %v2067
  %v2069 = vsel %vm208, %v2063, %v2065
  %v2070 = vsel %vm208, %v2061, %v2063
  %v2071 = vsel %vm208, %v2067, %v2061
  %v2072 = vmul.f32 %v2071, %v217
  %v2073 = vmul.f32 %v2070, %v221
  %v2074 = vmul.f32 %v2069, %v225
  %v2075 = vmul.f32 %v2068, %v229
  %2076 = vrot.lane.b32.xlu0 %v1292, 127
  %v2077 = vpop.permute.xlu0 %2076
  %2078 = vrot.lane.b32.xlu0 %v1293, 127
  %v2079 = vpop.permute.xlu0 %2078
  %2080 = vrot.lane.b32.xlu0 %v1294, 127
  %v2081 = vpop.permute.xlu0 %2080
  %2082 = vrot.lane.b32.xlu0 %v1295, 127
  %v2083 = vpop.permute.xlu0 %2082
  %v2084 = vsel %vm246, %v2081, %v2083
  %v2085 = vsel %vm246, %v2079, %v2081
  %v2086 = vsel %vm246, %v2077, %v2079
  %v2087 = vsel %vm246, %v2083, %v2077
  %v2088 = vmul.f32 %v2086, %v255
  %v2089 = vmul.f32 %v2085, %v259
  %v2090 = vmul.f32 %v2084, %v263
  %v2091 = vmul.f32 %v2087, %v267
  %2092 = vrot.lane.b32.xlu0 %v1292, 113
  %v2093 = vpop.permute.xlu0 %2092
  %2094 = vrot.lane.b32.xlu0 %v1293, 113
  %v2095 = vpop.permute.xlu0 %2094
  %2096 = vrot.lane.b32.xlu0 %v1294, 113
  %v2097 = vpop.permute.xlu0 %2096
  %2098 = vrot.lane.b32.xlu0 %v1295, 113
  %v2099 = vpop.permute.xlu0 %2098
  %v2100 = vsel %vm284, %v2097, %v2099
  %v2101 = vsel %vm284, %v2095, %v2097
  %v2102 = vsel %vm284, %v2093, %v2095
  %v2103 = vsel %vm284, %v2099, %v2093
  %v2104 = vmul.f32 %v2102, %v293
  %v2105 = vmul.f32 %v2101, %v297
  %v2106 = vmul.f32 %v2100, %v301
  %v2107 = vmul.f32 %v2103, %v305
  %2108 = vrot.lane.b32.xlu0 %v1292, 112
  %v2109 = vpop.permute.xlu0 %2108
  %2110 = vrot.lane.b32.xlu0 %v1293, 112
  %v2111 = vpop.permute.xlu0 %2110
  %2112 = vrot.lane.b32.xlu0 %v1294, 112
  %v2113 = vpop.permute.xlu0 %2112
  %2114 = vrot.lane.b32.xlu0 %v1295, 112
  %v2115 = vpop.permute.xlu0 %2114
  %v2116 = vsel %vm322, %v2113, %v2115
  %v2117 = vsel %vm322, %v2111, %v2113
  %v2118 = vsel %vm322, %v2109, %v2111
  %v2119 = vsel %vm322, %v2115, %v2109
  %v2120 = vmul.f32 %v2118, %v331
  %v2121 = vmul.f32 %v2117, %v335
  %v2122 = vmul.f32 %v2116, %v339
  %v2123 = vmul.f32 %v2119, %v343
  %2124 = vrot.lane.b32.xlu0 %v1292, 111
  %v2125 = vpop.permute.xlu0 %2124
  %2126 = vrot.lane.b32.xlu0 %v1293, 111
  %v2127 = vpop.permute.xlu0 %2126
  %2128 = vrot.lane.b32.xlu0 %v1294, 111
  %v2129 = vpop.permute.xlu0 %2128
  %2130 = vrot.lane.b32.xlu0 %v1295, 111
  %v2131 = vpop.permute.xlu0 %2130
  %v2132 = vsel %vm360, %v2129, %v2131
  %v2133 = vsel %vm360, %v2127, %v2129
  %v2134 = vsel %vm360, %v2125, %v2127
  %v2135 = vsel %vm360, %v2131, %v2125
  %v2136 = vmul.f32 %v2134, %v369
  %v2137 = vmul.f32 %v2133, %v373
  %v2138 = vmul.f32 %v2132, %v377
  %v2139 = vmul.f32 %v2135, %v381
  %v2140 = vpack.c.bf16 %v2040, %v2024
  %v2141 = vpack.c.bf16 %v2041, %v2025
  %v2142 = vpack.c.bf16 %v2042, %v2026
  %v2143 = vpack.c.bf16 %v2043, %v2027
  %v2144 = vpack.c.bf16 %v2072, %v2056
  %v2145 = vpack.c.bf16 %v2073, %v2057
  %v2146 = vpack.c.bf16 %v2074, %v2058
  %v2147 = vpack.c.bf16 %v2075, %v2059
  %v2148 = vpack.c.bf16 %v2088, %v1292
  %v2149 = vpack.c.bf16 %v2089, %v1293
  %v2150 = vpack.c.bf16 %v2090, %v1294
  %v2151 = vpack.c.bf16 %v2091, %v1295
  %v2152 = vpack.c.bf16 %v2120, %v2104
  %v2153 = vpack.c.bf16 %v2121, %v2105
  %v2154 = vpack.c.bf16 %v2122, %v2106
  %v2155 = vpack.c.bf16 %v2123, %v2107
  %v2156 = vpack.c.bf16 %v2136, %v2136
  %v2157 = vpack.c.bf16 %v2137, %v2137
  %v2158 = vpack.c.bf16 %v2138, %v2138
  %v2159 = vpack.c.bf16 %v2139, %v2139
  %2161 = vset.pattern.permute.xlu0 0
  %2162 = vperm.xlu0 %2161, %v2011
  %v2163 = vpop.permute.xlu0 %2162
  %v2166 = vsel %vm415, %v2010, 0
  %v2169 = vsel %vm419, %v2156, 0
  %v2172 = vsel %vm419, %v2157, 0
  %v2175 = vsel %vm419, %v2158, 0
  %v2178 = vsel %vm419, %v2159, 0
  %2180 = vmatprep.subr.bf16.mxu0 %v2141
  %2181 = vmatpush1.bf16.msra.mxu0 %v2140
  %2182 = vmatprep.subr.bf16.mxu0 %v2145
  %2183 = vmatpush1.bf16.msra.mxu0 %v2144
  %2184 = vmatprep.subr.bf16.mxu0 %v2149
  %2185 = vmatpush1.bf16.msra.mxu0 %v2148
  %2186 = vmatprep.subr.bf16.mxu0 %v2153
  %2187 = vmatpush1.bf16.msra.mxu0 %v2152
  %2188 = vmatprep.subr.bf16.mxu0 %v2172
  %2189 = vmatpush1.bf16.msra.mxu0 %v2169
  %2190 = vmatprep.subr.bf16.mxu0 0
  %2191 = vmatpush1.bf16.msra.mxu0 0
  %2192 = vmatprep.subr.bf16.mxu0 0
  %2193 = vmatpush1.bf16.msra.mxu0 0
  %2194 = vmatprep.subr.bf16.mxu0 0
  %2195 = vmatpush1.bf16.msra.mxu0 0
  %2196 = vmatprep.subr.bf16.mxu0 0
  %2197 = vmatpush1.bf16.msra.mxu0 0
  %2198 = vmatprep.subr.bf16.mxu0 0
  %2199 = vmatpush1.bf16.msra.mxu0 0
  %2200 = vmatprep.subr.bf16.mxu0 0
  %2201 = vmatpush1.bf16.msra.mxu0 0
  %2202 = vmatprep.subr.bf16.mxu0 0
  %2203 = vmatpush1.bf16.msra.mxu0 0
  %2204 = vmatprep.subr.bf16.mxu0 0
  %2205 = vmatpush1.bf16.msra.mxu0 0
  %2206 = vmatprep.subr.bf16.mxu0 0
  %2207 = vmatpush1.bf16.msra.mxu0 0
  %2208 = vmatprep.subr.bf16.mxu0 0
  %2209 = vmatpush1.bf16.msra.mxu0 0
  %2210 = vmatprep.subr.bf16.mxu0 0
  %2211 = vmatpush1.bf16.msra.mxu0 0
  %2212 = vmatprep.mubr.bf16.mxu0 0
  %2213 = vmatmul.mubr.bf16.gmra.mrb[0].mxu0 %v2166
  %v2214 = vpop.f32.mrb[0].mxu0
  %v2215 = vadd.f32 %v2163, %v2214
  %v2216 = vpop.f32.mrb[0].mxu0
  %v2217 = vadd.f32 %v2163, %v2216
  %v2218 = vpop.f32.mrb[0].mxu0
  %v2219 = vpop.f32.mrb[0].mxu0
  %2220 = vdwg.mxu0
  %2221 = vmatprep.subr.bf16.mxu0 %v2143
  %2222 = vmatpush1.bf16.msra.mxu0 %v2142
  %2223 = vmatprep.subr.bf16.mxu0 %v2147
  %2224 = vmatpush1.bf16.msra.mxu0 %v2146
  %2225 = vmatprep.subr.bf16.mxu0 %v2151
  %2226 = vmatpush1.bf16.msra.mxu0 %v2150
  %2227 = vmatprep.subr.bf16.mxu0 %v2155
  %2228 = vmatpush1.bf16.msra.mxu0 %v2154
  %2229 = vmatprep.subr.bf16.mxu0 %v2178
  %2230 = vmatpush1.bf16.msra.mxu0 %v2175
  %2231 = vmatprep.subr.bf16.mxu0 0
  %2232 = vmatpush1.bf16.msra.mxu0 0
  %2233 = vmatprep.subr.bf16.mxu0 0
  %2234 = vmatpush1.bf16.msra.mxu0 0
  %2235 = vmatprep.subr.bf16.mxu0 0
  %2236 = vmatpush1.bf16.msra.mxu0 0
  %2237 = vmatprep.subr.bf16.mxu0 0
  %2238 = vmatpush1.bf16.msra.mxu0 0
  %2239 = vmatprep.subr.bf16.mxu0 0
  %2240 = vmatpush1.bf16.msra.mxu0 0
  %2241 = vmatprep.subr.bf16.mxu0 0
  %2242 = vmatpush1.bf16.msra.mxu0 0
  %2243 = vmatprep.subr.bf16.mxu0 0
  %2244 = vmatpush1.bf16.msra.mxu0 0
  %2245 = vmatprep.subr.bf16.mxu0 0
  %2246 = vmatpush1.bf16.msra.mxu0 0
  %2247 = vmatprep.subr.bf16.mxu0 0
  %2248 = vmatpush1.bf16.msra.mxu0 0
  %2249 = vmatprep.subr.bf16.mxu0 0
  %2250 = vmatpush1.bf16.msra.mxu0 0
  %2251 = vmatprep.subr.bf16.mxu0 0
  %2252 = vmatpush1.bf16.msra.mxu0 0
  %2253 = vmatprep.mubr.bf16.mxu0 0
  %2254 = vmatmul.mubr.bf16.gmra.mrb[0].mxu0 %v2166
  %v2255 = vpop.f32.mrb[0].mxu0
  %v2256 = vadd.f32 %v2163, %v2255
  %v2257 = vpop.f32.mrb[0].mxu0
  %v2258 = vadd.f32 %v2163, %v2257
  %v2259 = vpop.f32.mrb[0].mxu0
  %v2260 = vpop.f32.mrb[0].mxu0
  %2261 = vdwg.mxu0
  %v2262 = vpack.c.bf16 %v2215, %v2215
  %v2263 = vpack.c.bf16 %v2217, %v2217
  %v2264 = vpack.c.bf16 %v2256, %v2256
  %v2265 = vpack.c.bf16 %v2258, %v2258
  %v2266 = vld [vmem:[%s11] sm:$0xf]
  %v2267 = vld [vmem:[%s11 + $0x4] sm:$0xf]
  %v2268 = vld [vmem:[%s11 + $0x8] sm:$0xf]
  %v2269 = vld [vmem:[%s11 + $0xc] sm:$0xf]
  %v2270 = vld [vmem:[%s11 + $0x10] sm:$0xf]
  %v2271 = vld [vmem:[%s11 + $0x14] sm:$0xf]
  %v2272 = vld [vmem:[%s11 + $0x18] sm:$0xf]
  %v2273 = vld [vmem:[%s11 + $0x1c] sm:$0xf]
  %v2274 = vld [vmem:[%s11 + $0x20] sm:$0xf]
  %v2275 = vld [vmem:[%s11 + $0x24] sm:$0xf]
  %v2276 = vld [vmem:[%s11 + $0x28] sm:$0xf]
  %v2277 = vld [vmem:[%s11 + $0x2c] sm:$0xf]
  %v2278 = vld [vmem:[%s11 + $0x30] sm:$0xf]
  %v2279 = vld [vmem:[%s11 + $0x34] sm:$0xf]
  %v2280 = vld [vmem:[%s11 + $0x38] sm:$0xf]
  %v2281 = vld [vmem:[%s11 + $0x3c] sm:$0xf]
  %v2282 = vld [vmem:[%s11 + $0x40] sm:$0xf]
  %v2283 = vld [vmem:[%s11 + $0x44] sm:$0xf]
  %v2284 = vld [vmem:[%s11 + $0x48] sm:$0xf]
  %v2285 = vld [vmem:[%s11 + $0x4c] sm:$0xf]
  %v2286 = vld [vmem:[%s11 + $0x50] sm:$0xf]
  %v2287 = vld [vmem:[%s11 + $0x54] sm:$0xf]
  %v2288 = vld [vmem:[%s11 + $0x58] sm:$0xf]
  %v2289 = vld [vmem:[%s11 + $0x5c] sm:$0xf]
  %v2290 = vld [vmem:[%s11 + $0x60] sm:$0xf]
  %v2291 = vld [vmem:[%s11 + $0x64] sm:$0xf]
  %v2292 = vld [vmem:[%s11 + $0x68] sm:$0xf]
  %v2293 = vld [vmem:[%s11 + $0x6c] sm:$0xf]
  %v2294 = vld [vmem:[%s11 + $0x70] sm:$0xf]
  %v2295 = vld [vmem:[%s11 + $0x74] sm:$0xf]
  %v2296 = vld [vmem:[%s11 + $0x78] sm:$0xf]
  %v2297 = vld [vmem:[%s11 + $0x7c] sm:$0xf]
  %v2298 = vld [vmem:[%s11 + $0x80] sm:$0xf]
  %v2299 = vld [vmem:[%s11 + $0x84] sm:$0xf]
  %v2300 = vld [vmem:[%s11 + $0x88] sm:$0xf]
  %v2301 = vld [vmem:[%s11 + $0x8c] sm:$0xf]
  %v2302 = vld [vmem:[%s11 + $0x90] sm:$0xf]
  %v2303 = vld [vmem:[%s11 + $0x94] sm:$0xf]
  %v2304 = vld [vmem:[%s11 + $0x98] sm:$0xf]
  %v2305 = vld [vmem:[%s11 + $0x9c] sm:$0xf]
  %v2306 = vld [vmem:[%s11 + $0xa0] sm:$0xf]
  %v2307 = vld [vmem:[%s11 + $0xa4] sm:$0xf]
  %v2308 = vld [vmem:[%s11 + $0xa8] sm:$0xf]
  %v2309 = vld [vmem:[%s11 + $0xac] sm:$0xf]
  %v2310 = vld [vmem:[%s11 + $0xb0] sm:$0xf]
  %v2311 = vld [vmem:[%s11 + $0xb4] sm:$0xf]
  %v2312 = vld [vmem:[%s11 + $0xb8] sm:$0xf]
  %v2313 = vld [vmem:[%s11 + $0xbc] sm:$0xf]
  %v2314 = vld [vmem:[%s11 + $0xc0] sm:$0xf]
  %v2315 = vld [vmem:[%s11 + $0xc4] sm:$0xf]
  %v2316 = vld [vmem:[%s11 + $0xc8] sm:$0xf]
  %v2317 = vld [vmem:[%s11 + $0xcc] sm:$0xf]
  %v2318 = vld [vmem:[%s11 + $0xd0] sm:$0xf]
  %v2319 = vld [vmem:[%s11 + $0xd4] sm:$0xf]
  %v2320 = vld [vmem:[%s11 + $0xd8] sm:$0xf]
  %v2321 = vld [vmem:[%s11 + $0xdc] sm:$0xf]
  %v2322 = vld [vmem:[%s11 + $0xe0] sm:$0xf]
  %v2323 = vld [vmem:[%s11 + $0xe4] sm:$0xf]
  %v2324 = vld [vmem:[%s11 + $0xe8] sm:$0xf]
  %v2325 = vld [vmem:[%s11 + $0xec] sm:$0xf]
  %v2326 = vld [vmem:[%s11 + $0xf0] sm:$0xf]
  %v2327 = vld [vmem:[%s11 + $0xf4] sm:$0xf]
  %v2328 = vld [vmem:[%s11 + $0xf8] sm:$0xf]
  %v2329 = vld [vmem:[%s11 + $0xfc] sm:$0xf]
  %v2394 = vunpack.c.l.b16 %v2266
  %v2395 = vunpack.c.l.b16 %v2267
  %v2396 = vunpack.c.l.b16 %v2268
  %v2397 = vunpack.c.l.b16 %v2269
  %v2398 = vunpack.c.l.b16 %v2270
  %v2399 = vunpack.c.l.b16 %v2271
  %v2400 = vunpack.c.l.b16 %v2272
  %v2401 = vunpack.c.l.b16 %v2273
  %v2402 = vunpack.c.l.b16 %v2274
  %v2403 = vunpack.c.l.b16 %v2275
  %v2404 = vunpack.c.l.b16 %v2276
  %v2405 = vunpack.c.l.b16 %v2277
  %v2406 = vunpack.c.l.b16 %v2278
  %v2407 = vunpack.c.l.b16 %v2279
  %v2408 = vunpack.c.l.b16 %v2280
  %v2409 = vunpack.c.l.b16 %v2281
  %v2410 = vunpack.c.l.b16 %v2282
  %v2411 = vunpack.c.l.b16 %v2283
  %v2412 = vunpack.c.l.b16 %v2284
  %v2413 = vunpack.c.l.b16 %v2285
  %v2414 = vunpack.c.l.b16 %v2286
  %v2415 = vunpack.c.l.b16 %v2287
  %v2416 = vunpack.c.l.b16 %v2288
  %v2417 = vunpack.c.l.b16 %v2289
  %v2418 = vunpack.c.l.b16 %v2290
  %v2419 = vunpack.c.l.b16 %v2291
  %v2420 = vunpack.c.l.b16 %v2292
  %v2421 = vunpack.c.l.b16 %v2293
  %v2422 = vunpack.c.l.b16 %v2294
  %v2423 = vunpack.c.l.b16 %v2295
  %v2424 = vunpack.c.l.b16 %v2296
  %v2425 = vunpack.c.l.b16 %v2297
  %v2426 = vunpack.c.l.b16 %v2298
  %v2427 = vunpack.c.l.b16 %v2299
  %v2428 = vunpack.c.l.b16 %v2300
  %v2429 = vunpack.c.l.b16 %v2301
  %v2430 = vunpack.c.l.b16 %v2302
  %v2431 = vunpack.c.l.b16 %v2303
  %v2432 = vunpack.c.l.b16 %v2304
  %v2433 = vunpack.c.l.b16 %v2305
  %v2434 = vunpack.c.l.b16 %v2306
  %v2435 = vunpack.c.l.b16 %v2307
  %v2436 = vunpack.c.l.b16 %v2308
  %v2437 = vunpack.c.l.b16 %v2309
  %v2438 = vunpack.c.l.b16 %v2310
  %v2439 = vunpack.c.l.b16 %v2311
  %v2440 = vunpack.c.l.b16 %v2312
  %v2441 = vunpack.c.l.b16 %v2313
  %v2442 = vunpack.c.l.b16 %v2314
  %v2443 = vunpack.c.l.b16 %v2315
  %v2444 = vunpack.c.l.b16 %v2316
  %v2445 = vunpack.c.l.b16 %v2317
  %v2446 = vunpack.c.l.b16 %v2318
  %v2447 = vunpack.c.l.b16 %v2319
  %v2448 = vunpack.c.l.b16 %v2320
  %v2449 = vunpack.c.l.b16 %v2321
  %v2450 = vunpack.c.l.b16 %v2322
  %v2451 = vunpack.c.l.b16 %v2323
  %v2452 = vunpack.c.l.b16 %v2324
  %v2453 = vunpack.c.l.b16 %v2325
  %v2454 = vunpack.c.l.b16 %v2326
  %v2455 = vunpack.c.l.b16 %v2327
  %v2456 = vunpack.c.l.b16 %v2328
  %v2457 = vunpack.c.l.b16 %v2329
  %v2458 = vpack.c.b16 %v2395, %v2394
  %v2459 = vpack.c.b16 %v2397, %v2396
  %v2460 = vpack.c.b16 %v2399, %v2398
  %v2461 = vpack.c.b16 %v2401, %v2400
  %v2462 = vpack.c.b16 %v2403, %v2402
  %v2463 = vpack.c.b16 %v2405, %v2404
  %v2464 = vpack.c.b16 %v2407, %v2406
  %v2465 = vpack.c.b16 %v2409, %v2408
  %v2466 = vpack.c.b16 %v2411, %v2410
  %v2467 = vpack.c.b16 %v2413, %v2412
  %v2468 = vpack.c.b16 %v2415, %v2414
  %v2469 = vpack.c.b16 %v2417, %v2416
  %v2470 = vpack.c.b16 %v2419, %v2418
  %v2471 = vpack.c.b16 %v2421, %v2420
  %v2472 = vpack.c.b16 %v2423, %v2422
  %v2473 = vpack.c.b16 %v2425, %v2424
  %v2474 = vpack.c.b16 %v2427, %v2426
  %v2475 = vpack.c.b16 %v2429, %v2428
  %v2476 = vpack.c.b16 %v2431, %v2430
  %v2477 = vpack.c.b16 %v2433, %v2432
  %v2478 = vpack.c.b16 %v2435, %v2434
  %v2479 = vpack.c.b16 %v2437, %v2436
  %v2480 = vpack.c.b16 %v2439, %v2438
  %v2481 = vpack.c.b16 %v2441, %v2440
  %v2482 = vpack.c.b16 %v2443, %v2442
  %v2483 = vpack.c.b16 %v2445, %v2444
  %v2484 = vpack.c.b16 %v2447, %v2446
  %v2485 = vpack.c.b16 %v2449, %v2448
  %v2486 = vpack.c.b16 %v2451, %v2450
  %v2487 = vpack.c.b16 %v2453, %v2452
  %v2488 = vpack.c.b16 %v2455, %v2454
  %v2489 = vpack.c.b16 %v2457, %v2456
  %2522 = vmatprep.subr.bf16.mxu0 0
  %2523 = vmatpush1.bf16.msra.mxu0 %v2458
  %2524 = vmatprep.subr.bf16.mxu0 0
  %2525 = vmatpush1.bf16.msra.mxu0 %v2459
  %2526 = vmatprep.subr.bf16.mxu0 0
  %2527 = vmatpush1.bf16.msra.mxu0 %v2460
  %2528 = vmatprep.subr.bf16.mxu0 0
  %2529 = vmatpush1.bf16.msra.mxu0 %v2461
  %2530 = vmatprep.subr.bf16.mxu0 0
  %2531 = vmatpush1.bf16.msra.mxu0 %v2462
  %2532 = vmatprep.subr.bf16.mxu0 0
  %2533 = vmatpush1.bf16.msra.mxu0 %v2463
  %2534 = vmatprep.subr.bf16.mxu0 0
  %2535 = vmatpush1.bf16.msra.mxu0 %v2464
  %2536 = vmatprep.subr.bf16.mxu0 0
  %2537 = vmatpush1.bf16.msra.mxu0 %v2465
  %2538 = vmatprep.subr.bf16.mxu0 0
  %2539 = vmatpush1.bf16.msra.mxu0 %v2466
  %2540 = vmatprep.subr.bf16.mxu0 0
  %2541 = vmatpush1.bf16.msra.mxu0 %v2467
  %2542 = vmatprep.subr.bf16.mxu0 0
  %2543 = vmatpush1.bf16.msra.mxu0 %v2468
  %2544 = vmatprep.subr.bf16.mxu0 0
  %2545 = vmatpush1.bf16.msra.mxu0 %v2469
  %2546 = vmatprep.subr.bf16.mxu0 0
  %2547 = vmatpush1.bf16.msra.mxu0 %v2470
  %2548 = vmatprep.subr.bf16.mxu0 0
  %2549 = vmatpush1.bf16.msra.mxu0 %v2471
  %2550 = vmatprep.subr.bf16.mxu0 0
  %2551 = vmatpush1.bf16.msra.mxu0 %v2472
  %2552 = vmatprep.subr.bf16.mxu0 0
  %2553 = vmatpush1.bf16.msra.mxu0 %v2473
  %2554 = vmatprep.mubr.bf16.mxu0 %v2263
  %2555 = vmatmul.mubr.bf16.gmra.mrb[0].mxu0 %v2262
  %v2556 = vpop.f32.mrb[0].mxu0
  %v2557 = vadd.f32 %v1667, %v2556
  %v2558 = vpop.f32.mrb[0].mxu0
  %v2559 = vpop.f32.mrb[0].mxu0
  %v2560 = vpop.f32.mrb[0].mxu0
  %2561 = vdwg.mxu0
  %2562 = vmatprep.subr.bf16.mxu0 0
  %2563 = vmatpush1.bf16.msra.mxu0 %v2474
  %2564 = vmatprep.subr.bf16.mxu0 0
  %2565 = vmatpush1.bf16.msra.mxu0 %v2475
  %2566 = vmatprep.subr.bf16.mxu0 0
  %2567 = vmatpush1.bf16.msra.mxu0 %v2476
  %2568 = vmatprep.subr.bf16.mxu0 0
  %2569 = vmatpush1.bf16.msra.mxu0 %v2477
  %2570 = vmatprep.subr.bf16.mxu0 0
  %2571 = vmatpush1.bf16.msra.mxu0 %v2478
  %2572 = vmatprep.subr.bf16.mxu0 0
  %2573 = vmatpush1.bf16.msra.mxu0 %v2479
  %2574 = vmatprep.subr.bf16.mxu0 0
  %2575 = vmatpush1.bf16.msra.mxu0 %v2480
  %2576 = vmatprep.subr.bf16.mxu0 0
  %2577 = vmatpush1.bf16.msra.mxu0 %v2481
  %2578 = vmatprep.subr.bf16.mxu0 0
  %2579 = vmatpush1.bf16.msra.mxu0 %v2482
  %2580 = vmatprep.subr.bf16.mxu0 0
  %2581 = vmatpush1.bf16.msra.mxu0 %v2483
  %2582 = vmatprep.subr.bf16.mxu0 0
  %2583 = vmatpush1.bf16.msra.mxu0 %v2484
  %2584 = vmatprep.subr.bf16.mxu0 0
  %2585 = vmatpush1.bf16.msra.mxu0 %v2485
  %2586 = vmatprep.subr.bf16.mxu0 0
  %2587 = vmatpush1.bf16.msra.mxu0 %v2486
  %2588 = vmatprep.subr.bf16.mxu0 0
  %2589 = vmatpush1.bf16.msra.mxu0 %v2487
  %2590 = vmatprep.subr.bf16.mxu0 0
  %2591 = vmatpush1.bf16.msra.mxu0 %v2488
  %2592 = vmatprep.subr.bf16.mxu0 0
  %2593 = vmatpush1.bf16.msra.mxu0 %v2489
  %2594 = vmatprep.mubr.bf16.mxu0 %v2265
  %2595 = vmatmul.mubr.bf16.gmra.mrb[0].mxu0 %v2264
  %v2596 = vpop.f32.mrb[0].mxu0
  %v2597 = vadd.f32 %v2557, %v2596
  %v2598 = vpop.f32.mrb[0].mxu0
  %v2599 = vpop.f32.mrb[0].mxu0
  %v2600 = vpop.f32.mrb[0].mxu0
  %2601 = vdwg.mxu0
  %v2602 = vmax.f32 %v2597, 0.0
  %2603 = vst [vmem:[%s15] sm:$0xff] %v2602
  // Predicated region
  $region58: #{fmi_forward.1} parent=0 // pred_check
    _
  $region59: #{fmi_forward.1} parent=0 // pred_check_branch
    %2605 = sbr.rel (0) target = $region61
  $region60: #{fmi_forward.1} parent=0 // pred_region
    _
  $region61: #{fmi_forward.1} parent=0 // pred_fallthru
    _
  // Predicated region
  $region62: #{fmi_forward.1} parent=0 // pred_check
    _
  $region63: #{fmi_forward.1} parent=0 // pred_check_branch
    %2607 = sbr.rel (0) target = $region65
  $region64: #{fmi_forward.1} parent=0 // pred_region
    _
  $region65: #{fmi_forward.1} parent=0 // pred_fallthru
    _
  // Predicated region
  $region66: #{fmi_forward.1} parent=0 // pred_check
    _
  $region67: #{fmi_forward.1} parent=0 // pred_check_branch
    %2609 = sbr.rel (0) target = $region69
  $region68: #{fmi_forward.1} parent=0 // pred_region
    _
  $region69: #{fmi_forward.1} parent=0 // pred_fallthru
    _
  // Predicated region
  $region70: #{fmi_forward.1} parent=0 // pred_check
    _
  $region71: #{fmi_forward.1} parent=0 // pred_check_branch
    %2611 = sbr.rel (0) target = $region73
  $region72: #{fmi_forward.1} parent=0 // pred_region
    _
  $region73: #{fmi_forward.1} parent=0 // pred_fallthru
    _

</llo_original>
